<compile_context>
chip_gen: v6e
topology: v6e:2x2x1
jax: 0.10.0
libtpu: 0.0.40
codegen_flags: <defaults>
</compile_context>

<pallas_src>
import jax
import jax.numpy as jnp
from jax import lax
from jax.experimental import pallas as pl
from jax.experimental.pallas import tpu as pltpu


# --------------------------------------------------------------------------
# In-kernel helper: fused "same" Conv1d + folded BN + ReLU as one im2col matmul
# --------------------------------------------------------------------------

def _conv_bn_relu(x, w_ref, s_ref, b_ref, xpad_sc, patch_sc):
    """x: (C_in, L) f32 value.
    w_ref:    (C_out, C_in*K) bf16, im2col layout w2d[co, k*C_in+ci] = w[co, ci, k]
    s_ref/b_ref: (C_out, 1) f32 folded BN scale / bias
    xpad_sc:  (C_in, L+K-1) bf16 VMEM scratch (zero-padded input)
    patch_sc: (C_in*K, L)   bf16 VMEM scratch (im2col patches)
    returns:  (C_out, L) f32
    """
    C_in, _ = xpad_sc.shape
    KC, L = patch_sc.shape
    K = KC // C_in
    pad = K // 2
    # in-kernel "same" padding (no host-side jnp.pad / extra HBM pass)
    xpad_sc[...] = jnp.zeros(xpad_sc.shape, xpad_sc.dtype)
    xpad_sc[:, pad:pad + L] = x.astype(jnp.bfloat16)
    # build im2col patches (static unroll over taps)
    for k in range(K):
        patch_sc[k * C_in:(k + 1) * C_in, :] = xpad_sc[:, k:k + L]
    # single MXU matmul, contraction depth C_in*K, bf16 operands, f32 accumulation
    y = jnp.dot(w_ref[...], patch_sc[...], preferred_element_type=jnp.float32)
    return jnp.maximum(y * s_ref[...] + b_ref[...], 0.0)


# --------------------------------------------------------------------------
# Fused block kernels
# --------------------------------------------------------------------------

def _conv0_kernel(x_ref, w_ref, s_ref, b_ref, o_ref, xpad_sc, patch_sc):
    o_ref[...] = _conv_bn_relu(x_ref[...], w_ref, s_ref, b_ref, xpad_sc, patch_sc)


def _se_block_kernel(x_ref, w1_ref, s1_ref, b1_ref, w2_ref, s2_ref, b2_ref,
                     sew1_ref, sew2_ref, o_ref, xpad_sc, patch_sc):
    # SEResidual: z = relu(x + conv2(conv1(x))); out = z * sigmoid(W2 relu(W1 mean_L(z)))
    x = x_ref[...]                                                   # (C, L) f32
    h = _conv_bn_relu(x, w1_ref, s1_ref, b1_ref, xpad_sc, patch_sc)
    h = _conv_bn_relu(h, w2_ref, s2_ref, b2_ref, xpad_sc, patch_sc)
    z = jnp.maximum(x + h, 0.0)
    # SE on the VPU/XLU (no N=1 MXU matmuls); sew1 stored as (C, r) = W1^T, sew2 = (C, r)
    pooled = jnp.mean(z, axis=1, keepdims=True)                                       # (C, 1)
    hid = jnp.maximum(jnp.sum(sew1_ref[...] * pooled, axis=0, keepdims=True), 0.0)    # (1, r)
    gate = jax.nn.sigmoid(jnp.sum(sew2_ref[...] * hid, axis=1, keepdims=True))        # (C, 1)
    o_ref[...] = z * gate


def _attn_block_kernel(x_ref, bpp_ref, w1_ref, s1_ref, b1_ref,
                       w2_ref, s2_ref, b2_ref, o_ref, xpad_sc, patch_sc):
    # ResidualGraphAttention: out = relu(x + conv2(conv1(x @ bpp)))
    x = x_ref[...]                                                   # (C, L) f32
    g = jnp.dot(x.astype(jnp.bfloat16), bpp_ref[...],
                preferred_element_type=jnp.float32)                  # (C, L)
    g = _conv_bn_relu(g, w1_ref, s1_ref, b1_ref, xpad_sc, patch_sc)
    g = _conv_bn_relu(g, w2_ref, s2_ref, b2_ref, xpad_sc, patch_sc)
    o_ref[...] = jnp.maximum(x + g, 0.0)


# --------------------------------------------------------------------------
# Block wrappers
# --------------------------------------------------------------------------

def _wspec(a):
    return pl.BlockSpec(a.shape, lambda b: (0, 0))


def conv_block(x, cp):
    """Initial Conv(dim -> d_model) + BN + ReLU. x: (B, C_in, L) -> (B, C_out, L)."""
    B, C_in, L = x.shape
    C_out, KC = cp['w2d'].shape
    K = KC // C_in
    return pl.pallas_call(
        _conv0_kernel,
        grid=(B,),
        in_specs=[pl.BlockSpec((None, C_in, L), lambda b: (b, 0, 0)),
                  _wspec(cp['w2d']), _wspec(cp['scale']), _wspec(cp['bias'])],
        out_specs=pl.BlockSpec((None, C_out, L), lambda b: (b, 0, 0)),
        out_shape=jax.ShapeDtypeStruct((B, C_out, L), jnp.float32),
        scratch_shapes=[pltpu.VMEM((C_in, L + K - 1), jnp.bfloat16),
                        pltpu.VMEM((KC, L), jnp.bfloat16)],
        compiler_params=pltpu.CompilerParams(dimension_semantics=("parallel",)),
    )(x, cp['w2d'], cp['scale'], cp['bias'])


def se_block(x, blk):
    """Fused SEResidual block. x: (B, C, L) -> (B, C, L)."""
    B, C, L = x.shape
    c1, c2 = blk['conv1'], blk['conv2']
    KC = c1['w2d'].shape[1]
    K = KC // C
    return pl.pallas_call(
        _se_block_kernel,
        grid=(B,),
        in_specs=[pl.BlockSpec((None, C, L), lambda b: (b, 0, 0)),
                  _wspec(c1['w2d']), _wspec(c1['scale']), _wspec(c1['bias']),
                  _wspec(c2['w2d']), _wspec(c2['scale']), _wspec(c2['bias']),
                  _wspec(blk['se_w1t']), _wspec(blk['se_w2'])],
        out_specs=pl.BlockSpec((None, C, L), lambda b: (b, 0, 0)),
        out_shape=jax.ShapeDtypeStruct((B, C, L), jnp.float32),
        scratch_shapes=[pltpu.VMEM((C, L + K - 1), jnp.bfloat16),
                        pltpu.VMEM((KC, L), jnp.bfloat16)],
        compiler_params=pltpu.CompilerParams(dimension_semantics=("parallel",)),
    )(x, c1['w2d'], c1['scale'], c1['bias'],
      c2['w2d'], c2['scale'], c2['bias'],
      blk['se_w1t'], blk['se_w2'])


def attn_block(x, bpp, att):
    """Fused ResidualGraphAttention block. x: (B, C, L), bpp: (B, L, L) bf16."""
    B, C, L = x.shape
    c1, c2 = att['conv1'], att['conv2']
    KC = c1['w2d'].shape[1]
    K = KC // C
    return pl.pallas_call(
        _attn_block_kernel,
        grid=(B,),
        in_specs=[pl.BlockSpec((None, C, L), lambda b: (b, 0, 0)),
                  pl.BlockSpec((None, L, L), lambda b: (b, 0, 0)),
                  _wspec(c1['w2d']), _wspec(c1['scale']), _wspec(c1['bias']),
                  _wspec(c2['w2d']), _wspec(c2['scale']), _wspec(c2['bias'])],
        out_specs=pl.BlockSpec((None, C, L), lambda b: (b, 0, 0)),
        out_shape=jax.ShapeDtypeStruct((B, C, L), jnp.float32),
        scratch_shapes=[pltpu.VMEM((C, L + K - 1), jnp.bfloat16),
                        pltpu.VMEM((KC, L), jnp.bfloat16)],
        compiler_params=pltpu.CompilerParams(dimension_semantics=("parallel",)),
    )(x, bpp, c1['w2d'], c1['scale'], c1['bias'],
      c2['w2d'], c2['scale'], c2['bias'])


# --------------------------------------------------------------------------
# Dense / LSTM kernels
# --------------------------------------------------------------------------

def _linear_kernel(x_ref, w_ref, b_ref, o_ref):
    o_ref[...] = (jnp.dot(x_ref[...].astype(jnp.bfloat16), w_ref[...],
                          preferred_element_type=jnp.float32) + b_ref[...])


def _linear_cat2_kernel(a_ref, c_ref, w_ref, b_ref, o_ref):
    # concat of fw/bw halves happens in VMEM (no HBM concat pass)
    x = jnp.concatenate([a_ref[...], c_ref[...]], axis=1).astype(jnp.bfloat16)
    o_ref[...] = (jnp.dot(x, w_ref[...], preferred_element_type=jnp.float32)
                  + b_ref[...])


def linear(x2d, w, b):
    M = x2d.shape[0]
    N = w.shape[1]
    return pl.pallas_call(
        _linear_kernel,
        out_shape=jax.ShapeDtypeStruct((M, N), jnp.float32),
    )(x2d, w, b)


def linear_cat2(a2d, c2d, w, b):
    M = a2d.shape[0]
    N = w.shape[1]
    return pl.pallas_call(
        _linear_cat2_kernel,
        out_shape=jax.ShapeDtypeStruct((M, N), jnp.float32),
    )(a2d, c2d, w, b)


def _bilstm_recurrence_kernel(xp_ref, whhf_ref, whhb_ref, ofw_ref, obw_ref,
                              hf_sc, cf_sc, hb_sc, cb_sc):
    # xp_ref:  (T, B, 8H) hoisted x@Wih + bias; fw gates in lanes [0,4H), bw in [4H,8H)
    # whh*_ref: (H, 4H) bf16 recurrent weights, fused gate order i,f,g,o
    # ofw/obw: (T, B, H) per-direction hidden-state sequences (bw written flip-free)
    T = xp_ref.shape[0]
    H = whhf_ref.shape[0]
    H4 = 4 * H

    hf_sc[...] = jnp.zeros(hf_sc.shape, hf_sc.dtype)
    cf_sc[...] = jnp.zeros(cf_sc.shape, cf_sc.dtype)
    hb_sc[...] = jnp.zeros(hb_sc.shape, hb_sc.dtype)
    cb_sc[...] = jnp.zeros(cb_sc.shape, cb_sc.dtype)

    def cell(gates, c_prev):
        i = jax.nn.sigmoid(gates[:, 0:H])
        f = jax.nn.sigmoid(gates[:, H:2 * H])
        g = jnp.tanh(gates[:, 2 * H:3 * H])
        o = jax.nn.sigmoid(gates[:, 3 * H:4 * H])
        c = f * c_prev + i * g
        return o * jnp.tanh(c), c

    def step(t, carry):
        # forward direction, time t: one (B,H)@(H,4H) matmul for all four gates
        gf = (xp_ref[t][:, 0:H4]
              + jnp.dot(hf_sc[...].astype(jnp.bfloat16), whhf_ref[...],
                        preferred_element_type=jnp.float32))
        hf, cf = cell(gf, cf_sc[...])
        hf_sc[...] = hf
        cf_sc[...] = cf
        ofw_ref[t] = hf
        # backward direction, time T-1-t (no jnp.flip anywhere)
        tb = T - 1 - t
        gb = (xp_ref[tb][:, H4:2 * H4]
              + jnp.dot(hb_sc[...].astype(jnp.bfloat16), whhb_ref[...],
                        preferred_element_type=jnp.float32))
        hb, cb = cell(gb, cb_sc[...])
        hb_sc[...] = hb
        cb_sc[...] = cb
        obw_ref[tb] = hb
        return carry

    lax.fori_loop(0, T, step, 0)


def bilstm_layer(x_parts, layer, *, T, B):
    """One bidirectional LSTM layer.

    x_parts: tuple of flat (T*B, .) feature chunks (features concatenated in order).
    Returns (h_fw, h_bw) as flat (T*B, H) arrays.
    """
    # hoisted input projection for both directions: one large MXU matmul
    if len(x_parts) == 1:
        xp = linear(x_parts[0], layer['wih'], layer['b'])          # (T*B, 8H)
    else:
        xp = linear_cat2(x_parts[0], x_parts[1], layer['wih'], layer['b'])
    H = layer['whh_f'].shape[0]
    xp = xp.reshape(T, B, 8 * H)                                   # free (row-major) reshape
    ofw, obw = pl.pallas_call(
        _bilstm_recurrence_kernel,
        out_shape=(jax.ShapeDtypeStruct((T, B, H), jnp.float32),
                   jax.ShapeDtypeStruct((T, B, H), jnp.float32)),
        scratch_shapes=[pltpu.VMEM((B, H), jnp.float32) for _ in range(4)],
    )(xp, layer['whh_f'], layer['whh_b'])
    return ofw.reshape(T * B, H), obw.reshape(T * B, H)


# --------------------------------------------------------------------------
# Parameter construction (deterministic, synthetic; PyTorch-compatible layouts)
# --------------------------------------------------------------------------

def make_params(key, *, dim, d_model, num_layers, kernel_sizes,
                reduction=16, lstm_layers=2):
    keys = iter(jax.random.split(key, 1024))

    def nrm(shape, s=0.1):
        return jax.random.normal(next(keys), shape, jnp.float32) * s

    def conv_params(c_in, c_out, k):
        eps = 1e-5
        w = nrm((c_out, c_in, k))
        conv_b = nrm((c_out,))
        gamma = 1.0 + nrm((c_out,))
        beta = nrm((c_out,))
        run_mean = nrm((c_out,))
        run_var = 1.0 + jnp.abs(nrm((c_out,)))
        scale = gamma / jnp.sqrt(run_var + eps)
        bias = (conv_b - run_mean) * scale + beta
        # im2col weight layout: w2d[co, k*c_in + ci] = w[co, ci, k]; bf16 MXU operand
        w2d = jnp.transpose(w, (0, 2, 1)).reshape(c_out, k * c_in).astype(jnp.bfloat16)
        return dict(w2d=w2d, scale=scale.reshape(c_out, 1), bias=bias.reshape(c_out, 1))

    p = {'emb': nrm((4, dim), 1.0), 'conv0': conv_params(dim, d_model, 5),
         'blocks': [], 'attentions': []}
    for i in range(num_layers):
        k = kernel_sizes[i]
        p['blocks'].append(dict(
            conv1=conv_params(d_model, d_model, k),
            conv2=conv_params(d_model, d_model, k),
            # SE weights stored (C, r) so both projections are vector-unit reductions
            se_w1t=nrm((d_model // reduction, d_model)).T,     # (C, r) = W1^T
            se_w2=nrm((d_model, d_model // reduction)),        # (C, r) = W2
        ))
        p['attentions'].append(dict(
            conv1=conv_params(d_model, d_model, k),
            conv2=conv_params(d_model, d_model, k),
        ))

    H = d_model // 2
    lstm = []
    din = d_model
    for _ in range(lstm_layers):
        wih_cols, b_cols, whh = [], [], {}
        for dname in ('f', 'b'):
            w_ih = nrm((4 * H, din))          # PyTorch layout, gate order i,f,g,o
            w_hh = nrm((4 * H, H))
            b_ih = nrm((4 * H,))
            b_hh = nrm((4 * H,))
            wih_cols.append(w_ih.T)                             # (din, 4H)
            b_cols.append(b_ih + b_hh)
            whh['whh_' + dname] = w_hh.T.astype(jnp.bfloat16)   # (H, 4H)
        lstm.append(dict(
            wih=jnp.concatenate(wih_cols, axis=1).astype(jnp.bfloat16),   # (din, 8H)
            b=jnp.concatenate(b_cols).reshape(1, 8 * H),
            whh_f=whh['whh_f'], whh_b=whh['whh_b']))
        din = 2 * H
    p['lstm'] = lstm

    p['proj_w_t'] = nrm((4, d_model)).T.astype(jnp.bfloat16)    # (d_model, 4)
    p['proj_b'] = nrm((4,)).reshape(1, 4)
    return p


# --------------------------------------------------------------------------
# Model forward (fully jitted)
# --------------------------------------------------------------------------

@jax.jit
def ribonanza_forward(params, seq, bp_matrix):
    """seq: (B, Lmax) int tokens in [0, 4); bp_matrix: (B, Lmax, Lmax) float32."""
    B, L = seq.shape
    x = jnp.take(params['emb'], seq, axis=0)        # (B, L, dim)   embedding (XLA glue)
    x = jnp.transpose(x, (0, 2, 1))                 # (B, dim, L)   channels-first
    x = conv_block(x, params['conv0'])              # (B, d_model, L)
    bpp = bp_matrix.astype(jnp.bfloat16)            # MXU operand, cast once
    for blk, att in zip(params['blocks'], params['attentions']):
        x = se_block(x, blk)                        # fused SEResidual
        x = attn_block(x, bpp, att)                 # fused ResidualGraphAttention
    D = x.shape[1]
    x2d = jnp.transpose(x, (2, 0, 1)).reshape(L * B, D)   # time-major flat (T*B, D)
    hf, hb = bilstm_layer((x2d,), params['lstm'][0], T=L, B=B)
    hf, hb = bilstm_layer((hf, hb), params['lstm'][1], T=L, B=B)
    out2d = linear_cat2(hf, hb, params['proj_w_t'], params['proj_b'])   # (T*B, 4)
    return jnp.transpose(out2d.reshape(L, B, 4), (1, 0, 2))             # (B, L, 4)


# --------------------------------------------------------------------------
# Main
# --------------------------------------------------------------------------

if __name__ == "__main__":
    key = jax.random.PRNGKey(0)
    kp, sk, bk = jax.random.split(key, 3)

    B, L = 2, 16
    dim, d_model = 16, 32
    num_layers = 3
    kernel_sizes = [9, 9, 9, 7, 7, 7, 5, 5, 5, 3, 3, 3][:num_layers]

    params = make_params(kp, dim=dim, d_model=d_model,
                         num_layers=num_layers, kernel_sizes=kernel_sizes)

    seq_full = jax.random.randint(sk, (B, L), 0, 4, dtype=jnp.int32)
    bp_full = jax.random.uniform(bk, (B, L, L), jnp.float32)
    lengths = jnp.array([L, L - 4], dtype=jnp.int32)
    mask = (jnp.arange(L)[None, :] < lengths[:, None]).astype(jnp.int32)

    # Lmax = mask.sum(-1).max() -> dynamic crop on concrete data, host-side
    # (matches the PyTorch forward; padded positions are not masked downstream there).
    Lmax = int(jnp.max(jnp.sum(mask, axis=-1)))
    seq = seq_full[:, :Lmax]
    bpps = bp_full[:, :Lmax, :Lmax]

    out = ribonanza_forward(params, seq, bpps)
    out = jax.block_until_ready(out)
    assert out.shape == (B, Lmax, 4)
    assert bool(jnp.all(jnp.isfinite(out)))
    print("KERNEL_OK")
</pallas_src>

<mosaic_0001>
module attributes {stable_mosaic.version = 11 : i64} {
  func.func @_linear_kernel(%arg0: memref<32x32xf32, #tpu.memory_space<vmem>>, %arg1: memref<32x128xbf16, #tpu.memory_space<vmem>>, %arg2: memref<1x128xf32, #tpu.memory_space<vmem>>, %arg3: memref<32x128xf32, #tpu.memory_space<vmem>>) attributes {dimension_semantics = [], scalar_prefetch = 0 : i64, scratch_operands = 0 : i64, tpu.core_type = #tpu.core_type<tc>} {
    %c0 = arith.constant 0 : index
    %c0_0 = arith.constant 0 : index
    %0 = vector.load %arg0[%c0, %c0_0] : memref<32x32xf32, #tpu.memory_space<vmem>>, vector<32x32xf32>
    %1 = arith.truncf %0 : vector<32x32xf32> to vector<32x32xbf16>
    %c0_1 = arith.constant 0 : index
    %c0_2 = arith.constant 0 : index
    %2 = vector.load %arg1[%c0_1, %c0_2] : memref<32x128xbf16, #tpu.memory_space<vmem>>, vector<32x128xbf16>
    %cst = arith.constant dense<0.000000e+00> : vector<32x128xf32>
    %3 = tpu.matmul %1, %2, %cst {dimension_numbers = #tpu.dot_dimension_numbers<[1], [0], [0], [1], [0, 0, 1, 1], [], []>} : vector<32x32xbf16>, vector<32x128xbf16>, vector<32x128xf32> -> vector<32x128xf32>
    %c0_3 = arith.constant 0 : index
    %c0_4 = arith.constant 0 : index
    %4 = vector.load %arg2[%c0_3, %c0_4] : memref<1x128xf32, #tpu.memory_space<vmem>>, vector<1x128xf32>
    %5 = vector.broadcast %4 : vector<1x128xf32> to vector<32x128xf32>
    %6 = arith.addf %3, %5 : vector<32x128xf32>
    %c0_5 = arith.constant 0 : index
    %c0_6 = arith.constant 0 : index
    %7 = vector.load %arg3[%c0_5, %c0_6] : memref<32x128xf32, #tpu.memory_space<vmem>>, vector<32x128xf32>
    tpu.vector_store %arg3[%c0_5, %c0_6], %6 {strides = array<i32>} : memref<32x128xf32, #tpu.memory_space<vmem>>, vector<32x128xf32>,
    return
  }
}

module attributes {stable_mosaic.version = 11 : i64} {
  func.func @_conv0_kernel(%arg0: i32, %arg1: memref<1x16x16xf32, #tpu.memory_space<vmem>>, %arg2: memref<32x80xbf16, #tpu.memory_space<vmem>>, %arg3: memref<32x1xf32, #tpu.memory_space<vmem>>, %arg4: memref<32x1xf32, #tpu.memory_space<vmem>>, %arg5: memref<1x32x16xf32, #tpu.memory_space<vmem>>, %arg6: memref<16x20xbf16, #tpu.memory_space<vmem>>, %arg7: memref<80x16xbf16, #tpu.memory_space<vmem>>) attributes {dimension_semantics = [#tpu.dimension_semantics<parallel>], iteration_bounds = array<i64: 2>, scalar_prefetch = 0 : i64, scratch_operands = 2 : i64, tpu.core_type = #tpu.core_type<tc>, window_params = [{transform_indices = @transform_0, window_bounds = array<i64: 1, 16, 16>}, {pipeline_mode = #tpu.pipeline_mode<synchronous>, transform_indices = @transform_1, window_bounds = array<i64: 32, 80>}, {pipeline_mode = #tpu.pipeline_mode<synchronous>, transform_indices = @transform_2, window_bounds = array<i64: 32, 1>}, {pipeline_mode = #tpu.pipeline_mode<synchronous>, transform_indices = @transform_3, window_bounds = array<i64: 32, 1>}, {transform_indices = @transform_4, window_bounds = array<i64: 1, 32, 16>}]} {
    %c0 = arith.constant 0 : index
    %c0_0 = arith.constant 0 : index
    %c0_1 = arith.constant 0 : index
    %0 = vector.load %arg1[%c0, %c0_0, %c0_1] : memref<1x16x16xf32, #tpu.memory_space<vmem>>, vector<1x16x16xf32>
    %1 = vector.shape_cast %0 : vector<1x16x16xf32> to vector<16x16xf32>
    %cst = arith.constant 0.000000e+00 : bf16
    %2 = vector.broadcast %cst : bf16 to vector<16x20xbf16>
    %c0_2 = arith.constant 0 : index
    %c0_3 = arith.constant 0 : index
    %3 = vector.load %arg6[%c0_2, %c0_3] : memref<16x20xbf16, #tpu.memory_space<vmem>>, vector<16x20xbf16>
    tpu.vector_store %arg6[%c0_2, %c0_3], %2 {strides = array<i32>} : memref<16x20xbf16, #tpu.memory_space<vmem>>, vector<16x20xbf16>,
    %4 = arith.truncf %1 : vector<16x16xf32> to vector<16x16xbf16>
    %c0_4 = arith.constant 0 : index
    %c2 = arith.constant 2 : index
    %5 = vector.load %arg6[%c0_4, %c2] : memref<16x20xbf16, #tpu.memory_space<vmem>>, vector<16x16xbf16>
    tpu.vector_store %arg6[%c0_4, %c2], %4 {strides = array<i32>} : memref<16x20xbf16, #tpu.memory_space<vmem>>, vector<16x16xbf16>,
    %c0_5 = arith.constant 0 : index
    %c0_6 = arith.constant 0 : index
    %6 = vector.load %arg6[%c0_5, %c0_6] : memref<16x20xbf16, #tpu.memory_space<vmem>>, vector<16x16xbf16>
    %c0_7 = arith.constant 0 : index
    %c0_8 = arith.constant 0 : index
    %7 = vector.load %arg7[%c0_7, %c0_8] : memref<80x16xbf16, #tpu.memory_space<vmem>>, vector<16x16xbf16>
    tpu.vector_store %arg7[%c0_7, %c0_8], %6 {strides = array<i32>} : memref<80x16xbf16, #tpu.memory_space<vmem>>, vector<16x16xbf16>,
    %c0_9 = arith.constant 0 : index
    %c1 = arith.constant 1 : index
    %8 = vector.load %arg6[%c0_9, %c1] : memref<16x20xbf16, #tpu.memory_space<vmem>>, vector<16x16xbf16>
    %c16 = arith.constant 16 : index
    %c0_10 = arith.constant 0 : index
    %9 = vector.load %arg7[%c16, %c0_10] : memref<80x16xbf16, #tpu.memory_space<vmem>>, vector<16x16xbf16>
    tpu.vector_store %arg7[%c16, %c0_10], %8 {strides = array<i32>} : memref<80x16xbf16, #tpu.memory_space<vmem>>, vector<16x16xbf16>,
    %c0_11 = arith.constant 0 : index
    %c2_12 = arith.constant 2 : index
    %10 = vector.load %arg6[%c0_11, %c2_12] : memref<16x20xbf16, #tpu.memory_space<vmem>>, vector<16x16xbf16>
    %c32 = arith.constant 32 : index
    %c0_13 = arith.constant 0 : index
    %11 = vector.load %arg7[%c32, %c0_13] : memref<80x16xbf16, #tpu.memory_space<vmem>>, vector<16x16xbf16>
    tpu.vector_store %arg7[%c32, %c0_13], %10 {strides = array<i32>} : memref<80x16xbf16, #tpu.memory_space<vmem>>, vector<16x16xbf16>,
    %c0_14 = arith.constant 0 : index
    %c3 = arith.constant 3 : index
    %12 = vector.load %arg6[%c0_14, %c3] : memref<16x20xbf16, #tpu.memory_space<vmem>>, vector<16x16xbf16>
    %c48 = arith.constant 48 : index
    %c0_15 = arith.constant 0 : index
    %13 = vector.load %arg7[%c48, %c0_15] : memref<80x16xbf16, #tpu.memory_space<vmem>>, vector<16x16xbf16>
    tpu.vector_store %arg7[%c48, %c0_15], %12 {strides = array<i32>} : memref<80x16xbf16, #tpu.memory_space<vmem>>, vector<16x16xbf16>,
    %c0_16 = arith.constant 0 : index
    %c4 = arith.constant 4 : index
    %14 = vector.load %arg6[%c0_16, %c4] : memref<16x20xbf16, #tpu.memory_space<vmem>>, vector<16x16xbf16>
    %c64 = arith.constant 64 : index
    %c0_17 = arith.constant 0 : index
    %15 = vector.load %arg7[%c64, %c0_17] : memref<80x16xbf16, #tpu.memory_space<vmem>>, vector<16x16xbf16>
    tpu.vector_store %arg7[%c64, %c0_17], %14 {strides = array<i32>} : memref<80x16xbf16, #tpu.memory_space<vmem>>, vector<16x16xbf16>,
    %c0_18 = arith.constant 0 : index
    %c0_19 = arith.constant 0 : index
    %16 = vector.load %arg2[%c0_18, %c0_19] : memref<32x80xbf16, #tpu.memory_space<vmem>>, vector<32x80xbf16>
    %c0_20 = arith.constant 0 : index
    %c0_21 = arith.constant 0 : index
    %17 = vector.load %arg7[%c0_20, %c0_21] : memref<80x16xbf16, #tpu.memory_space<vmem>>, vector<80x16xbf16>
    %cst_22 = arith.constant dense<0.000000e+00> : vector<32x16xf32>
    %18 = tpu.matmul %16, %17, %cst_22 {dimension_numbers = #tpu.dot_dimension_numbers<[1], [0], [0], [1], [0, 0, 1, 1], [], []>} : vector<32x80xbf16>, vector<80x16xbf16>, vector<32x16xf32> -> vector<32x16xf32>
    %c0_23 = arith.constant 0 : index
    %c0_24 = arith.constant 0 : index
    %19 = vector.load %arg3[%c0_23, %c0_24] : memref<32x1xf32, #tpu.memory_space<vmem>>, vector<32x1xf32>
    %20 = vector.broadcast %19 : vector<32x1xf32> to vector<32x16xf32>
    %21 = arith.mulf %18, %20 : vector<32x16xf32>
    %c0_25 = arith.constant 0 : index
    %c0_26 = arith.constant 0 : index
    %22 = vector.load %arg4[%c0_25, %c0_26] : memref<32x1xf32, #tpu.memory_space<vmem>>, vector<32x1xf32>
    %23 = vector.broadcast %22 : vector<32x1xf32> to vector<32x16xf32>
    %24 = arith.addf %21, %23 : vector<32x16xf32>
    %cst_27 = arith.constant 0.000000e+00 : f32
    %25 = vector.broadcast %cst_27 : f32 to vector<32x16xf32>
    %26 = arith.maximumf %24, %25 : vector<32x16xf32>
    %c0_28 = arith.constant 0 : index
    %c0_29 = arith.constant 0 : index
    %c0_30 = arith.constant 0 : index
    %27 = vector.load %arg5[%c0_28, %c0_29, %c0_30] : memref<1x32x16xf32, #tpu.memory_space<vmem>>, vector<1x32x16xf32>
    %28 = vector.shape_cast %27 : vector<1x32x16xf32> to vector<32x16xf32>
    %29 = vector.shape_cast %26 : vector<32x16xf32> to vector<1x32x16xf32>
    tpu.vector_store %arg5[%c0_28, %c0_29, %c0_30], %29 {strides = array<i32>} : memref<1x32x16xf32, #tpu.memory_space<vmem>>, vector<1x32x16xf32>,
    return
  }
  func.func @transform_0(%arg0: i32) -> (i32, i32, i32) {
    %c0_i32 = arith.constant 0 : i32
    %c0_i32_0 = arith.constant 0 : i32
    %c0_i32_1 = arith.constant 0 : i32
    return %arg0, %c0_i32, %c0_i32_0 : i32, i32, i32
  }
  func.func @transform_1(%arg0: i32) -> (i32, i32) {
    %c0_i32 = arith.constant 0 : i32
    %c0_i32_0 = arith.constant 0 : i32
    %c0_i32_1 = arith.constant 0 : i32
    return %c0_i32, %c0_i32_0 : i32, i32
  }
  func.func @transform_2(%arg0: i32) -> (i32, i32) {
    %c0_i32 = arith.constant 0 : i32
    %c0_i32_0 = arith.constant 0 : i32
    %c0_i32_1 = arith.constant 0 : i32
    return %c0_i32, %c0_i32_0 : i32, i32
  }
  func.func @transform_3(%arg0: i32) -> (i32, i32) {
    %c0_i32 = arith.constant 0 : i32
    %c0_i32_0 = arith.constant 0 : i32
    %c0_i32_1 = arith.constant 0 : i32
    return %c0_i32, %c0_i32_0 : i32, i32
  }
  func.func @transform_4(%arg0: i32) -> (i32, i32, i32) {
    %c0_i32 = arith.constant 0 : i32
    %c0_i32_0 = arith.constant 0 : i32
    %c0_i32_1 = arith.constant 0 : i32
    return %arg0, %c0_i32, %c0_i32_0 : i32, i32, i32
  }
}

module attributes {stable_mosaic.version = 11 : i64} {
  func.func @_attn_block_kernel(%arg0: i32, %arg1: memref<1x32x16xf32, #tpu.memory_space<vmem>>, %arg2: memref<1x16x16xbf16, #tpu.memory_space<vmem>>, %arg3: memref<32x288xbf16, #tpu.memory_space<vmem>>, %arg4: memref<32x1xf32, #tpu.memory_space<vmem>>, %arg5: memref<32x1xf32, #tpu.memory_space<vmem>>, %arg6: memref<32x288xbf16, #tpu.memory_space<vmem>>, %arg7: memref<32x1xf32, #tpu.memory_space<vmem>>, %arg8: memref<32x1xf32, #tpu.memory_space<vmem>>, %arg9: memref<1x32x16xf32, #tpu.memory_space<vmem>>, %arg10: memref<32x24xbf16, #tpu.memory_space<vmem>>, %arg11: memref<288x16xbf16, #tpu.memory_space<vmem>>) attributes {dimension_semantics = [#tpu.dimension_semantics<parallel>], iteration_bounds = array<i64: 2>, scalar_prefetch = 0 : i64, scratch_operands = 2 : i64, tpu.core_type = #tpu.core_type<tc>, window_params = [{transform_indices = @transform_0, window_bounds = array<i64: 1, 32, 16>}, {transform_indices = @transform_1, window_bounds = array<i64: 1, 16, 16>}, {pipeline_mode = #tpu.pipeline_mode<synchronous>, transform_indices = @transform_2, window_bounds = array<i64: 32, 288>}, {pipeline_mode = #tpu.pipeline_mode<synchronous>, transform_indices = @transform_3, window_bounds = array<i64: 32, 1>}, {pipeline_mode = #tpu.pipeline_mode<synchronous>, transform_indices = @transform_4, window_bounds = array<i64: 32, 1>}, {pipeline_mode = #tpu.pipeline_mode<synchronous>, transform_indices = @transform_5, window_bounds = array<i64: 32, 288>}, {pipeline_mode = #tpu.pipeline_mode<synchronous>, transform_indices = @transform_6, window_bounds = array<i64: 32, 1>}, {pipeline_mode = #tpu.pipeline_mode<synchronous>, transform_indices = @transform_7, window_bounds = array<i64: 32, 1>}, {transform_indices = @transform_8, window_bounds = array<i64: 1, 32, 16>}]} {
    %c0 = arith.constant 0 : index
    %c0_0 = arith.constant 0 : index
    %c0_1 = arith.constant 0 : index
    %0 = vector.load %arg1[%c0, %c0_0, %c0_1] : memref<1x32x16xf32, #tpu.memory_space<vmem>>, vector<1x32x16xf32>
    %1 = vector.shape_cast %0 : vector<1x32x16xf32> to vector<32x16xf32>
    %2 = arith.truncf %1 : vector<32x16xf32> to vector<32x16xbf16>
    %c0_2 = arith.constant 0 : index
    %c0_3 = arith.constant 0 : index
    %c0_4 = arith.constant 0 : index
    %3 = vector.load %arg2[%c0_2, %c0_3, %c0_4] : memref<1x16x16xbf16, #tpu.memory_space<vmem>>, vector<1x16x16xbf16>
    %4 = vector.shape_cast %3 : vector<1x16x16xbf16> to vector<16x16xbf16>
    %cst = arith.constant dense<0.000000e+00> : vector<32x16xf32>
    %5 = tpu.matmul %2, %4, %cst {dimension_numbers = #tpu.dot_dimension_numbers<[1], [0], [0], [1], [0, 0, 1, 1], [], []>} : vector<32x16xbf16>, vector<16x16xbf16>, vector<32x16xf32> -> vector<32x16xf32>
    %cst_5 = arith.constant 0.000000e+00 : bf16
    %6 = vector.broadcast %cst_5 : bf16 to vector<32x24xbf16>
    %c0_6 = arith.constant 0 : index
    %c0_7 = arith.constant 0 : index
    %7 = vector.load %arg10[%c0_6, %c0_7] : memref<32x24xbf16, #tpu.memory_space<vmem>>, vector<32x24xbf16>
    tpu.vector_store %arg10[%c0_6, %c0_7], %6 {strides = array<i32>} : memref<32x24xbf16, #tpu.memory_space<vmem>>, vector<32x24xbf16>,
    %8 = arith.truncf %5 : vector<32x16xf32> to vector<32x16xbf16>
    %c0_8 = arith.constant 0 : index
    %c4 = arith.constant 4 : index
    %9 = vector.load %arg10[%c0_8, %c4] : memref<32x24xbf16, #tpu.memory_space<vmem>>, vector<32x16xbf16>
    tpu.vector_store %arg10[%c0_8, %c4], %8 {strides = array<i32>} : memref<32x24xbf16, #tpu.memory_space<vmem>>, vector<32x16xbf16>,
    %c0_9 = arith.constant 0 : index
    %c0_10 = arith.constant 0 : index
    %10 = vector.load %arg10[%c0_9, %c0_10] : memref<32x24xbf16, #tpu.memory_space<vmem>>, vector<32x16xbf16>
    %c0_11 = arith.constant 0 : index
    %c0_12 = arith.constant 0 : index
    %11 = vector.load %arg11[%c0_11, %c0_12] : memref<288x16xbf16, #tpu.memory_space<vmem>>, vector<32x16xbf16>
    tpu.vector_store %arg11[%c0_11, %c0_12], %10 {strides = array<i32>} : memref<288x16xbf16, #tpu.memory_space<vmem>>, vector<32x16xbf16>,
    %c0_13 = arith.constant 0 : index
    %c1 = arith.constant 1 : index
    %12 = vector.load %arg10[%c0_13, %c1] : memref<32x24xbf16, #tpu.memory_space<vmem>>, vector<32x16xbf16>
    %c32 = arith.constant 32 : index
    %c0_14 = arith.constant 0 : index
    %13 = vector.load %arg11[%c32, %c0_14] : memref<288x16xbf16, #tpu.memory_space<vmem>>, vector<32x16xbf16>
    tpu.vector_store %arg11[%c32, %c0_14], %12 {strides = array<i32>} : memref<288x16xbf16, #tpu.memory_space<vmem>>, vector<32x16xbf16>,
    %c0_15 = arith.constant 0 : index
    %c2 = arith.constant 2 : index
    %14 = vector.load %arg10[%c0_15, %c2] : memref<32x24xbf16, #tpu.memory_space<vmem>>, vector<32x16xbf16>
    %c64 = arith.constant 64 : index
    %c0_16 = arith.constant 0 : index
    %15 = vector.load %arg11[%c64, %c0_16] : memref<288x16xbf16, #tpu.memory_space<vmem>>, vector<32x16xbf16>
    tpu.vector_store %arg11[%c64, %c0_16], %14 {strides = array<i32>} : memref<288x16xbf16, #tpu.memory_space<vmem>>, vector<32x16xbf16>,
    %c0_17 = arith.constant 0 : index
    %c3 = arith.constant 3 : index
    %16 = vector.load %arg10[%c0_17, %c3] : memref<32x24xbf16, #tpu.memory_space<vmem>>, vector<32x16xbf16>
    %c96 = arith.constant 96 : index
    %c0_18 = arith.constant 0 : index
    %17 = vector.load %arg11[%c96, %c0_18] : memref<288x16xbf16, #tpu.memory_space<vmem>>, vector<32x16xbf16>
    tpu.vector_store %arg11[%c96, %c0_18], %16 {strides = array<i32>} : memref<288x16xbf16, #tpu.memory_space<vmem>>, vector<32x16xbf16>,
    %c0_19 = arith.constant 0 : index
    %c4_20 = arith.constant 4 : index
    %18 = vector.load %arg10[%c0_19, %c4_20] : memref<32x24xbf16, #tpu.memory_space<vmem>>, vector<32x16xbf16>
    %c128 = arith.constant 128 : index
    %c0_21 = arith.constant 0 : index
    %19 = vector.load %arg11[%c128, %c0_21] : memref<288x16xbf16, #tpu.memory_space<vmem>>, vector<32x16xbf16>
    tpu.vector_store %arg11[%c128, %c0_21], %18 {strides = array<i32>} : memref<288x16xbf16, #tpu.memory_space<vmem>>, vector<32x16xbf16>,
    %c0_22 = arith.constant 0 : index
    %c5 = arith.constant 5 : index
    %20 = vector.load %arg10[%c0_22, %c5] : memref<32x24xbf16, #tpu.memory_space<vmem>>, vector<32x16xbf16>
    %c160 = arith.constant 160 : index
    %c0_23 = arith.constant 0 : index
    %21 = vector.load %arg11[%c160, %c0_23] : memref<288x16xbf16, #tpu.memory_space<vmem>>, vector<32x16xbf16>
    tpu.vector_store %arg11[%c160, %c0_23], %20 {strides = array<i32>} : memref<288x16xbf16, #tpu.memory_space<vmem>>, vector<32x16xbf16>,
    %c0_24 = arith.constant 0 : index
    %c6 = arith.constant 6 : index
    %22 = vector.load %arg10[%c0_24, %c6] : memref<32x24xbf16, #tpu.memory_space<vmem>>, vector<32x16xbf16>
    %c192 = arith.constant 192 : index
    %c0_25 = arith.constant 0 : index
    %23 = vector.load %arg11[%c192, %c0_25] : memref<288x16xbf16, #tpu.memory_space<vmem>>, vector<32x16xbf16>
    tpu.vector_store %arg11[%c192, %c0_25], %22 {strides = array<i32>} : memref<288x16xbf16, #tpu.memory_space<vmem>>, vector<32x16xbf16>,
    %c0_26 = arith.constant 0 : index
    %c7 = arith.constant 7 : index
    %24 = vector.load %arg10[%c0_26, %c7] : memref<32x24xbf16, #tpu.memory_space<vmem>>, vector<32x16xbf16>
    %c224 = arith.constant 224 : index
    %c0_27 = arith.constant 0 : index
    %25 = vector.load %arg11[%c224, %c0_27] : memref<288x16xbf16, #tpu.memory_space<vmem>>, vector<32x16xbf16>
    tpu.vector_store %arg11[%c224, %c0_27], %24 {strides = array<i32>} : memref<288x16xbf16, #tpu.memory_space<vmem>>, vector<32x16xbf16>,
    %c0_28 = arith.constant 0 : index
    %c8 = arith.constant 8 : index
    %26 = vector.load %arg10[%c0_28, %c8] : memref<32x24xbf16, #tpu.memory_space<vmem>>, vector<32x16xbf16>
    %c256 = arith.constant 256 : index
    %c0_29 = arith.constant 0 : index
    %27 = vector.load %arg11[%c256, %c0_29] : memref<288x16xbf16, #tpu.memory_space<vmem>>, vector<32x16xbf16>
    tpu.vector_store %arg11[%c256, %c0_29], %26 {strides = array<i32>} : memref<288x16xbf16, #tpu.memory_space<vmem>>, vector<32x16xbf16>,
    %c0_30 = arith.constant 0 : index
    %c0_31 = arith.constant 0 : index
    %28 = vector.load %arg3[%c0_30, %c0_31] : memref<32x288xbf16, #tpu.memory_space<vmem>>, vector<32x288xbf16>
    %c0_32 = arith.constant 0 : index
    %c0_33 = arith.constant 0 : index
    %29 = vector.load %arg11[%c0_32, %c0_33] : memref<288x16xbf16, #tpu.memory_space<vmem>>, vector<288x16xbf16>
    %cst_34 = arith.constant dense<0.000000e+00> : vector<32x16xf32>
    %30 = tpu.matmul %28, %29, %cst_34 {dimension_numbers = #tpu.dot_dimension_numbers<[1], [0], [0], [1], [0, 0, 1, 1], [], []>} : vector<32x288xbf16>, vector<288x16xbf16>, vector<32x16xf32> -> vector<32x16xf32>
    %c0_35 = arith.constant 0 : index
    %c0_36 = arith.constant 0 : index
    %31 = vector.load %arg4[%c0_35, %c0_36] : memref<32x1xf32, #tpu.memory_space<vmem>>, vector<32x1xf32>
    %32 = vector.broadcast %31 : vector<32x1xf32> to vector<32x16xf32>
    %33 = arith.mulf %30, %32 : vector<32x16xf32>
    %c0_37 = arith.constant 0 : index
    %c0_38 = arith.constant 0 : index
    %34 = vector.load %arg5[%c0_37, %c0_38] : memref<32x1xf32, #tpu.memory_space<vmem>>, vector<32x1xf32>
    %35 = vector.broadcast %34 : vector<32x1xf32> to vector<32x16xf32>
    %36 = arith.addf %33, %35 : vector<32x16xf32>
    %cst_39 = arith.constant 0.000000e+00 : f32
    %37 = vector.broadcast %cst_39 : f32 to vector<32x16xf32>
    %38 = arith.maximumf %36, %37 : vector<32x16xf32>
    %cst_40 = arith.constant 0.000000e+00 : bf16
    %39 = vector.broadcast %cst_40 : bf16 to vector<32x24xbf16>
    %c0_41 = arith.constant 0 : index
    %c0_42 = arith.constant 0 : index
    %40 = vector.load %arg10[%c0_41, %c0_42] : memref<32x24xbf16, #tpu.memory_space<vmem>>, vector<32x24xbf16>
    tpu.vector_store %arg10[%c0_41, %c0_42], %39 {strides = array<i32>} : memref<32x24xbf16, #tpu.memory_space<vmem>>, vector<32x24xbf16>,
    %41 = arith.truncf %38 : vector<32x16xf32> to vector<32x16xbf16>
    %c0_43 = arith.constant 0 : index
    %c4_44 = arith.constant 4 : index
    %42 = vector.load %arg10[%c0_43, %c4_44] : memref<32x24xbf16, #tpu.memory_space<vmem>>, vector<32x16xbf16>
    tpu.vector_store %arg10[%c0_43, %c4_44], %41 {strides = array<i32>} : memref<32x24xbf16, #tpu.memory_space<vmem>>, vector<32x16xbf16>,
    %c0_45 = arith.constant 0 : index
    %c0_46 = arith.constant 0 : index
    %43 = vector.load %arg10[%c0_45, %c0_46] : memref<32x24xbf16, #tpu.memory_space<vmem>>, vector<32x16xbf16>
    %c0_47 = arith.constant 0 : index
    %c0_48 = arith.constant 0 : index
    %44 = vector.load %arg11[%c0_47, %c0_48] : memref<288x16xbf16, #tpu.memory_space<vmem>>, vector<32x16xbf16>
    tpu.vector_store %arg11[%c0_47, %c0_48], %43 {strides = array<i32>} : memref<288x16xbf16, #tpu.memory_space<vmem>>, vector<32x16xbf16>,
    %c0_49 = arith.constant 0 : index
    %c1_50 = arith.constant 1 : index
    %45 = vector.load %arg10[%c0_49, %c1_50] : memref<32x24xbf16, #tpu.memory_space<vmem>>, vector<32x16xbf16>
    %c32_51 = arith.constant 32 : index
    %c0_52 = arith.constant 0 : index
    %46 = vector.load %arg11[%c32_51, %c0_52] : memref<288x16xbf16, #tpu.memory_space<vmem>>, vector<32x16xbf16>
    tpu.vector_store %arg11[%c32_51, %c0_52], %45 {strides = array<i32>} : memref<288x16xbf16, #tpu.memory_space<vmem>>, vector<32x16xbf16>,
    %c0_53 = arith.constant 0 : index
    %c2_54 = arith.constant 2 : index
    %47 = vector.load %arg10[%c0_53, %c2_54] : memref<32x24xbf16, #tpu.memory_space<vmem>>, vector<32x16xbf16>
    %c64_55 = arith.constant 64 : index
    %c0_56 = arith.constant 0 : index
    %48 = vector.load %arg11[%c64_55, %c0_56] : memref<288x16xbf16, #tpu.memory_space<vmem>>, vector<32x16xbf16>
    tpu.vector_store %arg11[%c64_55, %c0_56], %47 {strides = array<i32>} : memref<288x16xbf16, #tpu.memory_space<vmem>>, vector<32x16xbf16>,
    %c0_57 = arith.constant 0 : index
    %c3_58 = arith.constant 3 : index
    %49 = vector.load %arg10[%c0_57, %c3_58] : memref<32x24xbf16, #tpu.memory_space<vmem>>, vector<32x16xbf16>
    %c96_59 = arith.constant 96 : index
    %c0_60 = arith.constant 0 : index
    %50 = vector.load %arg11[%c96_59, %c0_60] : memref<288x16xbf16, #tpu.memory_space<vmem>>, vector<32x16xbf16>
    tpu.vector_store %arg11[%c96_59, %c0_60], %49 {strides = array<i32>} : memref<288x16xbf16, #tpu.memory_space<vmem>>, vector<32x16xbf16>,
    %c0_61 = arith.constant 0 : index
    %c4_62 = arith.constant 4 : index
    %51 = vector.load %arg10[%c0_61, %c4_62] : memref<32x24xbf16, #tpu.memory_space<vmem>>, vector<32x16xbf16>
    %c128_63 = arith.constant 128 : index
    %c0_64 = arith.constant 0 : index
    %52 = vector.load %arg11[%c128_63, %c0_64] : memref<288x16xbf16, #tpu.memory_space<vmem>>, vector<32x16xbf16>
    tpu.vector_store %arg11[%c128_63, %c0_64], %51 {strides = array<i32>} : memref<288x16xbf16, #tpu.memory_space<vmem>>, vector<32x16xbf16>,
    %c0_65 = arith.constant 0 : index
    %c5_66 = arith.constant 5 : index
    %53 = vector.load %arg10[%c0_65, %c5_66] : memref<32x24xbf16, #tpu.memory_space<vmem>>, vector<32x16xbf16>
    %c160_67 = arith.constant 160 : index
    %c0_68 = arith.constant 0 : index
    %54 = vector.load %arg11[%c160_67, %c0_68] : memref<288x16xbf16, #tpu.memory_space<vmem>>, vector<32x16xbf16>
    tpu.vector_store %arg11[%c160_67, %c0_68], %53 {strides = array<i32>} : memref<288x16xbf16, #tpu.memory_space<vmem>>, vector<32x16xbf16>,
    %c0_69 = arith.constant 0 : index
    %c6_70 = arith.constant 6 : index
    %55 = vector.load %arg10[%c0_69, %c6_70] : memref<32x24xbf16, #tpu.memory_space<vmem>>, vector<32x16xbf16>
    %c192_71 = arith.constant 192 : index
    %c0_72 = arith.constant 0 : index
    %56 = vector.load %arg11[%c192_71, %c0_72] : memref<288x16xbf16, #tpu.memory_space<vmem>>, vector<32x16xbf16>
    tpu.vector_store %arg11[%c192_71, %c0_72], %55 {strides = array<i32>} : memref<288x16xbf16, #tpu.memory_space<vmem>>, vector<32x16xbf16>,
    %c0_73 = arith.constant 0 : index
    %c7_74 = arith.constant 7 : index
    %57 = vector.load %arg10[%c0_73, %c7_74] : memref<32x24xbf16, #tpu.memory_space<vmem>>, vector<32x16xbf16>
    %c224_75 = arith.constant 224 : index
    %c0_76 = arith.constant 0 : index
    %58 = vector.load %arg11[%c224_75, %c0_76] : memref<288x16xbf16, #tpu.memory_space<vmem>>, vector<32x16xbf16>
    tpu.vector_store %arg11[%c224_75, %c0_76], %57 {strides = array<i32>} : memref<288x16xbf16, #tpu.memory_space<vmem>>, vector<32x16xbf16>,
    %c0_77 = arith.constant 0 : index
    %c8_78 = arith.constant 8 : index
    %59 = vector.load %arg10[%c0_77, %c8_78] : memref<32x24xbf16, #tpu.memory_space<vmem>>, vector<32x16xbf16>
    %c256_79 = arith.constant 256 : index
    %c0_80 = arith.constant 0 : index
    %60 = vector.load %arg11[%c256_79, %c0_80] : memref<288x16xbf16, #tpu.memory_space<vmem>>, vector<32x16xbf16>
    tpu.vector_store %arg11[%c256_79, %c0_80], %59 {strides = array<i32>} : memref<288x16xbf16, #tpu.memory_space<vmem>>, vector<32x16xbf16>,
    %c0_81 = arith.constant 0 : index
    %c0_82 = arith.constant 0 : index
    %61 = vector.load %arg6[%c0_81, %c0_82] : memref<32x288xbf16, #tpu.memory_space<vmem>>, vector<32x288xbf16>
    %c0_83 = arith.constant 0 : index
    %c0_84 = arith.constant 0 : index
    %62 = vector.load %arg11[%c0_83, %c0_84] : memref<288x16xbf16, #tpu.memory_space<vmem>>, vector<288x16xbf16>
    %cst_85 = arith.constant dense<0.000000e+00> : vector<32x16xf32>
    %63 = tpu.matmul %61, %62, %cst_85 {dimension_numbers = #tpu.dot_dimension_numbers<[1], [0], [0], [1], [0, 0, 1, 1], [], []>} : vector<32x288xbf16>, vector<288x16xbf16>, vector<32x16xf32> -> vector<32x16xf32>
    %c0_86 = arith.constant 0 : index
    %c0_87 = arith.constant 0 : index
    %64 = vector.load %arg7[%c0_86, %c0_87] : memref<32x1xf32, #tpu.memory_space<vmem>>, vector<32x1xf32>
    %65 = vector.broadcast %64 : vector<32x1xf32> to vector<32x16xf32>
    %66 = arith.mulf %63, %65 : vector<32x16xf32>
    %c0_88 = arith.constant 0 : index
    %c0_89 = arith.constant 0 : index
    %67 = vector.load %arg8[%c0_88, %c0_89] : memref<32x1xf32, #tpu.memory_space<vmem>>, vector<32x1xf32>
    %68 = vector.broadcast %67 : vector<32x1xf32> to vector<32x16xf32>
    %69 = arith.addf %66, %68 : vector<32x16xf32>
    %cst_90 = arith.constant 0.000000e+00 : f32
    %70 = vector.broadcast %cst_90 : f32 to vector<32x16xf32>
    %71 = arith.maximumf %69, %70 : vector<32x16xf32>
    %72 = arith.addf %1, %71 : vector<32x16xf32>
    %cst_91 = arith.constant 0.000000e+00 : f32
    %73 = vector.broadcast %cst_91 : f32 to vector<32x16xf32>
    %74 = arith.maximumf %72, %73 : vector<32x16xf32>
    %c0_92 = arith.constant 0 : index
    %c0_93 = arith.constant 0 : index
    %c0_94 = arith.constant 0 : index
    %75 = vector.load %arg9[%c0_92, %c0_93, %c0_94] : memref<1x32x16xf32, #tpu.memory_space<vmem>>, vector<1x32x16xf32>
    %76 = vector.shape_cast %75 : vector<1x32x16xf32> to vector<32x16xf32>
    %77 = vector.shape_cast %74 : vector<32x16xf32> to vector<1x32x16xf32>
    tpu.vector_store %arg9[%c0_92, %c0_93, %c0_94], %77 {strides = array<i32>} : memref<1x32x16xf32, #tpu.memory_space<vmem>>, vector<1x32x16xf32>,
    return
  }
  func.func @transform_0(%arg0: i32) -> (i32, i32, i32) {
    %c0_i32 = arith.constant 0 : i32
    %c0_i32_0 = arith.constant 0 : i32
    %c0_i32_1 = arith.constant 0 : i32
    return %arg0, %c0_i32, %c0_i32_0 : i32, i32, i32
  }
  func.func @transform_1(%arg0: i32) -> (i32, i32, i32) {
    %c0_i32 = arith.constant 0 : i32
    %c0_i32_0 = arith.constant 0 : i32
    %c0_i32_1 = arith.constant 0 : i32
    return %arg0, %c0_i32, %c0_i32_0 : i32, i32, i32
  }
  func.func @transform_2(%arg0: i32) -> (i32, i32) {
    %c0_i32 = arith.constant 0 : i32
    %c0_i32_0 = arith.constant 0 : i32
    %c0_i32_1 = arith.constant 0 : i32
    return %c0_i32, %c0_i32_0 : i32, i32
  }
  func.func @transform_3(%arg0: i32) -> (i32, i32) {
    %c0_i32 = arith.constant 0 : i32
    %c0_i32_0 = arith.constant 0 : i32
    %c0_i32_1 = arith.constant 0 : i32
    return %c0_i32, %c0_i32_0 : i32, i32
  }
  func.func @transform_4(%arg0: i32) -> (i32, i32) {
    %c0_i32 = arith.constant 0 : i32
    %c0_i32_0 = arith.constant 0 : i32
    %c0_i32_1 = arith.constant 0 : i32
    return %c0_i32, %c0_i32_0 : i32, i32
  }
  func.func @transform_5(%arg0: i32) -> (i32, i32) {
    %c0_i32 = arith.constant 0 : i32
    %c0_i32_0 = arith.constant 0 : i32
    %c0_i32_1 = arith.constant 0 : i32
    return %c0_i32, %c0_i32_0 : i32, i32
  }
  func.func @transform_6(%arg0: i32) -> (i32, i32) {
    %c0_i32 = arith.constant 0 : i32
    %c0_i32_0 = arith.constant 0 : i32
    %c0_i32_1 = arith.constant 0 : i32
    return %c0_i32, %c0_i32_0 : i32, i32
  }
  func.func @transform_7(%arg0: i32) -> (i32, i32) {
    %c0_i32 = arith.constant 0 : i32
    %c0_i32_0 = arith.constant 0 : i32
    %c0_i32_1 = arith.constant 0 : i32
    return %c0_i32, %c0_i32_0 : i32, i32
  }
  func.func @transform_8(%arg0: i32) -> (i32, i32, i32) {
    %c0_i32 = arith.constant 0 : i32
    %c0_i32_0 = arith.constant 0 : i32
    %c0_i32_1 = arith.constant 0 : i32
    return %arg0, %c0_i32, %c0_i32_0 : i32, i32, i32
  }
}

module attributes {stable_mosaic.version = 11 : i64} {
  func.func @_se_block_kernel(%arg0: i32, %arg1: memref<1x32x16xf32, #tpu.memory_space<vmem>>, %arg2: memref<32x288xbf16, #tpu.memory_space<vmem>>, %arg3: memref<32x1xf32, #tpu.memory_space<vmem>>, %arg4: memref<32x1xf32, #tpu.memory_space<vmem>>, %arg5: memref<32x288xbf16, #tpu.memory_space<vmem>>, %arg6: memref<32x1xf32, #tpu.memory_space<vmem>>, %arg7: memref<32x1xf32, #tpu.memory_space<vmem>>, %arg8: memref<32x2xf32, #tpu.memory_space<vmem>>, %arg9: memref<32x2xf32, #tpu.memory_space<vmem>>, %arg10: memref<1x32x16xf32, #tpu.memory_space<vmem>>, %arg11: memref<32x24xbf16, #tpu.memory_space<vmem>>, %arg12: memref<288x16xbf16, #tpu.memory_space<vmem>>) attributes {dimension_semantics = [#tpu.dimension_semantics<parallel>], iteration_bounds = array<i64: 2>, scalar_prefetch = 0 : i64, scratch_operands = 2 : i64, tpu.core_type = #tpu.core_type<tc>, window_params = [{transform_indices = @transform_0, window_bounds = array<i64: 1, 32, 16>}, {pipeline_mode = #tpu.pipeline_mode<synchronous>, transform_indices = @transform_1, window_bounds = array<i64: 32, 288>}, {pipeline_mode = #tpu.pipeline_mode<synchronous>, transform_indices = @transform_2, window_bounds = array<i64: 32, 1>}, {pipeline_mode = #tpu.pipeline_mode<synchronous>, transform_indices = @transform_3, window_bounds = array<i64: 32, 1>}, {pipeline_mode = #tpu.pipeline_mode<synchronous>, transform_indices = @transform_4, window_bounds = array<i64: 32, 288>}, {pipeline_mode = #tpu.pipeline_mode<synchronous>, transform_indices = @transform_5, window_bounds = array<i64: 32, 1>}, {pipeline_mode = #tpu.pipeline_mode<synchronous>, transform_indices = @transform_6, window_bounds = array<i64: 32, 1>}, {pipeline_mode = #tpu.pipeline_mode<synchronous>, transform_indices = @transform_7, window_bounds = array<i64: 32, 2>}, {pipeline_mode = #tpu.pipeline_mode<synchronous>, transform_indices = @transform_8, window_bounds = array<i64: 32, 2>}, {transform_indices = @transform_9, window_bounds = array<i64: 1, 32, 16>}]} {
    %c0 = arith.constant 0 : index
    %c0_0 = arith.constant 0 : index
    %c0_1 = arith.constant 0 : index
    %0 = vector.load %arg1[%c0, %c0_0, %c0_1] : memref<1x32x16xf32, #tpu.memory_space<vmem>>, vector<1x32x16xf32>
    %1 = vector.shape_cast %0 : vector<1x32x16xf32> to vector<32x16xf32>
    %cst = arith.constant 0.000000e+00 : bf16
    %2 = vector.broadcast %cst : bf16 to vector<32x24xbf16>
    %c0_2 = arith.constant 0 : index
    %c0_3 = arith.constant 0 : index
    %3 = vector.load %arg11[%c0_2, %c0_3] : memref<32x24xbf16, #tpu.memory_space<vmem>>, vector<32x24xbf16>
    tpu.vector_store %arg11[%c0_2, %c0_3], %2 {strides = array<i32>} : memref<32x24xbf16, #tpu.memory_space<vmem>>, vector<32x24xbf16>,
    %4 = arith.truncf %1 : vector<32x16xf32> to vector<32x16xbf16>
    %c0_4 = arith.constant 0 : index
    %c4 = arith.constant 4 : index
    %5 = vector.load %arg11[%c0_4, %c4] : memref<32x24xbf16, #tpu.memory_space<vmem>>, vector<32x16xbf16>
    tpu.vector_store %arg11[%c0_4, %c4], %4 {strides = array<i32>} : memref<32x24xbf16, #tpu.memory_space<vmem>>, vector<32x16xbf16>,
    %c0_5 = arith.constant 0 : index
    %c0_6 = arith.constant 0 : index
    %6 = vector.load %arg11[%c0_5, %c0_6] : memref<32x24xbf16, #tpu.memory_space<vmem>>, vector<32x16xbf16>
    %c0_7 = arith.constant 0 : index
    %c0_8 = arith.constant 0 : index
    %7 = vector.load %arg12[%c0_7, %c0_8] : memref<288x16xbf16, #tpu.memory_space<vmem>>, vector<32x16xbf16>
    tpu.vector_store %arg12[%c0_7, %c0_8], %6 {strides = array<i32>} : memref<288x16xbf16, #tpu.memory_space<vmem>>, vector<32x16xbf16>,
    %c0_9 = arith.constant 0 : index
    %c1 = arith.constant 1 : index
    %8 = vector.load %arg11[%c0_9, %c1] : memref<32x24xbf16, #tpu.memory_space<vmem>>, vector<32x16xbf16>
    %c32 = arith.constant 32 : index
    %c0_10 = arith.constant 0 : index
    %9 = vector.load %arg12[%c32, %c0_10] : memref<288x16xbf16, #tpu.memory_space<vmem>>, vector<32x16xbf16>
    tpu.vector_store %arg12[%c32, %c0_10], %8 {strides = array<i32>} : memref<288x16xbf16, #tpu.memory_space<vmem>>, vector<32x16xbf16>,
    %c0_11 = arith.constant 0 : index
    %c2 = arith.constant 2 : index
    %10 = vector.load %arg11[%c0_11, %c2] : memref<32x24xbf16, #tpu.memory_space<vmem>>, vector<32x16xbf16>
    %c64 = arith.constant 64 : index
    %c0_12 = arith.constant 0 : index
    %11 = vector.load %arg12[%c64, %c0_12] : memref<288x16xbf16, #tpu.memory_space<vmem>>, vector<32x16xbf16>
    tpu.vector_store %arg12[%c64, %c0_12], %10 {strides = array<i32>} : memref<288x16xbf16, #tpu.memory_space<vmem>>, vector<32x16xbf16>,
    %c0_13 = arith.constant 0 : index
    %c3 = arith.constant 3 : index
    %12 = vector.load %arg11[%c0_13, %c3] : memref<32x24xbf16, #tpu.memory_space<vmem>>, vector<32x16xbf16>
    %c96 = arith.constant 96 : index
    %c0_14 = arith.constant 0 : index
    %13 = vector.load %arg12[%c96, %c0_14] : memref<288x16xbf16, #tpu.memory_space<vmem>>, vector<32x16xbf16>
    tpu.vector_store %arg12[%c96, %c0_14], %12 {strides = array<i32>} : memref<288x16xbf16, #tpu.memory_space<vmem>>, vector<32x16xbf16>,
    %c0_15 = arith.constant 0 : index
    %c4_16 = arith.constant 4 : index
    %14 = vector.load %arg11[%c0_15, %c4_16] : memref<32x24xbf16, #tpu.memory_space<vmem>>, vector<32x16xbf16>
    %c128 = arith.constant 128 : index
    %c0_17 = arith.constant 0 : index
    %15 = vector.load %arg12[%c128, %c0_17] : memref<288x16xbf16, #tpu.memory_space<vmem>>, vector<32x16xbf16>
    tpu.vector_store %arg12[%c128, %c0_17], %14 {strides = array<i32>} : memref<288x16xbf16, #tpu.memory_space<vmem>>, vector<32x16xbf16>,
    %c0_18 = arith.constant 0 : index
    %c5 = arith.constant 5 : index
    %16 = vector.load %arg11[%c0_18, %c5] : memref<32x24xbf16, #tpu.memory_space<vmem>>, vector<32x16xbf16>
    %c160 = arith.constant 160 : index
    %c0_19 = arith.constant 0 : index
    %17 = vector.load %arg12[%c160, %c0_19] : memref<288x16xbf16, #tpu.memory_space<vmem>>, vector<32x16xbf16>
    tpu.vector_store %arg12[%c160, %c0_19], %16 {strides = array<i32>} : memref<288x16xbf16, #tpu.memory_space<vmem>>, vector<32x16xbf16>,
    %c0_20 = arith.constant 0 : index
    %c6 = arith.constant 6 : index
    %18 = vector.load %arg11[%c0_20, %c6] : memref<32x24xbf16, #tpu.memory_space<vmem>>, vector<32x16xbf16>
    %c192 = arith.constant 192 : index
    %c0_21 = arith.constant 0 : index
    %19 = vector.load %arg12[%c192, %c0_21] : memref<288x16xbf16, #tpu.memory_space<vmem>>, vector<32x16xbf16>
    tpu.vector_store %arg12[%c192, %c0_21], %18 {strides = array<i32>} : memref<288x16xbf16, #tpu.memory_space<vmem>>, vector<32x16xbf16>,
    %c0_22 = arith.constant 0 : index
    %c7 = arith.constant 7 : index
    %20 = vector.load %arg11[%c0_22, %c7] : memref<32x24xbf16, #tpu.memory_space<vmem>>, vector<32x16xbf16>
    %c224 = arith.constant 224 : index
    %c0_23 = arith.constant 0 : index
    %21 = vector.load %arg12[%c224, %c0_23] : memref<288x16xbf16, #tpu.memory_space<vmem>>, vector<32x16xbf16>
    tpu.vector_store %arg12[%c224, %c0_23], %20 {strides = array<i32>} : memref<288x16xbf16, #tpu.memory_space<vmem>>, vector<32x16xbf16>,
    %c0_24 = arith.constant 0 : index
    %c8 = arith.constant 8 : index
    %22 = vector.load %arg11[%c0_24, %c8] : memref<32x24xbf16, #tpu.memory_space<vmem>>, vector<32x16xbf16>
    %c256 = arith.constant 256 : index
    %c0_25 = arith.constant 0 : index
    %23 = vector.load %arg12[%c256, %c0_25] : memref<288x16xbf16, #tpu.memory_space<vmem>>, vector<32x16xbf16>
    tpu.vector_store %arg12[%c256, %c0_25], %22 {strides = array<i32>} : memref<288x16xbf16, #tpu.memory_space<vmem>>, vector<32x16xbf16>,
    %c0_26 = arith.constant 0 : index
    %c0_27 = arith.constant 0 : index
    %24 = vector.load %arg2[%c0_26, %c0_27] : memref<32x288xbf16, #tpu.memory_space<vmem>>, vector<32x288xbf16>
    %c0_28 = arith.constant 0 : index
    %c0_29 = arith.constant 0 : index
    %25 = vector.load %arg12[%c0_28, %c0_29] : memref<288x16xbf16, #tpu.memory_space<vmem>>, vector<288x16xbf16>
    %cst_30 = arith.constant dense<0.000000e+00> : vector<32x16xf32>
    %26 = tpu.matmul %24, %25, %cst_30 {dimension_numbers = #tpu.dot_dimension_numbers<[1], [0], [0], [1], [0, 0, 1, 1], [], []>} : vector<32x288xbf16>, vector<288x16xbf16>, vector<32x16xf32> -> vector<32x16xf32>
    %c0_31 = arith.constant 0 : index
    %c0_32 = arith.constant 0 : index
    %27 = vector.load %arg3[%c0_31, %c0_32] : memref<32x1xf32, #tpu.memory_space<vmem>>, vector<32x1xf32>
    %28 = vector.broadcast %27 : vector<32x1xf32> to vector<32x16xf32>
    %29 = arith.mulf %26, %28 : vector<32x16xf32>
    %c0_33 = arith.constant 0 : index
    %c0_34 = arith.constant 0 : index
    %30 = vector.load %arg4[%c0_33, %c0_34] : memref<32x1xf32, #tpu.memory_space<vmem>>, vector<32x1xf32>
    %31 = vector.broadcast %30 : vector<32x1xf32> to vector<32x16xf32>
    %32 = arith.addf %29, %31 : vector<32x16xf32>
    %cst_35 = arith.constant 0.000000e+00 : f32
    %33 = vector.broadcast %cst_35 : f32 to vector<32x16xf32>
    %34 = arith.maximumf %32, %33 : vector<32x16xf32>
    %cst_36 = arith.constant 0.000000e+00 : bf16
    %35 = vector.broadcast %cst_36 : bf16 to vector<32x24xbf16>
    %c0_37 = arith.constant 0 : index
    %c0_38 = arith.constant 0 : index
    %36 = vector.load %arg11[%c0_37, %c0_38] : memref<32x24xbf16, #tpu.memory_space<vmem>>, vector<32x24xbf16>
    tpu.vector_store %arg11[%c0_37, %c0_38], %35 {strides = array<i32>} : memref<32x24xbf16, #tpu.memory_space<vmem>>, vector<32x24xbf16>,
    %37 = arith.truncf %34 : vector<32x16xf32> to vector<32x16xbf16>
    %c0_39 = arith.constant 0 : index
    %c4_40 = arith.constant 4 : index
    %38 = vector.load %arg11[%c0_39, %c4_40] : memref<32x24xbf16, #tpu.memory_space<vmem>>, vector<32x16xbf16>
    tpu.vector_store %arg11[%c0_39, %c4_40], %37 {strides = array<i32>} : memref<32x24xbf16, #tpu.memory_space<vmem>>, vector<32x16xbf16>,
    %c0_41 = arith.constant 0 : index
    %c0_42 = arith.constant 0 : index
    %39 = vector.load %arg11[%c0_41, %c0_42] : memref<32x24xbf16, #tpu.memory_space<vmem>>, vector<32x16xbf16>
    %c0_43 = arith.constant 0 : index
    %c0_44 = arith.constant 0 : index
    %40 = vector.load %arg12[%c0_43, %c0_44] : memref<288x16xbf16, #tpu.memory_space<vmem>>, vector<32x16xbf16>
    tpu.vector_store %arg12[%c0_43, %c0_44], %39 {strides = array<i32>} : memref<288x16xbf16, #tpu.memory_space<vmem>>, vector<32x16xbf16>,
    %c0_45 = arith.constant 0 : index
    %c1_46 = arith.constant 1 : index
    %41 = vector.load %arg11[%c0_45, %c1_46] : memref<32x24xbf16, #tpu.memory_space<vmem>>, vector<32x16xbf16>
    %c32_47 = arith.constant 32 : index
    %c0_48 = arith.constant 0 : index
    %42 = vector.load %arg12[%c32_47, %c0_48] : memref<288x16xbf16, #tpu.memory_space<vmem>>, vector<32x16xbf16>
    tpu.vector_store %arg12[%c32_47, %c0_48], %41 {strides = array<i32>} : memref<288x16xbf16, #tpu.memory_space<vmem>>, vector<32x16xbf16>,
    %c0_49 = arith.constant 0 : index
    %c2_50 = arith.constant 2 : index
    %43 = vector.load %arg11[%c0_49, %c2_50] : memref<32x24xbf16, #tpu.memory_space<vmem>>, vector<32x16xbf16>
    %c64_51 = arith.constant 64 : index
    %c0_52 = arith.constant 0 : index
    %44 = vector.load %arg12[%c64_51, %c0_52] : memref<288x16xbf16, #tpu.memory_space<vmem>>, vector<32x16xbf16>
    tpu.vector_store %arg12[%c64_51, %c0_52], %43 {strides = array<i32>} : memref<288x16xbf16, #tpu.memory_space<vmem>>, vector<32x16xbf16>,
    %c0_53 = arith.constant 0 : index
    %c3_54 = arith.constant 3 : index
    %45 = vector.load %arg11[%c0_53, %c3_54] : memref<32x24xbf16, #tpu.memory_space<vmem>>, vector<32x16xbf16>
    %c96_55 = arith.constant 96 : index
    %c0_56 = arith.constant 0 : index
    %46 = vector.load %arg12[%c96_55, %c0_56] : memref<288x16xbf16, #tpu.memory_space<vmem>>, vector<32x16xbf16>
    tpu.vector_store %arg12[%c96_55, %c0_56], %45 {strides = array<i32>} : memref<288x16xbf16, #tpu.memory_space<vmem>>, vector<32x16xbf16>,
    %c0_57 = arith.constant 0 : index
    %c4_58 = arith.constant 4 : index
    %47 = vector.load %arg11[%c0_57, %c4_58] : memref<32x24xbf16, #tpu.memory_space<vmem>>, vector<32x16xbf16>
    %c128_59 = arith.constant 128 : index
    %c0_60 = arith.constant 0 : index
    %48 = vector.load %arg12[%c128_59, %c0_60] : memref<288x16xbf16, #tpu.memory_space<vmem>>, vector<32x16xbf16>
    tpu.vector_store %arg12[%c128_59, %c0_60], %47 {strides = array<i32>} : memref<288x16xbf16, #tpu.memory_space<vmem>>, vector<32x16xbf16>,
    %c0_61 = arith.constant 0 : index
    %c5_62 = arith.constant 5 : index
    %49 = vector.load %arg11[%c0_61, %c5_62] : memref<32x24xbf16, #tpu.memory_space<vmem>>, vector<32x16xbf16>
    %c160_63 = arith.constant 160 : index
    %c0_64 = arith.constant 0 : index
    %50 = vector.load %arg12[%c160_63, %c0_64] : memref<288x16xbf16, #tpu.memory_space<vmem>>, vector<32x16xbf16>
    tpu.vector_store %arg12[%c160_63, %c0_64], %49 {strides = array<i32>} : memref<288x16xbf16, #tpu.memory_space<vmem>>, vector<32x16xbf16>,
    %c0_65 = arith.constant 0 : index
    %c6_66 = arith.constant 6 : index
    %51 = vector.load %arg11[%c0_65, %c6_66] : memref<32x24xbf16, #tpu.memory_space<vmem>>, vector<32x16xbf16>
    %c192_67 = arith.constant 192 : index
    %c0_68 = arith.constant 0 : index
    %52 = vector.load %arg12[%c192_67, %c0_68] : memref<288x16xbf16, #tpu.memory_space<vmem>>, vector<32x16xbf16>
    tpu.vector_store %arg12[%c192_67, %c0_68], %51 {strides = array<i32>} : memref<288x16xbf16, #tpu.memory_space<vmem>>, vector<32x16xbf16>,
    %c0_69 = arith.constant 0 : index
    %c7_70 = arith.constant 7 : index
    %53 = vector.load %arg11[%c0_69, %c7_70] : memref<32x24xbf16, #tpu.memory_space<vmem>>, vector<32x16xbf16>
    %c224_71 = arith.constant 224 : index
    %c0_72 = arith.constant 0 : index
    %54 = vector.load %arg12[%c224_71, %c0_72] : memref<288x16xbf16, #tpu.memory_space<vmem>>, vector<32x16xbf16>
    tpu.vector_store %arg12[%c224_71, %c0_72], %53 {strides = array<i32>} : memref<288x16xbf16, #tpu.memory_space<vmem>>, vector<32x16xbf16>,
    %c0_73 = arith.constant 0 : index
    %c8_74 = arith.constant 8 : index
    %55 = vector.load %arg11[%c0_73, %c8_74] : memref<32x24xbf16, #tpu.memory_space<vmem>>, vector<32x16xbf16>
    %c256_75 = arith.constant 256 : index
    %c0_76 = arith.constant 0 : index
    %56 = vector.load %arg12[%c256_75, %c0_76] : memref<288x16xbf16, #tpu.memory_space<vmem>>, vector<32x16xbf16>
    tpu.vector_store %arg12[%c256_75, %c0_76], %55 {strides = array<i32>} : memref<288x16xbf16, #tpu.memory_space<vmem>>, vector<32x16xbf16>,
    %c0_77 = arith.constant 0 : index
    %c0_78 = arith.constant 0 : index
    %57 = vector.load %arg5[%c0_77, %c0_78] : memref<32x288xbf16, #tpu.memory_space<vmem>>, vector<32x288xbf16>
    %c0_79 = arith.constant 0 : index
    %c0_80 = arith.constant 0 : index
    %58 = vector.load %arg12[%c0_79, %c0_80] : memref<288x16xbf16, #tpu.memory_space<vmem>>, vector<288x16xbf16>
    %cst_81 = arith.constant dense<0.000000e+00> : vector<32x16xf32>
    %59 = tpu.matmul %57, %58, %cst_81 {dimension_numbers = #tpu.dot_dimension_numbers<[1], [0], [0], [1], [0, 0, 1, 1], [], []>} : vector<32x288xbf16>, vector<288x16xbf16>, vector<32x16xf32> -> vector<32x16xf32>
    %c0_82 = arith.constant 0 : index
    %c0_83 = arith.constant 0 : index
    %60 = vector.load %arg6[%c0_82, %c0_83] : memref<32x1xf32, #tpu.memory_space<vmem>>, vector<32x1xf32>
    %61 = vector.broadcast %60 : vector<32x1xf32> to vector<32x16xf32>
    %62 = arith.mulf %59, %61 : vector<32x16xf32>
    %c0_84 = arith.constant 0 : index
    %c0_85 = arith.constant 0 : index
    %63 = vector.load %arg7[%c0_84, %c0_85] : memref<32x1xf32, #tpu.memory_space<vmem>>, vector<32x1xf32>
    %64 = vector.broadcast %63 : vector<32x1xf32> to vector<32x16xf32>
    %65 = arith.addf %62, %64 : vector<32x16xf32>
    %cst_86 = arith.constant 0.000000e+00 : f32
    %66 = vector.broadcast %cst_86 : f32 to vector<32x16xf32>
    %67 = arith.maximumf %65, %66 : vector<32x16xf32>
    %68 = arith.addf %1, %67 : vector<32x16xf32>
    %cst_87 = arith.constant 0.000000e+00 : f32
    %69 = vector.broadcast %cst_87 : f32 to vector<32x16xf32>
    %70 = arith.maximumf %68, %69 : vector<32x16xf32>
    %cst_88 = arith.constant dense<0.000000e+00> : vector<32xf32>
    %71 = vector.multi_reduction <add>, %70, %cst_88 [1] : vector<32x16xf32> to vector<32xf32>
    %72 = vector.shape_cast %71 : vector<32xf32> to vector<32x1xf32>
    %cst_89 = arith.constant 1.600000e+01 : f32
    %73 = vector.broadcast %cst_89 : f32 to vector<32x1xf32>
    %74 = arith.divf %72, %73 : vector<32x1xf32>
    %c0_90 = arith.constant 0 : index
    %c0_91 = arith.constant 0 : index
    %75 = vector.load %arg8[%c0_90, %c0_91] : memref<32x2xf32, #tpu.memory_space<vmem>>, vector<32x2xf32>
    %76 = vector.broadcast %74 : vector<32x1xf32> to vector<32x2xf32>
    %77 = arith.mulf %75, %76 : vector<32x2xf32>
    %cst_92 = arith.constant dense<0.000000e+00> : vector<2xf32>
    %78 = vector.multi_reduction <add>, %77, %cst_92 [0] : vector<32x2xf32> to vector<2xf32>
    %79 = vector.shape_cast %78 : vector<2xf32> to vector<1x2xf32>
    %cst_93 = arith.constant 0.000000e+00 : f32
    %80 = vector.broadcast %cst_93 : f32 to vector<1x2xf32>
    %81 = arith.maximumf %79, %80 : vector<1x2xf32>
    %c0_94 = arith.constant 0 : index
    %c0_95 = arith.constant 0 : index
    %82 = vector.load %arg9[%c0_94, %c0_95] : memref<32x2xf32, #tpu.memory_space<vmem>>, vector<32x2xf32>
    %83 = vector.broadcast %81 : vector<1x2xf32> to vector<32x2xf32>
    %84 = arith.mulf %82, %83 : vector<32x2xf32>
    %cst_96 = arith.constant dense<0.000000e+00> : vector<32xf32>
    %85 = vector.multi_reduction <add>, %84, %cst_96 [1] : vector<32x2xf32> to vector<32xf32>
    %86 = vector.shape_cast %85 : vector<32xf32> to vector<32x1xf32>
    %87 = arith.negf %86 : vector<32x1xf32>
    %88 = math.exp %87 : vector<32x1xf32>
    %cst_97 = arith.constant 1.000000e+00 : f32
    %89 = vector.broadcast %cst_97 : f32 to vector<32x1xf32>
    %90 = arith.addf %89, %88 : vector<32x1xf32>
    %91 = arith.divf %89, %90 : vector<32x1xf32>
    %92 = vector.broadcast %91 : vector<32x1xf32> to vector<32x16xf32>
    %93 = arith.mulf %70, %92 : vector<32x16xf32>
    %c0_98 = arith.constant 0 : index
    %c0_99 = arith.constant 0 : index
    %c0_100 = arith.constant 0 : index
    %94 = vector.load %arg10[%c0_98, %c0_99, %c0_100] : memref<1x32x16xf32, #tpu.memory_space<vmem>>, vector<1x32x16xf32>
    %95 = vector.shape_cast %94 : vector<1x32x16xf32> to vector<32x16xf32>
    %96 = vector.shape_cast %93 : vector<32x16xf32> to vector<1x32x16xf32>
    tpu.vector_store %arg10[%c0_98, %c0_99, %c0_100], %96 {strides = array<i32>} : memref<1x32x16xf32, #tpu.memory_space<vmem>>, vector<1x32x16xf32>,
    return
  }
  func.func @transform_0(%arg0: i32) -> (i32, i32, i32) {
    %c0_i32 = arith.constant 0 : i32
    %c0_i32_0 = arith.constant 0 : i32
    %c0_i32_1 = arith.constant 0 : i32
    return %arg0, %c0_i32, %c0_i32_0 : i32, i32, i32
  }
  func.func @transform_1(%arg0: i32) -> (i32, i32) {
    %c0_i32 = arith.constant 0 : i32
    %c0_i32_0 = arith.constant 0 : i32
    %c0_i32_1 = arith.constant 0 : i32
    return %c0_i32, %c0_i32_0 : i32, i32
  }
  func.func @transform_2(%arg0: i32) -> (i32, i32) {
    %c0_i32 = arith.constant 0 : i32
    %c0_i32_0 = arith.constant 0 : i32
    %c0_i32_1 = arith.constant 0 : i32
    return %c0_i32, %c0_i32_0 : i32, i32
  }
  func.func @transform_3(%arg0: i32) -> (i32, i32) {
    %c0_i32 = arith.constant 0 : i32
    %c0_i32_0 = arith.constant 0 : i32
    %c0_i32_1 = arith.constant 0 : i32
    return %c0_i32, %c0_i32_0 : i32, i32
  }
  func.func @transform_4(%arg0: i32) -> (i32, i32) {
    %c0_i32 = arith.constant 0 : i32
    %c0_i32_0 = arith.constant 0 : i32
    %c0_i32_1 = arith.constant 0 : i32
    return %c0_i32, %c0_i32_0 : i32, i32
  }
  func.func @transform_5(%arg0: i32) -> (i32, i32) {
    %c0_i32 = arith.constant 0 : i32
    %c0_i32_0 = arith.constant 0 : i32
    %c0_i32_1 = arith.constant 0 : i32
    return %c0_i32, %c0_i32_0 : i32, i32
  }
  func.func @transform_6(%arg0: i32) -> (i32, i32) {
    %c0_i32 = arith.constant 0 : i32
    %c0_i32_0 = arith.constant 0 : i32
    %c0_i32_1 = arith.constant 0 : i32
    return %c0_i32, %c0_i32_0 : i32, i32
  }
  func.func @transform_7(%arg0: i32) -> (i32, i32) {
    %c0_i32 = arith.constant 0 : i32
    %c0_i32_0 = arith.constant 0 : i32
    %c0_i32_1 = arith.constant 0 : i32
    return %c0_i32, %c0_i32_0 : i32, i32
  }
  func.func @transform_8(%arg0: i32) -> (i32, i32) {
    %c0_i32 = arith.constant 0 : i32
    %c0_i32_0 = arith.constant 0 : i32
    %c0_i32_1 = arith.constant 0 : i32
    return %c0_i32, %c0_i32_0 : i32, i32
  }
  func.func @transform_9(%arg0: i32) -> (i32, i32, i32) {
    %c0_i32 = arith.constant 0 : i32
    %c0_i32_0 = arith.constant 0 : i32
    %c0_i32_1 = arith.constant 0 : i32
    return %arg0, %c0_i32, %c0_i32_0 : i32, i32, i32
  }
}

module attributes {stable_mosaic.version = 11 : i64} {
  func.func @_bilstm_recurrence_kernel(%arg0: memref<16x2x128xf32, #tpu.memory_space<vmem>>, %arg1: memref<16x64xbf16, #tpu.memory_space<vmem>>, %arg2: memref<16x64xbf16, #tpu.memory_space<vmem>>, %arg3: memref<16x2x16xf32, #tpu.memory_space<vmem>>, %arg4: memref<16x2x16xf32, #tpu.memory_space<vmem>>, %arg5: memref<2x16xf32, #tpu.memory_space<vmem>>, %arg6: memref<2x16xf32, #tpu.memory_space<vmem>>, %arg7: memref<2x16xf32, #tpu.memory_space<vmem>>, %arg8: memref<2x16xf32, #tpu.memory_space<vmem>>) attributes {dimension_semantics = [], scalar_prefetch = 0 : i64, scratch_operands = 4 : i64, tpu.core_type = #tpu.core_type<tc>} {
    %cst = arith.constant 0.000000e+00 : f32
    %0 = vector.broadcast %cst : f32 to vector<2x16xf32>
    %c0 = arith.constant 0 : index
    %c0_0 = arith.constant 0 : index
    %1 = vector.load %arg5[%c0, %c0_0] : memref<2x16xf32, #tpu.memory_space<vmem>>, vector<2x16xf32>
    tpu.vector_store %arg5[%c0, %c0_0], %0 {strides = array<i32>} : memref<2x16xf32, #tpu.memory_space<vmem>>, vector<2x16xf32>,
    %cst_1 = arith.constant 0.000000e+00 : f32
    %2 = vector.broadcast %cst_1 : f32 to vector<2x16xf32>
    %c0_2 = arith.constant 0 : index
    %c0_3 = arith.constant 0 : index
    %3 = vector.load %arg6[%c0_2, %c0_3] : memref<2x16xf32, #tpu.memory_space<vmem>>, vector<2x16xf32>
    tpu.vector_store %arg6[%c0_2, %c0_3], %2 {strides = array<i32>} : memref<2x16xf32, #tpu.memory_space<vmem>>, vector<2x16xf32>,
    %cst_4 = arith.constant 0.000000e+00 : f32
    %4 = vector.broadcast %cst_4 : f32 to vector<2x16xf32>
    %c0_5 = arith.constant 0 : index
    %c0_6 = arith.constant 0 : index
    %5 = vector.load %arg7[%c0_5, %c0_6] : memref<2x16xf32, #tpu.memory_space<vmem>>, vector<2x16xf32>
    tpu.vector_store %arg7[%c0_5, %c0_6], %4 {strides = array<i32>} : memref<2x16xf32, #tpu.memory_space<vmem>>, vector<2x16xf32>,
    %cst_7 = arith.constant 0.000000e+00 : f32
    %6 = vector.broadcast %cst_7 : f32 to vector<2x16xf32>
    %c0_8 = arith.constant 0 : index
    %c0_9 = arith.constant 0 : index
    %7 = vector.load %arg8[%c0_8, %c0_9] : memref<2x16xf32, #tpu.memory_space<vmem>>, vector<2x16xf32>
    tpu.vector_store %arg8[%c0_8, %c0_9], %6 {strides = array<i32>} : memref<2x16xf32, #tpu.memory_space<vmem>>, vector<2x16xf32>,
    %c0_i32 = arith.constant 0 : i32
    %c16_i32 = arith.constant 16 : i32
    %8 = arith.addi %c0_i32, %c16_i32 : i32
    %c1_i32 = arith.constant 1 : i32
    scf.for %arg9 = %c0_i32 to %8 step %c1_i32  : i32 {
      %9 = arith.index_cast %arg9 : i32 to index
      %c0_11 = arith.constant 0 : index
      %c0_12 = arith.constant 0 : index
      %10 = vector.load %arg0[%9, %c0_11, %c0_12] : memref<16x2x128xf32, #tpu.memory_space<vmem>>, vector<1x2x128xf32>
      %11 = vector.shape_cast %10 : vector<1x2x128xf32> to vector<2x128xf32>
      %12 = vector.extract_strided_slice %11 {offsets = [0, 0], sizes = [2, 64], strides = [1, 1]} : vector<2x128xf32> to vector<2x64xf32>
      %c0_13 = arith.constant 0 : index
      %c0_14 = arith.constant 0 : index
      %13 = vector.load %arg5[%c0_13, %c0_14] : memref<2x16xf32, #tpu.memory_space<vmem>>, vector<2x16xf32>
      %14 = arith.truncf %13 : vector<2x16xf32> to vector<2x16xbf16>
      %c0_15 = arith.constant 0 : index
      %c0_16 = arith.constant 0 : index
      %15 = vector.load %arg1[%c0_15, %c0_16] : memref<16x64xbf16, #tpu.memory_space<vmem>>, vector<16x64xbf16>
      %cst_17 = arith.constant dense<0.000000e+00> : vector<2x64xf32>
      %16 = tpu.matmul %14, %15, %cst_17 {dimension_numbers = #tpu.dot_dimension_numbers<[1], [0], [0], [1], [0, 0, 1, 1], [], []>} : vector<2x16xbf16>, vector<16x64xbf16>, vector<2x64xf32> -> vector<2x64xf32>
      %17 = arith.addf %12, %16 : vector<2x64xf32>
      %c0_18 = arith.constant 0 : index
      %c0_19 = arith.constant 0 : index
      %18 = vector.load %arg6[%c0_18, %c0_19] : memref<2x16xf32, #tpu.memory_space<vmem>>, vector<2x16xf32>
      %19 = vector.extract_strided_slice %17 {offsets = [0, 0], sizes = [2, 16], strides = [1, 1]} : vector<2x64xf32> to vector<2x16xf32>
      %20 = arith.negf %19 : vector<2x16xf32>
      %21 = math.exp %20 : vector<2x16xf32>
      %cst_20 = arith.constant 1.000000e+00 : f32
      %22 = vector.broadcast %cst_20 : f32 to vector<2x16xf32>
      %23 = arith.addf %22, %21 : vector<2x16xf32>
      %24 = arith.divf %22, %23 : vector<2x16xf32>
      %25 = vector.extract_strided_slice %17 {offsets = [0, 16], sizes = [2, 16], strides = [1, 1]} : vector<2x64xf32> to vector<2x16xf32>
      %26 = arith.negf %25 : vector<2x16xf32>
      %27 = math.exp %26 : vector<2x16xf32>
      %cst_21 = arith.constant 1.000000e+00 : f32
      %28 = vector.broadcast %cst_21 : f32 to vector<2x16xf32>
      %29 = arith.addf %28, %27 : vector<2x16xf32>
      %30 = arith.divf %28, %29 : vector<2x16xf32>
      %31 = vector.extract_strided_slice %17 {offsets = [0, 32], sizes = [2, 16], strides = [1, 1]} : vector<2x64xf32> to vector<2x16xf32>
      %32 = math.tanh %31 : vector<2x16xf32>
      %33 = vector.extract_strided_slice %17 {offsets = [0, 48], sizes = [2, 16], strides = [1, 1]} : vector<2x64xf32> to vector<2x16xf32>
      %34 = arith.negf %33 : vector<2x16xf32>
      %35 = math.exp %34 : vector<2x16xf32>
      %cst_22 = arith.constant 1.000000e+00 : f32
      %36 = vector.broadcast %cst_22 : f32 to vector<2x16xf32>
      %37 = arith.addf %36, %35 : vector<2x16xf32>
      %38 = arith.divf %36, %37 : vector<2x16xf32>
      %39 = arith.mulf %30, %18 : vector<2x16xf32>
      %40 = arith.mulf %24, %32 : vector<2x16xf32>
      %41 = arith.addf %39, %40 : vector<2x16xf32>
      %42 = math.tanh %41 : vector<2x16xf32>
      %43 = arith.mulf %38, %42 : vector<2x16xf32>
      %c0_23 = arith.constant 0 : index
      %c0_24 = arith.constant 0 : index
      %44 = vector.load %arg5[%c0_23, %c0_24] : memref<2x16xf32, #tpu.memory_space<vmem>>, vector<2x16xf32>
      tpu.vector_store %arg5[%c0_23, %c0_24], %43 {strides = array<i32>} : memref<2x16xf32, #tpu.memory_space<vmem>>, vector<2x16xf32>,
      %c0_25 = arith.constant 0 : index
      %c0_26 = arith.constant 0 : index
      %45 = vector.load %arg6[%c0_25, %c0_26] : memref<2x16xf32, #tpu.memory_space<vmem>>, vector<2x16xf32>
      tpu.vector_store %arg6[%c0_25, %c0_26], %41 {strides = array<i32>} : memref<2x16xf32, #tpu.memory_space<vmem>>, vector<2x16xf32>,
      %46 = arith.index_cast %arg9 : i32 to index
      %c0_27 = arith.constant 0 : index
      %c0_28 = arith.constant 0 : index
      %47 = vector.load %arg3[%46, %c0_27, %c0_28] : memref<16x2x16xf32, #tpu.memory_space<vmem>>, vector<1x2x16xf32>
      %48 = vector.shape_cast %47 : vector<1x2x16xf32> to vector<2x16xf32>
      %49 = vector.shape_cast %43 : vector<2x16xf32> to vector<1x2x16xf32>
      tpu.vector_store %arg3[%46, %c0_27, %c0_28], %49 {strides = array<i32>} : memref<16x2x16xf32, #tpu.memory_space<vmem>>, vector<1x2x16xf32>,
      %c15_i32 = arith.constant 15 : i32
      %50 = arith.subi %c15_i32, %arg9 : i32
      %51 = arith.index_cast %50 : i32 to index
      %c0_29 = arith.constant 0 : index
      %c0_30 = arith.constant 0 : index
      %52 = vector.load %arg0[%51, %c0_29, %c0_30] : memref<16x2x128xf32, #tpu.memory_space<vmem>>, vector<1x2x128xf32>
      %53 = vector.shape_cast %52 : vector<1x2x128xf32> to vector<2x128xf32>
      %54 = vector.extract_strided_slice %53 {offsets = [0, 64], sizes = [2, 64], strides = [1, 1]} : vector<2x128xf32> to vector<2x64xf32>
      %c0_31 = arith.constant 0 : index
      %c0_32 = arith.constant 0 : index
      %55 = vector.load %arg7[%c0_31, %c0_32] : memref<2x16xf32, #tpu.memory_space<vmem>>, vector<2x16xf32>
      %56 = arith.truncf %55 : vector<2x16xf32> to vector<2x16xbf16>
      %c0_33 = arith.constant 0 : index
      %c0_34 = arith.constant 0 : index
      %57 = vector.load %arg2[%c0_33, %c0_34] : memref<16x64xbf16, #tpu.memory_space<vmem>>, vector<16x64xbf16>
      %cst_35 = arith.constant dense<0.000000e+00> : vector<2x64xf32>
      %58 = tpu.matmul %56, %57, %cst_35 {dimension_numbers = #tpu.dot_dimension_numbers<[1], [0], [0], [1], [0, 0, 1, 1], [], []>} : vector<2x16xbf16>, vector<16x64xbf16>, vector<2x64xf32> -> vector<2x64xf32>
      %59 = arith.addf %54, %58 : vector<2x64xf32>
      %c0_36 = arith.constant 0 : index
      %c0_37 = arith.constant 0 : index
      %60 = vector.load %arg8[%c0_36, %c0_37] : memref<2x16xf32, #tpu.memory_space<vmem>>, vector<2x16xf32>
      %61 = vector.extract_strided_slice %59 {offsets = [0, 0], sizes = [2, 16], strides = [1, 1]} : vector<2x64xf32> to vector<2x16xf32>
      %62 = arith.negf %61 : vector<2x16xf32>
      %63 = math.exp %62 : vector<2x16xf32>
      %cst_38 = arith.constant 1.000000e+00 : f32
      %64 = vector.broadcast %cst_38 : f32 to vector<2x16xf32>
      %65 = arith.addf %64, %63 : vector<2x16xf32>
      %66 = arith.divf %64, %65 : vector<2x16xf32>
      %67 = vector.extract_strided_slice %59 {offsets = [0, 16], sizes = [2, 16], strides = [1, 1]} : vector<2x64xf32> to vector<2x16xf32>
      %68 = arith.negf %67 : vector<2x16xf32>
      %69 = math.exp %68 : vector<2x16xf32>
      %cst_39 = arith.constant 1.000000e+00 : f32
      %70 = vector.broadcast %cst_39 : f32 to vector<2x16xf32>
      %71 = arith.addf %70, %69 : vector<2x16xf32>
      %72 = arith.divf %70, %71 : vector<2x16xf32>
      %73 = vector.extract_strided_slice %59 {offsets = [0, 32], sizes = [2, 16], strides = [1, 1]} : vector<2x64xf32> to vector<2x16xf32>
      %74 = math.tanh %73 : vector<2x16xf32>
      %75 = vector.extract_strided_slice %59 {offsets = [0, 48], sizes = [2, 16], strides = [1, 1]} : vector<2x64xf32> to vector<2x16xf32>
      %76 = arith.negf %75 : vector<2x16xf32>
      %77 = math.exp %76 : vector<2x16xf32>
      %cst_40 = arith.constant 1.000000e+00 : f32
      %78 = vector.broadcast %cst_40 : f32 to vector<2x16xf32>
      %79 = arith.addf %78, %77 : vector<2x16xf32>
      %80 = arith.divf %78, %79 : vector<2x16xf32>
      %81 = arith.mulf %72, %60 : vector<2x16xf32>
      %82 = arith.mulf %66, %74 : vector<2x16xf32>
      %83 = arith.addf %81, %82 : vector<2x16xf32>
      %84 = math.tanh %83 : vector<2x16xf32>
      %85 = arith.mulf %80, %84 : vector<2x16xf32>
      %c0_41 = arith.constant 0 : index
      %c0_42 = arith.constant 0 : index
      %86 = vector.load %arg7[%c0_41, %c0_42] : memref<2x16xf32, #tpu.memory_space<vmem>>, vector<2x16xf32>
      tpu.vector_store %arg7[%c0_41, %c0_42], %85 {strides = array<i32>} : memref<2x16xf32, #tpu.memory_space<vmem>>, vector<2x16xf32>,
      %c0_43 = arith.constant 0 : index
      %c0_44 = arith.constant 0 : index
      %87 = vector.load %arg8[%c0_43, %c0_44] : memref<2x16xf32, #tpu.memory_space<vmem>>, vector<2x16xf32>
      tpu.vector_store %arg8[%c0_43, %c0_44], %83 {strides = array<i32>} : memref<2x16xf32, #tpu.memory_space<vmem>>, vector<2x16xf32>,
      %88 = arith.index_cast %50 : i32 to index
      %c0_45 = arith.constant 0 : index
      %c0_46 = arith.constant 0 : index
      %89 = vector.load %arg4[%88, %c0_45, %c0_46] : memref<16x2x16xf32, #tpu.memory_space<vmem>>, vector<1x2x16xf32>
      %90 = vector.shape_cast %89 : vector<1x2x16xf32> to vector<2x16xf32>
      %91 = vector.shape_cast %85 : vector<2x16xf32> to vector<1x2x16xf32>
      tpu.vector_store %arg4[%88, %c0_45, %c0_46], %91 {strides = array<i32>} : memref<16x2x16xf32, #tpu.memory_space<vmem>>, vector<1x2x16xf32>,
    }
    %c16_i32_10 = arith.constant 16 : i32
    return
  }
}

module attributes {stable_mosaic.version = 11 : i64} {
  func.func @_linear_cat2_kernel(%arg0: memref<32x16xf32, #tpu.memory_space<vmem>>, %arg1: memref<32x16xf32, #tpu.memory_space<vmem>>, %arg2: memref<32x128xbf16, #tpu.memory_space<vmem>>, %arg3: memref<1x128xf32, #tpu.memory_space<vmem>>, %arg4: memref<32x128xf32, #tpu.memory_space<vmem>>) attributes {dimension_semantics = [], scalar_prefetch = 0 : i64, scratch_operands = 0 : i64, tpu.core_type = #tpu.core_type<tc>} {
    %c0 = arith.constant 0 : index
    %c0_0 = arith.constant 0 : index
    %0 = vector.load %arg0[%c0, %c0_0] : memref<32x16xf32, #tpu.memory_space<vmem>>, vector<32x16xf32>
    %c0_1 = arith.constant 0 : index
    %c0_2 = arith.constant 0 : index
    %1 = vector.load %arg1[%c0_1, %c0_2] : memref<32x16xf32, #tpu.memory_space<vmem>>, vector<32x16xf32>
    %2 = tpu.concatenate %0, %1 in 1 : vector<32x16xf32>, vector<32x16xf32> -> vector<32x32xf32>
    %3 = arith.truncf %2 : vector<32x32xf32> to vector<32x32xbf16>
    %c0_3 = arith.constant 0 : index
    %c0_4 = arith.constant 0 : index
    %4 = vector.load %arg2[%c0_3, %c0_4] : memref<32x128xbf16, #tpu.memory_space<vmem>>, vector<32x128xbf16>
    %cst = arith.constant dense<0.000000e+00> : vector<32x128xf32>
    %5 = tpu.matmul %3, %4, %cst {dimension_numbers = #tpu.dot_dimension_numbers<[1], [0], [0], [1], [0, 0, 1, 1], [], []>} : vector<32x32xbf16>, vector<32x128xbf16>, vector<32x128xf32> -> vector<32x128xf32>
    %c0_5 = arith.constant 0 : index
    %c0_6 = arith.constant 0 : index
    %6 = vector.load %arg3[%c0_5, %c0_6] : memref<1x128xf32, #tpu.memory_space<vmem>>, vector<1x128xf32>
    %7 = vector.broadcast %6 : vector<1x128xf32> to vector<32x128xf32>
    %8 = arith.addf %5, %7 : vector<32x128xf32>
    %c0_7 = arith.constant 0 : index
    %c0_8 = arith.constant 0 : index
    %9 = vector.load %arg4[%c0_7, %c0_8] : memref<32x128xf32, #tpu.memory_space<vmem>>, vector<32x128xf32>
    tpu.vector_store %arg4[%c0_7, %c0_8], %8 {strides = array<i32>} : memref<32x128xf32, #tpu.memory_space<vmem>>, vector<32x128xf32>,
    return
  }
}

module attributes {stable_mosaic.version = 11 : i64} {
  func.func @_linear_cat2_kernel(%arg0: memref<32x16xf32, #tpu.memory_space<vmem>>, %arg1: memref<32x16xf32, #tpu.memory_space<vmem>>, %arg2: memref<32x4xbf16, #tpu.memory_space<vmem>>, %arg3: memref<1x4xf32, #tpu.memory_space<vmem>>, %arg4: memref<32x4xf32, #tpu.memory_space<vmem>>) attributes {dimension_semantics = [], scalar_prefetch = 0 : i64, scratch_operands = 0 : i64, tpu.core_type = #tpu.core_type<tc>} {
    %c0 = arith.constant 0 : index
    %c0_0 = arith.constant 0 : index
    %0 = vector.load %arg0[%c0, %c0_0] : memref<32x16xf32, #tpu.memory_space<vmem>>, vector<32x16xf32>
    %c0_1 = arith.constant 0 : index
    %c0_2 = arith.constant 0 : index
    %1 = vector.load %arg1[%c0_1, %c0_2] : memref<32x16xf32, #tpu.memory_space<vmem>>, vector<32x16xf32>
    %2 = tpu.concatenate %0, %1 in 1 : vector<32x16xf32>, vector<32x16xf32> -> vector<32x32xf32>
    %3 = arith.truncf %2 : vector<32x32xf32> to vector<32x32xbf16>
    %c0_3 = arith.constant 0 : index
    %c0_4 = arith.constant 0 : index
    %4 = vector.load %arg2[%c0_3, %c0_4] : memref<32x4xbf16, #tpu.memory_space<vmem>>, vector<32x4xbf16>
    %cst = arith.constant dense<0.000000e+00> : vector<32x4xf32>
    %5 = tpu.matmul %3, %4, %cst {dimension_numbers = #tpu.dot_dimension_numbers<[1], [0], [0], [1], [0, 0, 1, 1], [], []>} : vector<32x32xbf16>, vector<32x4xbf16>, vector<32x4xf32> -> vector<32x4xf32>
    %c0_5 = arith.constant 0 : index
    %c0_6 = arith.constant 0 : index
    %6 = vector.load %arg3[%c0_5, %c0_6] : memref<1x4xf32, #tpu.memory_space<vmem>>, vector<1x4xf32>
    %7 = vector.broadcast %6 : vector<1x4xf32> to vector<32x4xf32>
    %8 = arith.addf %5, %7 : vector<32x4xf32>
    %c0_7 = arith.constant 0 : index
    %c0_8 = arith.constant 0 : index
    %9 = vector.load %arg4[%c0_7, %c0_8] : memref<32x4xf32, #tpu.memory_space<vmem>>, vector<32x4xf32>
    tpu.vector_store %arg4[%c0_7, %c0_8], %8 {strides = array<i32>} : memref<32x4xf32, #tpu.memory_space<vmem>>, vector<32x4xf32>,
    return
  }
}

</mosaic_0001>

<llo_original>
// kernel: ribonanza_forward.19
$region0: #{ribonanza_forward.19}
  #allocation0 [shape = 'u32[]', space=smem, size = 0x4, offset = 0x4, fixed_abs, tag = 'smem constant byte address 0x4 - core index']
  #allocation1 [shape = 'u32[144,128]{1,0:T(1,128)}', space=vmem, size = 0x12000, scoped, tag = 'internal scratch']
  %s0 = inlined_call_operand.vmem [shape: f32[32,32], index: 0, kind: input, shape index: {}]
  %s1 = inlined_call_operand.vmem [shape: bf16[32,128], index: 1, kind: input, shape index: {}]
  %s2 = inlined_call_operand.vmem [shape: f32[1,128], index: 2, kind: input, shape index: {}]
  %s3 = inlined_call_operand.vmem [shape: f32[32,128], index: 3, kind: output, shape index: {}]
  %s4 = sld [smem:[#allocation0]]
  $region22: #{ribonanza_forward.19} parent=0
    _
  %s6 = ssub.s32 1, %s4
  %s7 = scalar_select 0, %s6, %s4
  // Predicated region
  $region2: #{ribonanza_forward.19} parent=0 // pred_check
    _
  $region3: #{ribonanza_forward.19} parent=0 // pred_check_branch
    %9 = sbr.rel (0) target = $region5
  $region4: #{ribonanza_forward.19} parent=0 // pred_region
    _
  $region5: #{ribonanza_forward.19} parent=0 // pred_fallthru
    _
  // Predicated region
  $region6: #{ribonanza_forward.19} parent=0 // pred_check
    _
  $region7: #{ribonanza_forward.19} parent=0 // pred_check_branch
    %11 = sbr.rel (0) target = $region9
  $region8: #{ribonanza_forward.19} parent=0 // pred_region
    _
  $region9: #{ribonanza_forward.19} parent=0 // pred_fallthru
    _
  // Predicated region
  $region10: #{ribonanza_forward.19} parent=0 // pred_check
    _
  $region11: #{ribonanza_forward.19} parent=0 // pred_check_branch
    %13 = sbr.rel (0) target = $region13
  $region12: #{ribonanza_forward.19} parent=0 // pred_region
    _
  $region13: #{ribonanza_forward.19} parent=0 // pred_fallthru
    _
  %v15 = vld [vmem:[%s0] sm:$0xff]
  %v16 = vld [vmem:[%s0 + $0x8] sm:$0xff]
  %v17 = vld [vmem:[%s0 + $0x10] sm:$0xff]
  %v18 = vld [vmem:[%s0 + $0x18] sm:$0xff]
  %v19 = vpack.c.bf16 %v16, %v15
  %v20 = vpack.c.bf16 %v18, %v17
  %v21 = vld [vmem:[%s1] sm:$0xf]
  %v22 = vld [vmem:[%s1 + $0x4] sm:$0xf]
  %v23 = vld [vmem:[%s1 + $0x8] sm:$0xf]
  %v24 = vld [vmem:[%s1 + $0xc] sm:$0xf]
  %v25 = vld [vmem:[%s2] sm:$0x1]
  %v27 = vlaneseq
  %v28 = vshrl.u32 %v27, 7
  %v29 = vsub.s32 0, %v28
  %v30 = vrot.slane %v25, %v29
  %v36 = vunpack.c.l.b16 %v21
  %v37 = vunpack.c.l.b16 %v22
  %v38 = vunpack.c.l.b16 %v23
  %v39 = vunpack.c.l.b16 %v24
  %v40 = vpack.c.b16 %v37, %v36
  %v41 = vpack.c.b16 %v39, %v38
  %vm44 = vcmask 261120
  %v46 = vsel %vm44, %v19, 0
  %v49 = vsel %vm44, %v20, 0
  %51 = vmatprep.subr.bf16.mxu0 0
  %52 = vmatpush1.bf16.msra.mxu0 0
  %53 = vmatprep.subr.bf16.mxu0 0
  %54 = vmatpush1.bf16.msra.mxu0 0
  %55 = vmatprep.subr.bf16.mxu0 0
  %56 = vmatpush1.bf16.msra.mxu0 0
  %57 = vmatprep.subr.bf16.mxu0 0
  %58 = vmatpush1.bf16.msra.mxu0 0
  %59 = vmatprep.subr.bf16.mxu0 0
  %60 = vmatpush1.bf16.msra.mxu0 0
  %61 = vmatprep.subr.bf16.mxu0 0
  %62 = vmatpush1.bf16.msra.mxu0 0
  %63 = vmatprep.subr.bf16.mxu0 0
  %64 = vmatpush1.bf16.msra.mxu0 %v41
  %65 = vmatprep.subr.bf16.mxu0 0
  %66 = vmatpush1.bf16.msra.mxu0 %v40
  %67 = vmatprep.subr.bf16.mxu0 0
  %68 = vmatpush2.bf16.msra.mxu0 0
  %69 = vmatprep.subr.bf16.mxu0 0
  %70 = vmatpush2.bf16.msra.mxu0 0
  %71 = vmatprep.subr.bf16.mxu0 0
  %72 = vmatpush2.bf16.msra.mxu0 0
  %73 = vmatprep.subr.bf16.mxu0 0
  %74 = vmatpush2.bf16.msra.mxu0 0
  %75 = vmatprep.subr.bf16.mxu0 0
  %76 = vmatpush2.bf16.msra.mxu0 0
  %77 = vmatprep.subr.bf16.mxu0 0
  %78 = vmatpush2.bf16.msra.mxu0 0
  %79 = vmatprep.subr.bf16.mxu0 0
  %80 = vmatpush2.bf16.msra.mxu0 0
  %81 = vmatprep.subr.bf16.mxu0 0
  %82 = vmatpush2.bf16.msra.mxu0 0
  %83 = vmatprep.mubr.bf16.mxu0 0
  %84 = vmatmul.mubr.bf16.gmra.mxu0 %v46
  %v85 = vpop.f32.mrf.mxu0
  %v86 = vadd.f32 %v30, %v85
  %v87 = vpop.f32.mrf.mxu0
  %v88 = vpop.f32.mrf.mxu0
  %v89 = vadd.f32 %v30, %v88
  %v90 = vpop.f32.mrf.mxu0
  %91 = vmatprep.mubr.bf16.mxu0 0
  %92 = vmatmul.mubr.bf16.gmra.mxu0 %v49
  %v93 = vpop.f32.mrf.mxu0
  %v94 = vadd.f32 %v30, %v93
  %v95 = vpop.f32.mrf.mxu0
  %v96 = vpop.f32.mrf.mxu0
  %v97 = vadd.f32 %v30, %v96
  %v98 = vpop.f32.mrf.mxu0
  %99 = vdwg.mxu0
  %100 = vst [vmem:[%s3] sm:$0xff] %v86
  %101 = vst [vmem:[%s3 + $0x8] sm:$0xff] %v89
  %102 = vst [vmem:[%s3 + $0x10] sm:$0xff] %v94
  %103 = vst [vmem:[%s3 + $0x18] sm:$0xff] %v97
  // Predicated region
  $region14: #{ribonanza_forward.19} parent=0 // pred_check
    _
  $region15: #{ribonanza_forward.19} parent=0 // pred_check_branch
    %105 = sbr.rel (0) target = $region17
  $region16: #{ribonanza_forward.19} parent=0 // pred_region
    _
  $region17: #{ribonanza_forward.19} parent=0 // pred_fallthru
    _
  // Predicated region
  $region18: #{ribonanza_forward.19} parent=0 // pred_check
    _
  $region19: #{ribonanza_forward.19} parent=0 // pred_check_branch
    %107 = sbr.rel (0) target = $region21
  $region20: #{ribonanza_forward.19} parent=0 // pred_region
    _
  $region21: #{ribonanza_forward.19} parent=0 // pred_fallthru
    _

// kernel: ribonanza_forward.12
$region0: #{ribonanza_forward.12}
  #allocation0 [shape = 'u32[]', space=smem, size = 0x4, offset = 0x4, fixed_abs, tag = 'smem constant byte address 0x4 - core index']
  #allocation1 [shape = 'u32[144,128]{1,0:T(1,128)}', space=vmem, size = 0x12000, scoped, tag = 'internal scratch']
  #allocation2 [shape = 'bf16[16,20]{1,0:T(8,128)(2,1)}', space=vmem, size = 0x1000, scoped, tag = 'scratch operand']
  #allocation3 [shape = 'bf16[80,16]{1,0:T(8,128)(2,1)}', space=vmem, size = 0x5000, scoped, tag = 'scratch operand']
  %s0 = inlined_call_operand.vmem [shape: f32[2,16,16], index: 0, kind: input, shape index: {}]
  %s1 = inlined_call_operand.vmem [shape: bf16[32,80], index: 1, kind: input, shape index: {}]
  %s2 = inlined_call_operand.vmem [shape: f32[32,1], index: 2, kind: input, shape index: {}]
  %s3 = inlined_call_operand.vmem [shape: f32[32,1], index: 3, kind: input, shape index: {}]
  %s4 = inlined_call_operand.vmem [shape: f32[2,32,16], index: 4, kind: output, shape index: {}]
  %s5 = sld [smem:[#allocation0]]
  $region49: #{ribonanza_forward.12} parent=0
    _
  %s7 = ssub.s32 1, %s5
  %s8 = scalar_select 0, %s7, %s5
  loop: start=0, step=1, limit=4
  $region2: #{ribonanza_forward.12} parent=0 // loop_pre_header
    _
  $region3: #{ribonanza_forward.12} parent=0 // loop_header
    %s10 = sphi 0, %s14
    %p11 = scmp.ge.s32.totalorder %s10, 4
    %s20 = sphi 0, %s22
    %s23 = sphi 0, %s20
    %s24 = sphi 0, %s23
    %s40 = sphi 0, %s24
    %s44 = sphi 0, %s44
    %s46 = sphi 0, %s44
    %s47 = sphi 0, %s46
    %s61 = sphi 0, %s47
    %s65 = sphi 0, %s65
    %s67 = sphi 0, %s65
    %s68 = sphi 0, %s67
    %s82 = sphi 0, %s68
    %s86 = sphi 0, %s86
    %s88 = sphi 0, %s86
    %s89 = sphi 0, %s88
    %s103 = sphi 0, %s89
    %s109 = sphi 0, %s111
    %s112 = sphi 0, %s109
    %s113 = sphi 0, %s112
    %s129 = sphi 0, %s113
  $region4: #{ribonanza_forward.12} parent=0 // loop_header_branch
    %13 = sbr.rel (%p11) target = $region8
  $region5: #{ribonanza_forward.12} parent=0 // loop_body
    %s15 = ssub.s32 %s10, 1
    %s16 = ssub.s32 %s10, 2
    %s17 = sadd.s32 %s10, 1
    %s18 = ssub.s32 %s10, %s17
    %p19 = scmp.eq.s32.totalorder %s18, 0
    %s21 = sadd.s32 %s20, 1
    %s22 = scalar_select %p19, %s20, %s21
    %p25 = pneg %p19
    %p26 = scmp.eq.s32.totalorder %s10, 1
    %p27 = por %p25, %p26
    %p28 = scmp.ne.s32.totalorder %s20, %s23
    %p29 = scmp.eq.s32.totalorder %s10, 0
    %p30 = por %p28, %p29
    %p31 = scmp.ne.s32.totalorder %s20, %s23
    %p32 = scmp.eq.s32.totalorder %s15, 1
    %p33 = por %p31, %p32
    %p34 = scmp.ne.s32.totalorder %s23, %s24
    %p35 = scmp.eq.s32.totalorder %s15, 0
    %p36 = por %p34, %p35
    %p37 = scmp.ne.s32.totalorder %s23, %s24
    %p38 = scmp.eq.s32.totalorder %s16, 1
    %p39 = por %p37, %p38
    %p41 = scmp.ne.s32.totalorder %s24, %s40
    %p42 = scmp.eq.s32.totalorder %s16, 0
    %p43 = por %p41, %p42
    %s45 = sadd.s32 %s44, 1
    %p48 = scmp.eq.s32.totalorder %s10, 1
    %p49 = scmp.ne.s32.totalorder %s44, %s46
    %p50 = scmp.eq.s32.totalorder %s10, 0
    %p51 = por %p49, %p50
    %p52 = scmp.ne.s32.totalorder %s44, %s46
    %p53 = scmp.eq.s32.totalorder %s15, 1
    %p54 = por %p52, %p53
    %p55 = scmp.ne.s32.totalorder %s46, %s47
    %p56 = scmp.eq.s32.totalorder %s15, 0
    %p57 = por %p55, %p56
    %p58 = scmp.ne.s32.totalorder %s46, %s47
    %p59 = scmp.eq.s32.totalorder %s16, 1
    %p60 = por %p58, %p59
    %p62 = scmp.ne.s32.totalorder %s47, %s61
    %p63 = scmp.eq.s32.totalorder %s16, 0
    %p64 = por %p62, %p63
    %s66 = sadd.s32 %s65, 1
    %p69 = scmp.eq.s32.totalorder %s10, 1
    %p70 = scmp.ne.s32.totalorder %s65, %s67
    %p71 = scmp.eq.s32.totalorder %s10, 0
    %p72 = por %p70, %p71
    %p73 = scmp.ne.s32.totalorder %s65, %s67
    %p74 = scmp.eq.s32.totalorder %s15, 1
    %p75 = por %p73, %p74
    %p76 = scmp.ne.s32.totalorder %s67, %s68
    %p77 = scmp.eq.s32.totalorder %s15, 0
    %p78 = por %p76, %p77
    %p79 = scmp.ne.s32.totalorder %s67, %s68
    %p80 = scmp.eq.s32.totalorder %s16, 1
    %p81 = por %p79, %p80
    %p83 = scmp.ne.s32.totalorder %s68, %s82
    %p84 = scmp.eq.s32.totalorder %s16, 0
    %p85 = por %p83, %p84
    %s87 = sadd.s32 %s86, 1
    %p90 = scmp.eq.s32.totalorder %s10, 1
    %p91 = scmp.ne.s32.totalorder %s86, %s88
    %p92 = scmp.eq.s32.totalorder %s10, 0
    %p93 = por %p91, %p92
    %p94 = scmp.ne.s32.totalorder %s86, %s88
    %p95 = scmp.eq.s32.totalorder %s15, 1
    %p96 = por %p94, %p95
    %p97 = scmp.ne.s32.totalorder %s88, %s89
    %p98 = scmp.eq.s32.totalorder %s15, 0
    %p99 = por %p97, %p98
    %p100 = scmp.ne.s32.totalorder %s88, %s89
    %p101 = scmp.eq.s32.totalorder %s16, 1
    %p102 = por %p100, %p101
    %p104 = scmp.ne.s32.totalorder %s89, %s103
    %p105 = scmp.eq.s32.totalorder %s16, 0
    %p106 = por %p104, %p105
    %s107 = ssub.s32 %s10, %s17
    %p108 = scmp.eq.s32.totalorder %s107, 0
    %s110 = sadd.s32 %s109, 1
    %s111 = scalar_select %p108, %s109, %s110
    %p114 = pneg %p108
    %p115 = scmp.eq.s32.totalorder %s10, 1
    %p116 = por %p114, %p115
    %p117 = scmp.ne.s32.totalorder %s109, %s112
    %p118 = scmp.eq.s32.totalorder %s10, 0
    %p119 = por %p117, %p118
    %p120 = scmp.ne.s32.totalorder %s109, %s112
    %p121 = scmp.eq.s32.totalorder %s15, 1
    %p122 = por %p120, %p121
    %p123 = scmp.ne.s32.totalorder %s112, %s113
    %p124 = scmp.eq.s32.totalorder %s15, 0
    %p125 = por %p123, %p124
    %p126 = scmp.ne.s32.totalorder %s112, %s113
    %p127 = scmp.eq.s32.totalorder %s16, 1
    %p128 = por %p126, %p127
    %p130 = scmp.ne.s32.totalorder %s113, %s129
    %p131 = scmp.eq.s32.totalorder %s16, 0
    %p132 = por %p130, %p131
    %p133 = scmp.le.s32.totalorder 1, %s10
    %p134 = scmp.lt.s32.totalorder %s10, 3
    %p135 = pnand %p133, %p134
    %p136 = pneg %p135
    // Predicated region
    $region9: #{ribonanza_forward.12} parent=5 // pred_check
      _
    $region10: #{ribonanza_forward.12} parent=5 // pred_check_branch
      %138 = sbr.rel (%p135) target = $region12
    $region11: #{ribonanza_forward.12} parent=5 // pred_region
      %s139 = ssub.s32 %s10, 1
      // Predicated region
      $region13: #{ribonanza_forward.12} parent=11 // pred_check
        %p140 = pneg %p57
      $region14: #{ribonanza_forward.12} parent=11 // pred_check_branch
        %142 = sbr.rel (%p140) target = $region16
      $region15: #{ribonanza_forward.12} parent=11 // pred_region
        _
      $region16: #{ribonanza_forward.12} parent=11 // pred_fallthru
        _
      // Predicated region
      $region17: #{ribonanza_forward.12} parent=11 // pred_check
        %p143 = pneg %p78
      $region18: #{ribonanza_forward.12} parent=11 // pred_check_branch
        %145 = sbr.rel (%p143) target = $region20
      $region19: #{ribonanza_forward.12} parent=11 // pred_region
        _
      $region20: #{ribonanza_forward.12} parent=11 // pred_fallthru
        _
      // Predicated region
      $region21: #{ribonanza_forward.12} parent=11 // pred_check
        %p146 = pneg %p99
      $region22: #{ribonanza_forward.12} parent=11 // pred_check_branch
        %148 = sbr.rel (%p146) target = $region24
      $region23: #{ribonanza_forward.12} parent=11 // pred_region
        _
      $region24: #{ribonanza_forward.12} parent=11 // pred_fallthru
        _
    $region12: #{ribonanza_forward.12} parent=5 // pred_fallthru
      _
    %p149 = scmp.lt.s32.totalorder %s10, 2
    // Predicated region
    $region25: #{ribonanza_forward.12} parent=5 // pred_check
      %p150 = pneg %p149
    $region26: #{ribonanza_forward.12} parent=5 // pred_check_branch
      %152 = sbr.rel (%p150) target = $region28
    $region27: #{ribonanza_forward.12} parent=5 // pred_region
      // Predicated region
      $region29: #{ribonanza_forward.12} parent=27 // pred_check
        %p153 = pneg %p30
      $region30: #{ribonanza_forward.12} parent=27 // pred_check_branch
        %155 = sbr.rel (%p153) target = $region32
      $region31: #{ribonanza_forward.12} parent=27 // pred_region
        %p156 = scmp.lt.s32.totalorder %s10, 1
        %s157 = scalar_select %p156, %s10, 1
        %s158 = smul.addr %s157, 2
        %s159 = smul.addr %s158, 8
        %s160 = scalar_lea.vmem %s0, %s159
      $region32: #{ribonanza_forward.12} parent=27 // pred_fallthru
        _
    $region28: #{ribonanza_forward.12} parent=5 // pred_fallthru
      _
    %p161 = scmp.le.s32.totalorder 1, %s10
    %p162 = scmp.lt.s32.totalorder %s10, 3
    %p163 = pnand %p161, %p162
    %p164 = pneg %p163
    // Predicated region
    $region33: #{ribonanza_forward.12} parent=5 // pred_check
      _
    $region34: #{ribonanza_forward.12} parent=5 // pred_check_branch
      %166 = sbr.rel (%p163) target = $region36
    $region35: #{ribonanza_forward.12} parent=5 // pred_region
      %s167 = ssub.s32 %s10, 1
      %p168 = scmp.lt.s32.totalorder %s15, 1
      %s169 = scalar_select %p168, %s15, 1
      %s170 = smul.addr %s169, 2
      %s171 = smul.addr %s170, 8
      %s172 = scalar_lea.vmem %s0, %s171
      %p173 = pneg %p36
      %p174 = pneg %p33
      %p175 = pneg %p57
      %p176 = pneg %p54
      %p177 = pneg %p78
      %p178 = pneg %p75
      %p179 = pneg %p99
      %p180 = pneg %p96
      %p181 = pneg %p125
      %p182 = pneg %p122
      %p183 = scmp.lt.s32.totalorder %s15, 1
      %s184 = scalar_select %p183, %s15, 1
      %s185 = smul.addr %s184, 4
      %s186 = smul.addr %s185, 8
      %s187 = scalar_lea.vmem %s4, %s186
      %p188 = scmp.lt.s32.totalorder %s15, 1
      %s189 = scalar_select %p188, %s15, 1
      %s190 = smul.addr %s189, 2
      %s191 = smul.addr %s190, 8
      %s192 = scalar_lea.vmem %s0, %s191
      %p193 = scmp.lt.s32.totalorder %s15, 1
      %s194 = scalar_select %p193, %s15, 1
      %s195 = smul.addr %s194, 4
      %s196 = smul.addr %s195, 8
      %s197 = scalar_lea.vmem %s4, %s196
      %v199 = vld [vmem:[%s192] sm:$0xff]
      %v200 = vld [vmem:[%s192 + $0x8] sm:$0xff]
      %vm201 = vcmask 158720
      %202 = vst.msk [vmem:[#allocation2] sm:$0xf] %vm201, 0
      %203 = vst.msk [vmem:[#allocation2 + $0x4] sm:$0xf] %vm201, 0
      %v204 = vpack.c.bf16 %v200, %v199
      %v206 = vunpack.c.l.b16 %v204
      %v207 = vunpack.c.h.b16 %v204
      %v208 = vpack.c.b16 %v206, %v206
      %v209 = vpack.c.b16 %v207, %v207
      %210 = vrot.lane.b32.xlu0 %v208, 2
      %v211 = vpop.permute.xlu0 %210
      %212 = vrot.lane.b32.xlu0 %v209, 2
      %v213 = vpop.permute.xlu0 %212
      %vm216 = vcmask 142352
      %217 = vst.msk [vmem:[#allocation2] sm:$0xf] %vm216, %v211
      %218 = vst.msk [vmem:[#allocation2 + $0x4] sm:$0xf] %vm216, %v213
      %v219 = vld [vmem:[#allocation2] sm:$0xf]
      %v220 = vld [vmem:[#allocation2 + $0x4] sm:$0xf]
      %vm221 = vcmask 125952
      %222 = vst.msk [vmem:[#allocation3] sm:$0xf] %vm221, %v219
      %223 = vst.msk [vmem:[#allocation3 + $0x4] sm:$0xf] %vm221, %v220
      %v224 = vld [vmem:[#allocation2] sm:$0xf]
      %v225 = vld [vmem:[#allocation2 + $0x4] sm:$0xf]
      %228 = vrot.lane.b32.xlu0 %v224, 127
      %v229 = vpop.permute.xlu0 %228
      %230 = vrot.lane.b32.xlu0 %v225, 127
      %v231 = vpop.permute.xlu0 %230
      %234 = vst.msk [vmem:[#allocation3 + $0x8] sm:$0xf] %vm221, %v229
      %235 = vst.msk [vmem:[#allocation3 + $0xc] sm:$0xf] %vm221, %v231
      %v236 = vld [vmem:[#allocation2] sm:$0xf]
      %v237 = vld [vmem:[#allocation2 + $0x4] sm:$0xf]
      %240 = vrot.lane.b32.xlu0 %v236, 126
      %v241 = vpop.permute.xlu0 %240
      %242 = vrot.lane.b32.xlu0 %v237, 126
      %v243 = vpop.permute.xlu0 %242
      %246 = vst.msk [vmem:[#allocation3 + $0x10] sm:$0xf] %vm221, %v241
      %247 = vst.msk [vmem:[#allocation3 + $0x14] sm:$0xf] %vm221, %v243
      %v248 = vld [vmem:[#allocation2] sm:$0xf]
      %v249 = vld [vmem:[#allocation2 + $0x4] sm:$0xf]
      %252 = vrot.lane.b32.xlu0 %v248, 125
      %v253 = vpop.permute.xlu0 %252
      %254 = vrot.lane.b32.xlu0 %v249, 125
      %v255 = vpop.permute.xlu0 %254
      %258 = vst.msk [vmem:[#allocation3 + $0x18] sm:$0xf] %vm221, %v253
      %259 = vst.msk [vmem:[#allocation3 + $0x1c] sm:$0xf] %vm221, %v255
      %v260 = vld [vmem:[#allocation2] sm:$0xf]
      %v261 = vld [vmem:[#allocation2 + $0x4] sm:$0xf]
      %264 = vrot.lane.b32.xlu0 %v260, 124
      %v265 = vpop.permute.xlu0 %264
      %266 = vrot.lane.b32.xlu0 %v261, 124
      %v267 = vpop.permute.xlu0 %266
      %270 = vst.msk [vmem:[#allocation3 + $0x20] sm:$0xf] %vm221, %v265
      %271 = vst.msk [vmem:[#allocation3 + $0x24] sm:$0xf] %vm221, %v267
      %v272 = vld [vmem:[%s1] sm:$0xf]
      %v273 = vld [vmem:[%s1 + $0x4] sm:$0xf]
      %v274 = vld [vmem:[%s1 + $0x8] sm:$0xf]
      %v275 = vld [vmem:[%s1 + $0xc] sm:$0xf]
      %v276 = vld [vmem:[#allocation3] sm:$0xf]
      %v277 = vld [vmem:[#allocation3 + $0x4] sm:$0xf]
      %v278 = vld [vmem:[#allocation3 + $0x8] sm:$0xf]
      %v279 = vld [vmem:[#allocation3 + $0xc] sm:$0xf]
      %v280 = vld [vmem:[#allocation3 + $0x10] sm:$0xf]
      %v281 = vld [vmem:[#allocation3 + $0x14] sm:$0xf]
      %v282 = vld [vmem:[#allocation3 + $0x18] sm:$0xf]
      %v283 = vld [vmem:[#allocation3 + $0x1c] sm:$0xf]
      %v284 = vld [vmem:[#allocation3 + $0x20] sm:$0xf]
      %v285 = vld [vmem:[#allocation3 + $0x24] sm:$0xf]
      %v290 = vunpack.c.l.b16 %v272
      %v291 = vunpack.c.l.b16 %v273
      %v292 = vunpack.c.l.b16 %v274
      %v293 = vunpack.c.l.b16 %v275
      %v294 = vpack.c.b16 %v291, %v290
      %v295 = vpack.c.b16 %v293, %v292
      %v306 = vunpack.c.l.b16 %v276
      %v307 = vunpack.c.l.b16 %v277
      %v308 = vunpack.c.l.b16 %v278
      %v309 = vunpack.c.l.b16 %v279
      %v310 = vunpack.c.l.b16 %v280
      %v311 = vunpack.c.l.b16 %v281
      %v312 = vunpack.c.l.b16 %v282
      %v313 = vunpack.c.l.b16 %v283
      %v314 = vunpack.c.l.b16 %v284
      %v315 = vunpack.c.l.b16 %v285
      %v316 = vpack.c.b16 %v307, %v306
      %v317 = vpack.c.b16 %v309, %v308
      %v318 = vpack.c.b16 %v311, %v310
      %v319 = vpack.c.b16 %v313, %v312
      %v320 = vpack.c.b16 %v315, %v314
      %vm326 = vcmask 654336
      %v328 = vsel %vm326, %v294, 0
      %v331 = vsel %vm326, %v295, 0
      %333 = vmatprep.subr.bf16.mxu0 0
      %334 = vmatpush1.bf16.msra.mxu0 0
      %335 = vmatprep.subr.bf16.mxu0 0
      %336 = vmatpush1.bf16.msra.mxu0 0
      %337 = vmatprep.subr.bf16.mxu0 0
      %338 = vmatpush1.bf16.msra.mxu0 0
      %339 = vmatprep.subr.bf16.mxu0 0
      %340 = vmatpush1.bf16.msra.mxu0 %v320
      %341 = vmatprep.subr.bf16.mxu0 0
      %342 = vmatpush1.bf16.msra.mxu0 %v319
      %343 = vmatprep.subr.bf16.mxu0 0
      %344 = vmatpush1.bf16.msra.mxu0 %v318
      %345 = vmatprep.subr.bf16.mxu0 0
      %346 = vmatpush1.bf16.msra.mxu0 %v317
      %347 = vmatprep.subr.bf16.mxu0 0
      %348 = vmatpush1.bf16.msra.mxu0 %v316
      %349 = vmatprep.subr.bf16.mxu0 0
      %350 = vmatpush2.bf16.msra.mxu0 0
      %351 = vmatprep.subr.bf16.mxu0 0
      %352 = vmatpush2.bf16.msra.mxu0 0
      %353 = vmatprep.subr.bf16.mxu0 0
      %354 = vmatpush2.bf16.msra.mxu0 0
      %355 = vmatprep.subr.bf16.mxu0 0
      %356 = vmatpush2.bf16.msra.mxu0 0
      %357 = vmatprep.subr.bf16.mxu0 0
      %358 = vmatpush2.bf16.msra.mxu0 0
      %359 = vmatprep.subr.bf16.mxu0 0
      %360 = vmatpush2.bf16.msra.mxu0 0
      %361 = vmatprep.subr.bf16.mxu0 0
      %362 = vmatpush2.bf16.msra.mxu0 0
      %363 = vmatprep.subr.bf16.mxu0 0
      %364 = vmatpush2.bf16.msra.mxu0 0
      %365 = vmatprep.mubr.bf16.mxu0 0
      %366 = vmatmul.mubr.bf16.gmra.mxu0 %v328
      %v367 = vpop.f32.mrf.mxu0
      %v368 = vadd.f32 0.0, %v367
      %v369 = vpop.f32.mrf.mxu0
      %v370 = vpop.f32.mrf.mxu0
      %v371 = vadd.f32 0.0, %v370
      %v372 = vpop.f32.mrf.mxu0
      %373 = vmatprep.mubr.bf16.mxu0 0
      %374 = vmatmul.mubr.bf16.gmra.mxu0 %v331
      %v375 = vpop.f32.mrf.mxu0
      %v376 = vadd.f32 0.0, %v375
      %v377 = vpop.f32.mrf.mxu0
      %v378 = vpop.f32.mrf.mxu0
      %v379 = vadd.f32 0.0, %v378
      %v380 = vpop.f32.mrf.mxu0
      %381 = vdwg.mxu0
      %v382 = vld [vmem:[%s2] sm:$0xff]
      %v383 = vld [vmem:[%s2 + $0x8] sm:$0xff]
      %v384 = vld [vmem:[%s2 + $0x10] sm:$0xff]
      %v385 = vld [vmem:[%s2 + $0x18] sm:$0xff]
      %387 = vset.pattern.permute.xlu0 0
      %388 = vperm.xlu0 %387, %v382
      %v389 = vpop.permute.xlu0 %388
      %392 = vset.pattern.permute.xlu0 0
      %393 = vperm.xlu0 %392, %v383
      %v394 = vpop.permute.xlu0 %393
      %397 = vset.pattern.permute.xlu0 0
      %398 = vperm.xlu0 %397, %v384
      %v399 = vpop.permute.xlu0 %398
      %402 = vset.pattern.permute.xlu0 0
      %403 = vperm.xlu0 %402, %v385
      %v404 = vpop.permute.xlu0 %403
      %v406 = vmul.f32 %v368, %v389
      %v407 = vmul.f32 %v371, %v394
      %v408 = vmul.f32 %v376, %v399
      %v409 = vmul.f32 %v379, %v404
      %v410 = vld [vmem:[%s3] sm:$0xff]
      %v411 = vld [vmem:[%s3 + $0x8] sm:$0xff]
      %v412 = vld [vmem:[%s3 + $0x10] sm:$0xff]
      %v413 = vld [vmem:[%s3 + $0x18] sm:$0xff]
      %415 = vset.pattern.permute.xlu0 0
      %416 = vperm.xlu0 %415, %v410
      %v417 = vpop.permute.xlu0 %416
      %420 = vset.pattern.permute.xlu0 0
      %421 = vperm.xlu0 %420, %v411
      %v422 = vpop.permute.xlu0 %421
      %425 = vset.pattern.permute.xlu0 0
      %426 = vperm.xlu0 %425, %v412
      %v427 = vpop.permute.xlu0 %426
      %430 = vset.pattern.permute.xlu0 0
      %431 = vperm.xlu0 %430, %v413
      %v432 = vpop.permute.xlu0 %431
      %v434 = vadd.f32 %v406, %v417
      %v435 = vadd.f32 %v407, %v422
      %v436 = vadd.f32 %v408, %v427
      %v437 = vadd.f32 %v409, %v432
      %v438 = vmax.f32 %v434, 0.0
      %v439 = vmax.f32 %v435, 0.0
      %v440 = vmax.f32 %v436, 0.0
      %v441 = vmax.f32 %v437, 0.0
      %vm442 = vcmask 130048
      %443 = vst.msk [vmem:[%s197] sm:$0xff] %vm442, %v438
      %444 = vst.msk [vmem:[%s197 + $0x8] sm:$0xff] %vm442, %v439
      %445 = vst.msk [vmem:[%s197 + $0x10] sm:$0xff] %vm442, %v440
      %446 = vst.msk [vmem:[%s197 + $0x18] sm:$0xff] %vm442, %v441
      %p447 = scmp.lt.s32.totalorder %s15, 1
      %s448 = scalar_select %p447, %s15, 1
      %s449 = smul.addr %s448, 4
      %s450 = smul.addr %s449, 8
      %s451 = scalar_lea.vmem %s4, %s450
      // Predicated region
      $region37: #{ribonanza_forward.12} parent=35 // pred_check
        %p452 = pneg %p122
      $region38: #{ribonanza_forward.12} parent=35 // pred_check_branch
        %454 = sbr.rel (%p452) target = $region40
      $region39: #{ribonanza_forward.12} parent=35 // pred_region
        _
      $region40: #{ribonanza_forward.12} parent=35 // pred_fallthru
        _
    $region36: #{ribonanza_forward.12} parent=5 // pred_fallthru
      _
    %p455 = scmp.le.s32.totalorder 2, %s10
    // Predicated region
    $region41: #{ribonanza_forward.12} parent=5 // pred_check
      %p456 = pneg %p455
    $region42: #{ribonanza_forward.12} parent=5 // pred_check_branch
      %458 = sbr.rel (%p456) target = $region44
    $region43: #{ribonanza_forward.12} parent=5 // pred_region
      %s459 = ssub.s32 %s10, 2
      // Predicated region
      $region45: #{ribonanza_forward.12} parent=43 // pred_check
        %p460 = pneg %p128
      $region46: #{ribonanza_forward.12} parent=43 // pred_check_branch
        %462 = sbr.rel (%p460) target = $region48
      $region47: #{ribonanza_forward.12} parent=43 // pred_region
        %p463 = scmp.lt.s32.totalorder %s16, 1
        %s464 = scalar_select %p463, %s16, 1
        %s465 = smul.addr %s464, 4
        %s466 = smul.addr %s465, 8
        %s467 = scalar_lea.vmem %s4, %s466
      $region48: #{ribonanza_forward.12} parent=43 // pred_fallthru
        _
    $region44: #{ribonanza_forward.12} parent=5 // pred_fallthru
      _
  $region6: #{ribonanza_forward.12} parent=0 // loop_footer
    %s14 = sadd.s32 1, %s10
  $region7: #{ribonanza_forward.12} parent=0 // loop_footer_branch
    %9 = sbr.rel target = $region3
  $region8: #{ribonanza_forward.12} parent=0 // loop_exit
    _

// kernel: ribonanza_forward.20
$region0: #{ribonanza_forward.20}
  #allocation0 [shape = 'u32[]', space=smem, size = 0x4, offset = 0x4, fixed_abs, tag = 'smem constant byte address 0x4 - core index']
  #allocation1 [shape = 'u32[144,128]{1,0:T(1,128)}', space=vmem, size = 0x12000, scoped, tag = 'internal scratch']
  #allocation2 [shape = 'f32[2,16]{1,0:T(2,128)}', space=vmem, size = 0x400, scoped, tag = 'scratch operand']
  #allocation3 [shape = 'f32[2,16]{1,0:T(2,128)}', space=vmem, size = 0x400, scoped, tag = 'scratch operand']
  #allocation4 [shape = 'f32[2,16]{1,0:T(2,128)}', space=vmem, size = 0x400, scoped, tag = 'scratch operand']
  #allocation5 [shape = 'f32[2,16]{1,0:T(2,128)}', space=vmem, size = 0x400, scoped, tag = 'scratch operand']
  %s0 = inlined_call_operand.vmem [shape: f32[16,2,128], index: 0, kind: input, shape index: {}]
  %s1 = inlined_call_operand.vmem [shape: bf16[16,64], index: 1, kind: input, shape index: {}]
  %s2 = inlined_call_operand.vmem [shape: bf16[16,64], index: 2, kind: input, shape index: {}]
  %s3 = inlined_call_operand.vmem [shape: f32[16,2,16], index: 3, kind: output, shape index: {0}]
  %s4 = inlined_call_operand.vmem [shape: f32[16,2,16], index: 4, kind: output, shape index: {1}]
  %5 = xla_tuple %s3, %s4
  %s6 = sld [smem:[#allocation0]]
  $region37: #{ribonanza_forward.20} parent=0
    _
  %s8 = ssub.s32 1, %s6
  %s9 = scalar_select 0, %s8, %s6
  // Predicated region
  $region2: #{ribonanza_forward.20} parent=0 // pred_check
    _
  $region3: #{ribonanza_forward.20} parent=0 // pred_check_branch
    %11 = sbr.rel (0) target = $region5
  $region4: #{ribonanza_forward.20} parent=0 // pred_region
    _
  $region5: #{ribonanza_forward.20} parent=0 // pred_fallthru
    _
  // Predicated region
  $region6: #{ribonanza_forward.20} parent=0 // pred_check
    _
  $region7: #{ribonanza_forward.20} parent=0 // pred_check_branch
    %13 = sbr.rel (0) target = $region9
  $region8: #{ribonanza_forward.20} parent=0 // pred_region
    _
  $region9: #{ribonanza_forward.20} parent=0 // pred_fallthru
    _
  // Predicated region
  $region10: #{ribonanza_forward.20} parent=0 // pred_check
    _
  $region11: #{ribonanza_forward.20} parent=0 // pred_check_branch
    %15 = sbr.rel (0) target = $region13
  $region12: #{ribonanza_forward.20} parent=0 // pred_region
    _
  $region13: #{ribonanza_forward.20} parent=0 // pred_fallthru
    _
  %vm17 = vcmask 123904
  %18 = vst.msk [vmem:[#allocation2] sm:$0x3] %vm17, 0.0
  %19 = vst.msk [vmem:[#allocation3] sm:$0x3] %vm17, 0.0
  %20 = vst.msk [vmem:[#allocation4] sm:$0x3] %vm17, 0.0
  %21 = vst.msk [vmem:[#allocation5] sm:$0x3] %vm17, 0.0
  loop: start=0, step=1, limit=16
  $region14: #{ribonanza_forward.20} parent=0 // loop_pre_header
    _
  $region15: #{ribonanza_forward.20} parent=0 // loop_header
    %s23 = sphi 0, %s27
    %p24 = scmp.ge.s32.totalorder %s23, 16
  $region16: #{ribonanza_forward.20} parent=0 // loop_header_branch
    %26 = sbr.rel (%p24) target = $region20
  $region17: #{ribonanza_forward.20} parent=0 // loop_body
    %s28 = smul.u32 %s23, 2
    %s29 = scalar_lea.vmem %s0, %s28
    %v30 = vld [vmem:[%s29] sm:$0x3]
    %v31 = vld [vmem:[#allocation2] sm:$0x3]
    %v32 = vpack.c.bf16 %v31, %v31
    %v33 = vld [vmem:[%s1] sm:$0xf]
    %v34 = vld [vmem:[%s1 + $0x4] sm:$0xf]
    %v37 = vunpack.c.l.b16 %v33
    %v38 = vunpack.c.l.b16 %v34
    %v39 = vpack.c.b16 %v38, %v37
    %vm41 = vcmask 130048
    %v43 = vsel %vm41, %v32, 0
    %45 = vmatprep.subr.bf16.mxu0 0
    %46 = vmatpush1.bf16.msra.mxu0 0
    %47 = vmatprep.subr.bf16.mxu0 0
    %48 = vmatpush1.bf16.msra.mxu0 0
    %49 = vmatprep.subr.bf16.mxu0 0
    %50 = vmatpush1.bf16.msra.mxu0 0
    %51 = vmatprep.subr.bf16.mxu0 0
    %52 = vmatpush1.bf16.msra.mxu0 0
    %53 = vmatprep.subr.bf16.mxu0 0
    %54 = vmatpush1.bf16.msra.mxu0 0
    %55 = vmatprep.subr.bf16.mxu0 0
    %56 = vmatpush1.bf16.msra.mxu0 0
    %57 = vmatprep.subr.bf16.mxu0 0
    %58 = vmatpush1.bf16.msra.mxu0 0
    %59 = vmatprep.subr.bf16.mxu0 0
    %60 = vmatpush1.bf16.msra.mxu0 %v39
    %61 = vmatprep.subr.bf16.mxu0 0
    %62 = vmatpush2.bf16.msra.mxu0 0
    %63 = vmatprep.subr.bf16.mxu0 0
    %64 = vmatpush2.bf16.msra.mxu0 0
    %65 = vmatprep.subr.bf16.mxu0 0
    %66 = vmatpush2.bf16.msra.mxu0 0
    %67 = vmatprep.subr.bf16.mxu0 0
    %68 = vmatpush2.bf16.msra.mxu0 0
    %69 = vmatprep.subr.bf16.mxu0 0
    %70 = vmatpush2.bf16.msra.mxu0 0
    %71 = vmatprep.subr.bf16.mxu0 0
    %72 = vmatpush2.bf16.msra.mxu0 0
    %73 = vmatprep.subr.bf16.mxu0 0
    %74 = vmatpush2.bf16.msra.mxu0 0
    %75 = vmatprep.subr.bf16.mxu0 0
    %76 = vmatpush2.bf16.msra.mxu0 0
    %77 = vmatprep.mubr.bf16.mxu0 0
    %78 = vmatmul.mubr.bf16.gmra.mxu0 %v43
    %v79 = vpop.f32.mrf.mxu0
    %v80 = vadd.f32 0.0, %v79
    %v81 = vpop.f32.mrf.mxu0
    %v82 = vpop.f32.mrf.mxu0
    %v83 = vpop.f32.mrf.mxu0
    %84 = vdwg.mxu0
    %v85 = vadd.f32 %v30, %v80
    %v86 = vld [vmem:[#allocation3] sm:$0x3]
    %v87 = vxor.u32 %v85, 2147483648
    %v88 = vmul.f32 %v87, 1.442695
    %v89 = vpow.pop %v88
    %v90 = vadd.f32 %v89, 1.0
    %v91 = vrcp.pop %v90
    %v92 = vmul.f32 1.0, %v91
    %v93 = vtanh.pop %v85
    %95 = vrot.lane.b32.xlu0 %v86, 16
    %v96 = vpop.permute.xlu0 %95
    %v98 = vmul.f32 %v92, %v96
    %100 = vrot.lane.b32.xlu0 %v93, 96
    %v101 = vpop.permute.xlu0 %100
    %v103 = vmul.f32 %v92, %v101
    %105 = vrot.lane.b32.xlu0 %v103, 16
    %v106 = vpop.permute.xlu0 %105
    %v108 = vadd.f32 %v98, %v106
    %v109 = vtanh.pop %v108
    %111 = vrot.lane.b32.xlu0 %v109, 32
    %v112 = vpop.permute.xlu0 %111
    %v114 = vmul.f32 %v92, %v112
    %116 = vrot.lane.b32.xlu0 %v114, 80
    %v117 = vpop.permute.xlu0 %116
    %119 = vst.msk [vmem:[#allocation2] sm:$0x3] %vm17, %v117
    %121 = vrot.lane.b32.xlu0 %v108, 112
    %v122 = vpop.permute.xlu0 %121
    %124 = vst.msk [vmem:[#allocation3] sm:$0x3] %vm17, %v122
    %s125 = scalar_lea.vmem %s3, %s28
    %126 = vst.msk [vmem:[%s125] sm:$0x3] %vm17, %v117
    %s127 = ssub.s32 15, %s23
    %s128 = smul.u32 %s127, 2
    %s129 = scalar_lea.vmem %s0, %s128
    %v130 = vld [vmem:[%s129] sm:$0x3]
    %v131 = vld [vmem:[#allocation4] sm:$0x3]
    %v132 = vpack.c.bf16 %v131, %v131
    %v133 = vld [vmem:[%s2] sm:$0xf]
    %v134 = vld [vmem:[%s2 + $0x4] sm:$0xf]
    %v137 = vunpack.c.l.b16 %v133
    %v138 = vunpack.c.l.b16 %v134
    %v139 = vpack.c.b16 %v138, %v137
    %v142 = vsel %vm41, %v132, 0
    %144 = vmatprep.subr.bf16.mxu0 0
    %145 = vmatpush1.bf16.msra.mxu0 0
    %146 = vmatprep.subr.bf16.mxu0 0
    %147 = vmatpush1.bf16.msra.mxu0 0
    %148 = vmatprep.subr.bf16.mxu0 0
    %149 = vmatpush1.bf16.msra.mxu0 0
    %150 = vmatprep.subr.bf16.mxu0 0
    %151 = vmatpush1.bf16.msra.mxu0 0
    %152 = vmatprep.subr.bf16.mxu0 0
    %153 = vmatpush1.bf16.msra.mxu0 0
    %154 = vmatprep.subr.bf16.mxu0 0
    %155 = vmatpush1.bf16.msra.mxu0 0
    %156 = vmatprep.subr.bf16.mxu0 0
    %157 = vmatpush1.bf16.msra.mxu0 0
    %158 = vmatprep.subr.bf16.mxu0 0
    %159 = vmatpush1.bf16.msra.mxu0 %v139
    %160 = vmatprep.subr.bf16.mxu0 0
    %161 = vmatpush2.bf16.msra.mxu0 0
    %162 = vmatprep.subr.bf16.mxu0 0
    %163 = vmatpush2.bf16.msra.mxu0 0
    %164 = vmatprep.subr.bf16.mxu0 0
    %165 = vmatpush2.bf16.msra.mxu0 0
    %166 = vmatprep.subr.bf16.mxu0 0
    %167 = vmatpush2.bf16.msra.mxu0 0
    %168 = vmatprep.subr.bf16.mxu0 0
    %169 = vmatpush2.bf16.msra.mxu0 0
    %170 = vmatprep.subr.bf16.mxu0 0
    %171 = vmatpush2.bf16.msra.mxu0 0
    %172 = vmatprep.subr.bf16.mxu0 0
    %173 = vmatpush2.bf16.msra.mxu0 0
    %174 = vmatprep.subr.bf16.mxu0 0
    %175 = vmatpush2.bf16.msra.mxu0 0
    %176 = vmatprep.mubr.bf16.mxu0 0
    %177 = vmatmul.mubr.bf16.gmra.mxu0 %v142
    %v178 = vpop.f32.mrf.mxu0
    %v179 = vadd.f32 0.0, %v178
    %v180 = vpop.f32.mrf.mxu0
    %v181 = vpop.f32.mrf.mxu0
    %v182 = vpop.f32.mrf.mxu0
    %183 = vdwg.mxu0
    %185 = vrot.lane.b32.xlu0 %v179, 64
    %v186 = vpop.permute.xlu0 %185
    %v188 = vadd.f32 %v130, %v186
    %v189 = vld [vmem:[#allocation5] sm:$0x3]
    %v190 = vxor.u32 %v188, 2147483648
    %v191 = vmul.f32 %v190, 1.442695
    %v192 = vpow.pop %v191
    %v193 = vadd.f32 %v192, 1.0
    %v194 = vrcp.pop %v193
    %v195 = vmul.f32 1.0, %v194
    %v196 = vtanh.pop %v188
    %198 = vrot.lane.b32.xlu0 %v189, 80
    %v199 = vpop.permute.xlu0 %198
    %v201 = vmul.f32 %v195, %v199
    %203 = vrot.lane.b32.xlu0 %v196, 96
    %v204 = vpop.permute.xlu0 %203
    %v206 = vmul.f32 %v195, %v204
    %208 = vrot.lane.b32.xlu0 %v206, 16
    %v209 = vpop.permute.xlu0 %208
    %v211 = vadd.f32 %v201, %v209
    %v212 = vtanh.pop %v211
    %214 = vrot.lane.b32.xlu0 %v212, 32
    %v215 = vpop.permute.xlu0 %214
    %v217 = vmul.f32 %v195, %v215
    %219 = vrot.lane.b32.xlu0 %v217, 16
    %v220 = vpop.permute.xlu0 %219
    %222 = vst.msk [vmem:[#allocation4] sm:$0x3] %vm17, %v220
    %224 = vrot.lane.b32.xlu0 %v211, 48
    %v225 = vpop.permute.xlu0 %224
    %227 = vst.msk [vmem:[#allocation5] sm:$0x3] %vm17, %v225
    %s228 = scalar_lea.vmem %s4, %s128
    %229 = vst.msk [vmem:[%s228] sm:$0x3] %vm17, %v220
  $region18: #{ribonanza_forward.20} parent=0 // loop_footer
    %s27 = sadd.s32 1, %s23
  $region19: #{ribonanza_forward.20} parent=0 // loop_footer_branch
    %22 = sbr.rel target = $region15
  $region20: #{ribonanza_forward.20} parent=0 // loop_exit
    _
  // Predicated region
  $region21: #{ribonanza_forward.20} parent=0 // pred_check
    _
  $region22: #{ribonanza_forward.20} parent=0 // pred_check_branch
    %231 = sbr.rel (0) target = $region24
  $region23: #{ribonanza_forward.20} parent=0 // pred_region
    _
  $region24: #{ribonanza_forward.20} parent=0 // pred_fallthru
    _
  // Predicated region
  $region25: #{ribonanza_forward.20} parent=0 // pred_check
    _
  $region26: #{ribonanza_forward.20} parent=0 // pred_check_branch
    %233 = sbr.rel (0) target = $region28
  $region27: #{ribonanza_forward.20} parent=0 // pred_region
    _
  $region28: #{ribonanza_forward.20} parent=0 // pred_fallthru
    _
  // Predicated region
  $region29: #{ribonanza_forward.20} parent=0 // pred_check
    _
  $region30: #{ribonanza_forward.20} parent=0 // pred_check_branch
    %235 = sbr.rel (0) target = $region32
  $region31: #{ribonanza_forward.20} parent=0 // pred_region
    _
  $region32: #{ribonanza_forward.20} parent=0 // pred_fallthru
    _
  // Predicated region
  $region33: #{ribonanza_forward.20} parent=0 // pred_check
    _
  $region34: #{ribonanza_forward.20} parent=0 // pred_check_branch
    %237 = sbr.rel (0) target = $region36
  $region35: #{ribonanza_forward.20} parent=0 // pred_region
    _
  $region36: #{ribonanza_forward.20} parent=0 // pred_fallthru
    _

// kernel: ribonanza_forward.21
$region0: #{ribonanza_forward.21}
  #allocation0 [shape = 'u32[]', space=smem, size = 0x4, offset = 0x4, fixed_abs, tag = 'smem constant byte address 0x4 - core index']
  #allocation1 [shape = 'u32[144,128]{1,0:T(1,128)}', space=vmem, size = 0x12000, scoped, tag = 'internal scratch']
  %s0 = inlined_call_operand.vmem [shape: f32[32,16], index: 0, kind: input, shape index: {}]
  %s1 = inlined_call_operand.vmem [shape: f32[32,16], index: 1, kind: input, shape index: {}]
  %s2 = inlined_call_operand.vmem [shape: bf16[32,128], index: 2, kind: input, shape index: {}]
  %s3 = inlined_call_operand.vmem [shape: f32[1,128], index: 3, kind: input, shape index: {}]
  %s4 = inlined_call_operand.vmem [shape: f32[32,128], index: 4, kind: output, shape index: {}]
  %s5 = sld [smem:[#allocation0]]
  $region26: #{ribonanza_forward.21} parent=0
    _
  %s7 = ssub.s32 1, %s5
  %s8 = scalar_select 0, %s7, %s5
  // Predicated region
  $region2: #{ribonanza_forward.21} parent=0 // pred_check
    _
  $region3: #{ribonanza_forward.21} parent=0 // pred_check_branch
    %10 = sbr.rel (0) target = $region5
  $region4: #{ribonanza_forward.21} parent=0 // pred_region
    _
  $region5: #{ribonanza_forward.21} parent=0 // pred_fallthru
    _
  // Predicated region
  $region6: #{ribonanza_forward.21} parent=0 // pred_check
    _
  $region7: #{ribonanza_forward.21} parent=0 // pred_check_branch
    %12 = sbr.rel (0) target = $region9
  $region8: #{ribonanza_forward.21} parent=0 // pred_region
    _
  $region9: #{ribonanza_forward.21} parent=0 // pred_fallthru
    _
  // Predicated region
  $region10: #{ribonanza_forward.21} parent=0 // pred_check
    _
  $region11: #{ribonanza_forward.21} parent=0 // pred_check_branch
    %14 = sbr.rel (0) target = $region13
  $region12: #{ribonanza_forward.21} parent=0 // pred_region
    _
  $region13: #{ribonanza_forward.21} parent=0 // pred_fallthru
    _
  // Predicated region
  $region14: #{ribonanza_forward.21} parent=0 // pred_check
    _
  $region15: #{ribonanza_forward.21} parent=0 // pred_check_branch
    %16 = sbr.rel (0) target = $region17
  $region16: #{ribonanza_forward.21} parent=0 // pred_region
    _
  $region17: #{ribonanza_forward.21} parent=0 // pred_fallthru
    _
  %v18 = vld [vmem:[%s0] sm:$0xff]
  %v19 = vld [vmem:[%s0 + $0x8] sm:$0xff]
  %v20 = vld [vmem:[%s0 + $0x10] sm:$0xff]
  %v21 = vld [vmem:[%s0 + $0x18] sm:$0xff]
  %v22 = vld [vmem:[%s1] sm:$0xff]
  %v23 = vld [vmem:[%s1 + $0x8] sm:$0xff]
  %v24 = vld [vmem:[%s1 + $0x10] sm:$0xff]
  %v25 = vld [vmem:[%s1 + $0x18] sm:$0xff]
  %30 = vrot.lane.b32.xlu0 %v22, 16
  %v31 = vpop.permute.xlu0 %30
  %32 = vrot.lane.b32.xlu0 %v23, 16
  %v33 = vpop.permute.xlu0 %32
  %34 = vrot.lane.b32.xlu0 %v24, 16
  %v35 = vpop.permute.xlu0 %34
  %36 = vrot.lane.b32.xlu0 %v25, 16
  %v37 = vpop.permute.xlu0 %36
  %vm42 = vcmask 130048
  %v43 = vsel %vm42, %v18, %v31
  %v44 = vsel %vm42, %v19, %v33
  %v45 = vsel %vm42, %v20, %v35
  %v46 = vsel %vm42, %v21, %v37
  %v47 = vpack.c.bf16 %v44, %v43
  %v48 = vpack.c.bf16 %v46, %v45
  %v49 = vld [vmem:[%s2] sm:$0xf]
  %v50 = vld [vmem:[%s2 + $0x4] sm:$0xf]
  %v51 = vld [vmem:[%s2 + $0x8] sm:$0xf]
  %v52 = vld [vmem:[%s2 + $0xc] sm:$0xf]
  %v53 = vld [vmem:[%s3] sm:$0x1]
  %v55 = vlaneseq
  %v56 = vshrl.u32 %v55, 7
  %v57 = vsub.s32 0, %v56
  %v58 = vrot.slane %v53, %v57
  %v64 = vunpack.c.l.b16 %v49
  %v65 = vunpack.c.l.b16 %v50
  %v66 = vunpack.c.l.b16 %v51
  %v67 = vunpack.c.l.b16 %v52
  %v68 = vpack.c.b16 %v65, %v64
  %v69 = vpack.c.b16 %v67, %v66
  %vm72 = vcmask 261120
  %v74 = vsel %vm72, %v47, 0
  %v77 = vsel %vm72, %v48, 0
  %79 = vmatprep.subr.bf16.mxu0 0
  %80 = vmatpush1.bf16.msra.mxu0 0
  %81 = vmatprep.subr.bf16.mxu0 0
  %82 = vmatpush1.bf16.msra.mxu0 0
  %83 = vmatprep.subr.bf16.mxu0 0
  %84 = vmatpush1.bf16.msra.mxu0 0
  %85 = vmatprep.subr.bf16.mxu0 0
  %86 = vmatpush1.bf16.msra.mxu0 0
  %87 = vmatprep.subr.bf16.mxu0 0
  %88 = vmatpush1.bf16.msra.mxu0 0
  %89 = vmatprep.subr.bf16.mxu0 0
  %90 = vmatpush1.bf16.msra.mxu0 0
  %91 = vmatprep.subr.bf16.mxu0 0
  %92 = vmatpush1.bf16.msra.mxu0 %v69
  %93 = vmatprep.subr.bf16.mxu0 0
  %94 = vmatpush1.bf16.msra.mxu0 %v68
  %95 = vmatprep.subr.bf16.mxu0 0
  %96 = vmatpush2.bf16.msra.mxu0 0
  %97 = vmatprep.subr.bf16.mxu0 0
  %98 = vmatpush2.bf16.msra.mxu0 0
  %99 = vmatprep.subr.bf16.mxu0 0
  %100 = vmatpush2.bf16.msra.mxu0 0
  %101 = vmatprep.subr.bf16.mxu0 0
  %102 = vmatpush2.bf16.msra.mxu0 0
  %103 = vmatprep.subr.bf16.mxu0 0
  %104 = vmatpush2.bf16.msra.mxu0 0
  %105 = vmatprep.subr.bf16.mxu0 0
  %106 = vmatpush2.bf16.msra.mxu0 0
  %107 = vmatprep.subr.bf16.mxu0 0
  %108 = vmatpush2.bf16.msra.mxu0 0
  %109 = vmatprep.subr.bf16.mxu0 0
  %110 = vmatpush2.bf16.msra.mxu0 0
  %111 = vmatprep.mubr.bf16.mxu0 0
  %112 = vmatmul.mubr.bf16.gmra.mxu0 %v74
  %v113 = vpop.f32.mrf.mxu0
  %v114 = vadd.f32 %v58, %v113
  %v115 = vpop.f32.mrf.mxu0
  %v116 = vpop.f32.mrf.mxu0
  %v117 = vadd.f32 %v58, %v116
  %v118 = vpop.f32.mrf.mxu0
  %119 = vmatprep.mubr.bf16.mxu0 0
  %120 = vmatmul.mubr.bf16.gmra.mxu0 %v77
  %v121 = vpop.f32.mrf.mxu0
  %v122 = vadd.f32 %v58, %v121
  %v123 = vpop.f32.mrf.mxu0
  %v124 = vpop.f32.mrf.mxu0
  %v125 = vadd.f32 %v58, %v124
  %v126 = vpop.f32.mrf.mxu0
  %127 = vdwg.mxu0
  %128 = vst [vmem:[%s4] sm:$0xff] %v114
  %129 = vst [vmem:[%s4 + $0x8] sm:$0xff] %v117
  %130 = vst [vmem:[%s4 + $0x10] sm:$0xff] %v122
  %131 = vst [vmem:[%s4 + $0x18] sm:$0xff] %v125
  // Predicated region
  $region18: #{ribonanza_forward.21} parent=0 // pred_check
    _
  $region19: #{ribonanza_forward.21} parent=0 // pred_check_branch
    %133 = sbr.rel (0) target = $region21
  $region20: #{ribonanza_forward.21} parent=0 // pred_region
    _
  $region21: #{ribonanza_forward.21} parent=0 // pred_fallthru
    _
  // Predicated region
  $region22: #{ribonanza_forward.21} parent=0 // pred_check
    _
  $region23: #{ribonanza_forward.21} parent=0 // pred_check_branch
    %135 = sbr.rel (0) target = $region25
  $region24: #{ribonanza_forward.21} parent=0 // pred_region
    _
  $region25: #{ribonanza_forward.21} parent=0 // pred_fallthru
    _

// kernel: ribonanza_forward.14
$region0: #{ribonanza_forward.14}
  #allocation0 [shape = 'u32[]', space=smem, size = 0x4, offset = 0x4, fixed_abs, tag = 'smem constant byte address 0x4 - core index']
  #allocation1 [shape = 'u32[144,128]{1,0:T(1,128)}', space=vmem, size = 0x12000, scoped, tag = 'internal scratch']
  #allocation2 [shape = 'bf16[32,24]{1,0:T(8,128)(2,1)}', space=vmem, size = 0x2000, scoped, tag = 'scratch operand']
  #allocation3 [shape = 'bf16[288,16]{1,0:T(8,128)(2,1)}', space=vmem, size = 0x12000, scoped, tag = 'scratch operand']
  %s0 = inlined_call_operand.vmem [shape: f32[2,32,16], index: 0, kind: input, shape index: {}]
  %s1 = inlined_call_operand.vmem [shape: bf16[2,16,16], index: 1, kind: input, shape index: {}]
  %s2 = inlined_call_operand.vmem [shape: bf16[32,288], index: 2, kind: input, shape index: {}]
  %s3 = inlined_call_operand.vmem [shape: f32[32,1], index: 3, kind: input, shape index: {}]
  %s4 = inlined_call_operand.vmem [shape: f32[32,1], index: 4, kind: input, shape index: {}]
  %s5 = inlined_call_operand.vmem [shape: bf16[32,288], index: 5, kind: input, shape index: {}]
  %s6 = inlined_call_operand.vmem [shape: f32[32,1], index: 6, kind: input, shape index: {}]
  %s7 = inlined_call_operand.vmem [shape: f32[32,1], index: 7, kind: input, shape index: {}]
  %s8 = inlined_call_operand.vmem [shape: f32[2,32,16], index: 8, kind: output, shape index: {}]
  %s9 = sld [smem:[#allocation0]]
  $region65: #{ribonanza_forward.14} parent=0
    _
  %s11 = ssub.s32 1, %s9
  %s12 = scalar_select 0, %s11, %s9
  loop: start=0, step=1, limit=4
  $region2: #{ribonanza_forward.14} parent=0 // loop_pre_header
    _
  $region3: #{ribonanza_forward.14} parent=0 // loop_header
    %s14 = sphi 0, %s18
    %p15 = scmp.ge.s32.totalorder %s14, 4
    %s24 = sphi 0, %s26
    %s27 = sphi 0, %s24
    %s28 = sphi 0, %s27
    %s44 = sphi 0, %s28
    %s50 = sphi 0, %s52
    %s53 = sphi 0, %s50
    %s54 = sphi 0, %s53
    %s70 = sphi 0, %s54
    %s74 = sphi 0, %s74
    %s76 = sphi 0, %s74
    %s77 = sphi 0, %s76
    %s91 = sphi 0, %s77
    %s95 = sphi 0, %s95
    %s97 = sphi 0, %s95
    %s98 = sphi 0, %s97
    %s112 = sphi 0, %s98
    %s116 = sphi 0, %s116
    %s118 = sphi 0, %s116
    %s119 = sphi 0, %s118
    %s133 = sphi 0, %s119
    %s137 = sphi 0, %s137
    %s139 = sphi 0, %s137
    %s140 = sphi 0, %s139
    %s154 = sphi 0, %s140
    %s158 = sphi 0, %s158
    %s160 = sphi 0, %s158
    %s161 = sphi 0, %s160
    %s175 = sphi 0, %s161
    %s179 = sphi 0, %s179
    %s181 = sphi 0, %s179
    %s182 = sphi 0, %s181
    %s196 = sphi 0, %s182
    %s202 = sphi 0, %s204
    %s205 = sphi 0, %s202
    %s206 = sphi 0, %s205
    %s222 = sphi 0, %s206
  $region4: #{ribonanza_forward.14} parent=0 // loop_header_branch
    %17 = sbr.rel (%p15) target = $region8
  $region5: #{ribonanza_forward.14} parent=0 // loop_body
    %s19 = ssub.s32 %s14, 1
    %s20 = ssub.s32 %s14, 2
    %s21 = sadd.s32 %s14, 1
    %s22 = ssub.s32 %s14, %s21
    %p23 = scmp.eq.s32.totalorder %s22, 0
    %s25 = sadd.s32 %s24, 1
    %s26 = scalar_select %p23, %s24, %s25
    %p29 = pneg %p23
    %p30 = scmp.eq.s32.totalorder %s14, 1
    %p31 = por %p29, %p30
    %p32 = scmp.ne.s32.totalorder %s24, %s27
    %p33 = scmp.eq.s32.totalorder %s14, 0
    %p34 = por %p32, %p33
    %p35 = scmp.ne.s32.totalorder %s24, %s27
    %p36 = scmp.eq.s32.totalorder %s19, 1
    %p37 = por %p35, %p36
    %p38 = scmp.ne.s32.totalorder %s27, %s28
    %p39 = scmp.eq.s32.totalorder %s19, 0
    %p40 = por %p38, %p39
    %p41 = scmp.ne.s32.totalorder %s27, %s28
    %p42 = scmp.eq.s32.totalorder %s20, 1
    %p43 = por %p41, %p42
    %p45 = scmp.ne.s32.totalorder %s28, %s44
    %p46 = scmp.eq.s32.totalorder %s20, 0
    %p47 = por %p45, %p46
    %s48 = ssub.s32 %s14, %s21
    %p49 = scmp.eq.s32.totalorder %s48, 0
    %s51 = sadd.s32 %s50, 1
    %s52 = scalar_select %p49, %s50, %s51
    %p55 = pneg %p49
    %p56 = scmp.eq.s32.totalorder %s14, 1
    %p57 = por %p55, %p56
    %p58 = scmp.ne.s32.totalorder %s50, %s53
    %p59 = scmp.eq.s32.totalorder %s14, 0
    %p60 = por %p58, %p59
    %p61 = scmp.ne.s32.totalorder %s50, %s53
    %p62 = scmp.eq.s32.totalorder %s19, 1
    %p63 = por %p61, %p62
    %p64 = scmp.ne.s32.totalorder %s53, %s54
    %p65 = scmp.eq.s32.totalorder %s19, 0
    %p66 = por %p64, %p65
    %p67 = scmp.ne.s32.totalorder %s53, %s54
    %p68 = scmp.eq.s32.totalorder %s20, 1
    %p69 = por %p67, %p68
    %p71 = scmp.ne.s32.totalorder %s54, %s70
    %p72 = scmp.eq.s32.totalorder %s20, 0
    %p73 = por %p71, %p72
    %s75 = sadd.s32 %s74, 1
    %p78 = scmp.eq.s32.totalorder %s14, 1
    %p79 = scmp.ne.s32.totalorder %s74, %s76
    %p80 = scmp.eq.s32.totalorder %s14, 0
    %p81 = por %p79, %p80
    %p82 = scmp.ne.s32.totalorder %s74, %s76
    %p83 = scmp.eq.s32.totalorder %s19, 1
    %p84 = por %p82, %p83
    %p85 = scmp.ne.s32.totalorder %s76, %s77
    %p86 = scmp.eq.s32.totalorder %s19, 0
    %p87 = por %p85, %p86
    %p88 = scmp.ne.s32.totalorder %s76, %s77
    %p89 = scmp.eq.s32.totalorder %s20, 1
    %p90 = por %p88, %p89
    %p92 = scmp.ne.s32.totalorder %s77, %s91
    %p93 = scmp.eq.s32.totalorder %s20, 0
    %p94 = por %p92, %p93
    %s96 = sadd.s32 %s95, 1
    %p99 = scmp.eq.s32.totalorder %s14, 1
    %p100 = scmp.ne.s32.totalorder %s95, %s97
    %p101 = scmp.eq.s32.totalorder %s14, 0
    %p102 = por %p100, %p101
    %p103 = scmp.ne.s32.totalorder %s95, %s97
    %p104 = scmp.eq.s32.totalorder %s19, 1
    %p105 = por %p103, %p104
    %p106 = scmp.ne.s32.totalorder %s97, %s98
    %p107 = scmp.eq.s32.totalorder %s19, 0
    %p108 = por %p106, %p107
    %p109 = scmp.ne.s32.totalorder %s97, %s98
    %p110 = scmp.eq.s32.totalorder %s20, 1
    %p111 = por %p109, %p110
    %p113 = scmp.ne.s32.totalorder %s98, %s112
    %p114 = scmp.eq.s32.totalorder %s20, 0
    %p115 = por %p113, %p114
    %s117 = sadd.s32 %s116, 1
    %p120 = scmp.eq.s32.totalorder %s14, 1
    %p121 = scmp.ne.s32.totalorder %s116, %s118
    %p122 = scmp.eq.s32.totalorder %s14, 0
    %p123 = por %p121, %p122
    %p124 = scmp.ne.s32.totalorder %s116, %s118
    %p125 = scmp.eq.s32.totalorder %s19, 1
    %p126 = por %p124, %p125
    %p127 = scmp.ne.s32.totalorder %s118, %s119
    %p128 = scmp.eq.s32.totalorder %s19, 0
    %p129 = por %p127, %p128
    %p130 = scmp.ne.s32.totalorder %s118, %s119
    %p131 = scmp.eq.s32.totalorder %s20, 1
    %p132 = por %p130, %p131
    %p134 = scmp.ne.s32.totalorder %s119, %s133
    %p135 = scmp.eq.s32.totalorder %s20, 0
    %p136 = por %p134, %p135
    %s138 = sadd.s32 %s137, 1
    %p141 = scmp.eq.s32.totalorder %s14, 1
    %p142 = scmp.ne.s32.totalorder %s137, %s139
    %p143 = scmp.eq.s32.totalorder %s14, 0
    %p144 = por %p142, %p143
    %p145 = scmp.ne.s32.totalorder %s137, %s139
    %p146 = scmp.eq.s32.totalorder %s19, 1
    %p147 = por %p145, %p146
    %p148 = scmp.ne.s32.totalorder %s139, %s140
    %p149 = scmp.eq.s32.totalorder %s19, 0
    %p150 = por %p148, %p149
    %p151 = scmp.ne.s32.totalorder %s139, %s140
    %p152 = scmp.eq.s32.totalorder %s20, 1
    %p153 = por %p151, %p152
    %p155 = scmp.ne.s32.totalorder %s140, %s154
    %p156 = scmp.eq.s32.totalorder %s20, 0
    %p157 = por %p155, %p156
    %s159 = sadd.s32 %s158, 1
    %p162 = scmp.eq.s32.totalorder %s14, 1
    %p163 = scmp.ne.s32.totalorder %s158, %s160
    %p164 = scmp.eq.s32.totalorder %s14, 0
    %p165 = por %p163, %p164
    %p166 = scmp.ne.s32.totalorder %s158, %s160
    %p167 = scmp.eq.s32.totalorder %s19, 1
    %p168 = por %p166, %p167
    %p169 = scmp.ne.s32.totalorder %s160, %s161
    %p170 = scmp.eq.s32.totalorder %s19, 0
    %p171 = por %p169, %p170
    %p172 = scmp.ne.s32.totalorder %s160, %s161
    %p173 = scmp.eq.s32.totalorder %s20, 1
    %p174 = por %p172, %p173
    %p176 = scmp.ne.s32.totalorder %s161, %s175
    %p177 = scmp.eq.s32.totalorder %s20, 0
    %p178 = por %p176, %p177
    %s180 = sadd.s32 %s179, 1
    %p183 = scmp.eq.s32.totalorder %s14, 1
    %p184 = scmp.ne.s32.totalorder %s179, %s181
    %p185 = scmp.eq.s32.totalorder %s14, 0
    %p186 = por %p184, %p185
    %p187 = scmp.ne.s32.totalorder %s179, %s181
    %p188 = scmp.eq.s32.totalorder %s19, 1
    %p189 = por %p187, %p188
    %p190 = scmp.ne.s32.totalorder %s181, %s182
    %p191 = scmp.eq.s32.totalorder %s19, 0
    %p192 = por %p190, %p191
    %p193 = scmp.ne.s32.totalorder %s181, %s182
    %p194 = scmp.eq.s32.totalorder %s20, 1
    %p195 = por %p193, %p194
    %p197 = scmp.ne.s32.totalorder %s182, %s196
    %p198 = scmp.eq.s32.totalorder %s20, 0
    %p199 = por %p197, %p198
    %s200 = ssub.s32 %s14, %s21
    %p201 = scmp.eq.s32.totalorder %s200, 0
    %s203 = sadd.s32 %s202, 1
    %s204 = scalar_select %p201, %s202, %s203
    %p207 = pneg %p201
    %p208 = scmp.eq.s32.totalorder %s14, 1
    %p209 = por %p207, %p208
    %p210 = scmp.ne.s32.totalorder %s202, %s205
    %p211 = scmp.eq.s32.totalorder %s14, 0
    %p212 = por %p210, %p211
    %p213 = scmp.ne.s32.totalorder %s202, %s205
    %p214 = scmp.eq.s32.totalorder %s19, 1
    %p215 = por %p213, %p214
    %p216 = scmp.ne.s32.totalorder %s205, %s206
    %p217 = scmp.eq.s32.totalorder %s19, 0
    %p218 = por %p216, %p217
    %p219 = scmp.ne.s32.totalorder %s205, %s206
    %p220 = scmp.eq.s32.totalorder %s20, 1
    %p221 = por %p219, %p220
    %p223 = scmp.ne.s32.totalorder %s206, %s222
    %p224 = scmp.eq.s32.totalorder %s20, 0
    %p225 = por %p223, %p224
    %p226 = scmp.le.s32.totalorder 1, %s14
    %p227 = scmp.lt.s32.totalorder %s14, 3
    %p228 = pnand %p226, %p227
    %p229 = pneg %p228
    // Predicated region
    $region9: #{ribonanza_forward.14} parent=5 // pred_check
      _
    $region10: #{ribonanza_forward.14} parent=5 // pred_check_branch
      %231 = sbr.rel (%p228) target = $region12
    $region11: #{ribonanza_forward.14} parent=5 // pred_region
      %s232 = ssub.s32 %s14, 1
      // Predicated region
      $region13: #{ribonanza_forward.14} parent=11 // pred_check
        %p233 = pneg %p87
      $region14: #{ribonanza_forward.14} parent=11 // pred_check_branch
        %235 = sbr.rel (%p233) target = $region16
      $region15: #{ribonanza_forward.14} parent=11 // pred_region
        _
      $region16: #{ribonanza_forward.14} parent=11 // pred_fallthru
        _
      // Predicated region
      $region17: #{ribonanza_forward.14} parent=11 // pred_check
        %p236 = pneg %p108
      $region18: #{ribonanza_forward.14} parent=11 // pred_check_branch
        %238 = sbr.rel (%p236) target = $region20
      $region19: #{ribonanza_forward.14} parent=11 // pred_region
        _
      $region20: #{ribonanza_forward.14} parent=11 // pred_fallthru
        _
      // Predicated region
      $region21: #{ribonanza_forward.14} parent=11 // pred_check
        %p239 = pneg %p129
      $region22: #{ribonanza_forward.14} parent=11 // pred_check_branch
        %241 = sbr.rel (%p239) target = $region24
      $region23: #{ribonanza_forward.14} parent=11 // pred_region
        _
      $region24: #{ribonanza_forward.14} parent=11 // pred_fallthru
        _
      // Predicated region
      $region25: #{ribonanza_forward.14} parent=11 // pred_check
        %p242 = pneg %p150
      $region26: #{ribonanza_forward.14} parent=11 // pred_check_branch
        %244 = sbr.rel (%p242) target = $region28
      $region27: #{ribonanza_forward.14} parent=11 // pred_region
        _
      $region28: #{ribonanza_forward.14} parent=11 // pred_fallthru
        _
      // Predicated region
      $region29: #{ribonanza_forward.14} parent=11 // pred_check
        %p245 = pneg %p171
      $region30: #{ribonanza_forward.14} parent=11 // pred_check_branch
        %247 = sbr.rel (%p245) target = $region32
      $region31: #{ribonanza_forward.14} parent=11 // pred_region
        _
      $region32: #{ribonanza_forward.14} parent=11 // pred_fallthru
        _
      // Predicated region
      $region33: #{ribonanza_forward.14} parent=11 // pred_check
        %p248 = pneg %p192
      $region34: #{ribonanza_forward.14} parent=11 // pred_check_branch
        %250 = sbr.rel (%p248) target = $region36
      $region35: #{ribonanza_forward.14} parent=11 // pred_region
        _
      $region36: #{ribonanza_forward.14} parent=11 // pred_fallthru
        _
    $region12: #{ribonanza_forward.14} parent=5 // pred_fallthru
      _
    %p251 = scmp.lt.s32.totalorder %s14, 2
    // Predicated region
    $region37: #{ribonanza_forward.14} parent=5 // pred_check
      %p252 = pneg %p251
    $region38: #{ribonanza_forward.14} parent=5 // pred_check_branch
      %254 = sbr.rel (%p252) target = $region40
    $region39: #{ribonanza_forward.14} parent=5 // pred_region
      // Predicated region
      $region41: #{ribonanza_forward.14} parent=39 // pred_check
        %p255 = pneg %p34
      $region42: #{ribonanza_forward.14} parent=39 // pred_check_branch
        %257 = sbr.rel (%p255) target = $region44
      $region43: #{ribonanza_forward.14} parent=39 // pred_region
        %p258 = scmp.lt.s32.totalorder %s14, 1
        %s259 = scalar_select %p258, %s14, 1
        %s260 = smul.addr %s259, 4
        %s261 = smul.addr %s260, 8
        %s262 = scalar_lea.vmem %s0, %s261
      $region44: #{ribonanza_forward.14} parent=39 // pred_fallthru
        _
      // Predicated region
      $region45: #{ribonanza_forward.14} parent=39 // pred_check
        %p263 = pneg %p60
      $region46: #{ribonanza_forward.14} parent=39 // pred_check_branch
        %265 = sbr.rel (%p263) target = $region48
      $region47: #{ribonanza_forward.14} parent=39 // pred_region
        %p266 = scmp.lt.s32.totalorder %s14, 1
        %s267 = scalar_select %p266, %s14, 1
        %s268 = smul.addr %s267, 2
        %s269 = smul.addr %s268, 4
        %s270 = scalar_lea.vmem %s1, %s269
      $region48: #{ribonanza_forward.14} parent=39 // pred_fallthru
        _
    $region40: #{ribonanza_forward.14} parent=5 // pred_fallthru
      _
    %p271 = scmp.le.s32.totalorder 1, %s14
    %p272 = scmp.lt.s32.totalorder %s14, 3
    %p273 = pnand %p271, %p272
    %p274 = pneg %p273
    // Predicated region
    $region49: #{ribonanza_forward.14} parent=5 // pred_check
      _
    $region50: #{ribonanza_forward.14} parent=5 // pred_check_branch
      %276 = sbr.rel (%p273) target = $region52
    $region51: #{ribonanza_forward.14} parent=5 // pred_region
      %s277 = ssub.s32 %s14, 1
      %p278 = scmp.lt.s32.totalorder %s19, 1
      %s279 = scalar_select %p278, %s19, 1
      %s280 = smul.addr %s279, 4
      %s281 = smul.addr %s280, 8
      %s282 = scalar_lea.vmem %s0, %s281
      %p283 = pneg %p40
      %p284 = pneg %p37
      %p285 = scmp.lt.s32.totalorder %s19, 1
      %s286 = scalar_select %p285, %s19, 1
      %s287 = smul.addr %s286, 2
      %s288 = smul.addr %s287, 4
      %s289 = scalar_lea.vmem %s1, %s288
      %p290 = pneg %p66
      %p291 = pneg %p63
      %p292 = pneg %p87
      %p293 = pneg %p84
      %p294 = pneg %p108
      %p295 = pneg %p105
      %p296 = pneg %p129
      %p297 = pneg %p126
      %p298 = pneg %p150
      %p299 = pneg %p147
      %p300 = pneg %p171
      %p301 = pneg %p168
      %p302 = pneg %p192
      %p303 = pneg %p189
      %p304 = pneg %p218
      %p305 = pneg %p215
      %p306 = scmp.lt.s32.totalorder %s19, 1
      %s307 = scalar_select %p306, %s19, 1
      %s308 = smul.addr %s307, 4
      %s309 = smul.addr %s308, 8
      %s310 = scalar_lea.vmem %s8, %s309
      %p311 = scmp.lt.s32.totalorder %s19, 1
      %s312 = scalar_select %p311, %s19, 1
      %s313 = smul.addr %s312, 4
      %s314 = smul.addr %s313, 8
      %s315 = scalar_lea.vmem %s0, %s314
      %p316 = scmp.lt.s32.totalorder %s19, 1
      %s317 = scalar_select %p316, %s19, 1
      %s318 = smul.addr %s317, 2
      %s319 = smul.addr %s318, 4
      %s320 = scalar_lea.vmem %s1, %s319
      %p321 = scmp.lt.s32.totalorder %s19, 1
      %s322 = scalar_select %p321, %s19, 1
      %s323 = smul.addr %s322, 4
      %s324 = smul.addr %s323, 8
      %s325 = scalar_lea.vmem %s8, %s324
      %v327 = vld [vmem:[%s315] sm:$0xff]
      %v328 = vld [vmem:[%s315 + $0x8] sm:$0xff]
      %v329 = vld [vmem:[%s315 + $0x10] sm:$0xff]
      %v330 = vld [vmem:[%s315 + $0x18] sm:$0xff]
      %v331 = vpack.c.bf16 %v328, %v327
      %v332 = vpack.c.bf16 %v330, %v329
      %v333 = vld [vmem:[%s320] sm:$0xf]
      %v334 = vld [vmem:[%s320 + $0x4] sm:$0xf]
      %v337 = vunpack.c.l.b16 %v333
      %v338 = vunpack.c.l.b16 %v334
      %v339 = vpack.c.b16 %v338, %v337
      %vm341 = vcmask 130048
      %v343 = vsel %vm341, %v331, 0
      %v346 = vsel %vm341, %v332, 0
      %348 = vmatprep.subr.bf16.mxu0 0
      %349 = vmatpush1.bf16.msra.mxu0 0
      %350 = vmatprep.subr.bf16.mxu0 0
      %351 = vmatpush1.bf16.msra.mxu0 0
      %352 = vmatprep.subr.bf16.mxu0 0
      %353 = vmatpush1.bf16.msra.mxu0 0
      %354 = vmatprep.subr.bf16.mxu0 0
      %355 = vmatpush1.bf16.msra.mxu0 0
      %356 = vmatprep.subr.bf16.mxu0 0
      %357 = vmatpush1.bf16.msra.mxu0 0
      %358 = vmatprep.subr.bf16.mxu0 0
      %359 = vmatpush1.bf16.msra.mxu0 0
      %360 = vmatprep.subr.bf16.mxu0 0
      %361 = vmatpush1.bf16.msra.mxu0 0
      %362 = vmatprep.subr.bf16.mxu0 0
      %363 = vmatpush1.bf16.msra.mxu0 %v339
      %364 = vmatprep.subr.bf16.mxu0 0
      %365 = vmatpush2.bf16.msra.mxu0 0
      %366 = vmatprep.subr.bf16.mxu0 0
      %367 = vmatpush2.bf16.msra.mxu0 0
      %368 = vmatprep.subr.bf16.mxu0 0
      %369 = vmatpush2.bf16.msra.mxu0 0
      %370 = vmatprep.subr.bf16.mxu0 0
      %371 = vmatpush2.bf16.msra.mxu0 0
      %372 = vmatprep.subr.bf16.mxu0 0
      %373 = vmatpush2.bf16.msra.mxu0 0
      %374 = vmatprep.subr.bf16.mxu0 0
      %375 = vmatpush2.bf16.msra.mxu0 0
      %376 = vmatprep.subr.bf16.mxu0 0
      %377 = vmatpush2.bf16.msra.mxu0 0
      %378 = vmatprep.subr.bf16.mxu0 0
      %379 = vmatpush2.bf16.msra.mxu0 0
      %380 = vmatprep.mubr.bf16.mxu0 0
      %381 = vmatmul.mubr.bf16.gmra.mxu0 %v343
      %v382 = vpop.f32.mrf.mxu0
      %v383 = vadd.f32 0.0, %v382
      %v384 = vpop.f32.mrf.mxu0
      %v385 = vpop.f32.mrf.mxu0
      %v386 = vadd.f32 0.0, %v385
      %v387 = vpop.f32.mrf.mxu0
      %388 = vmatprep.mubr.bf16.mxu0 0
      %389 = vmatmul.mubr.bf16.gmra.mxu0 %v346
      %v390 = vpop.f32.mrf.mxu0
      %v391 = vadd.f32 0.0, %v390
      %v392 = vpop.f32.mrf.mxu0
      %v393 = vpop.f32.mrf.mxu0
      %v394 = vadd.f32 0.0, %v393
      %v395 = vpop.f32.mrf.mxu0
      %396 = vdwg.mxu0
      %vm397 = vcmask 191488
      %398 = vst.msk [vmem:[#allocation2] sm:$0xf] %vm397, 0
      %399 = vst.msk [vmem:[#allocation2 + $0x4] sm:$0xf] %vm397, 0
      %400 = vst.msk [vmem:[#allocation2 + $0x8] sm:$0xf] %vm397, 0
      %401 = vst.msk [vmem:[#allocation2 + $0xc] sm:$0xf] %vm397, 0
      %v402 = vpack.c.bf16 %v386, %v383
      %v403 = vpack.c.bf16 %v394, %v391
      %v406 = vunpack.c.l.b16 %v402
      %v407 = vunpack.c.h.b16 %v402
      %v408 = vunpack.c.l.b16 %v403
      %v409 = vunpack.c.h.b16 %v403
      %v410 = vpack.c.b16 %v406, %v406
      %v411 = vpack.c.b16 %v407, %v407
      %v412 = vpack.c.b16 %v408, %v408
      %v413 = vpack.c.b16 %v409, %v409
      %414 = vrot.lane.b32.xlu0 %v410, 4
      %v415 = vpop.permute.xlu0 %414
      %416 = vrot.lane.b32.xlu0 %v411, 4
      %v417 = vpop.permute.xlu0 %416
      %418 = vrot.lane.b32.xlu0 %v412, 4
      %v419 = vpop.permute.xlu0 %418
      %420 = vrot.lane.b32.xlu0 %v413, 4
      %v421 = vpop.permute.xlu0 %420
      %vm426 = vcmask 158752
      %427 = vst.msk [vmem:[#allocation2] sm:$0xf] %vm426, %v415
      %428 = vst.msk [vmem:[#allocation2 + $0x4] sm:$0xf] %vm426, %v417
      %429 = vst.msk [vmem:[#allocation2 + $0x8] sm:$0xf] %vm426, %v419
      %430 = vst.msk [vmem:[#allocation2 + $0xc] sm:$0xf] %vm426, %v421
      %v431 = vld [vmem:[#allocation2] sm:$0xf]
      %v432 = vld [vmem:[#allocation2 + $0x4] sm:$0xf]
      %v433 = vld [vmem:[#allocation2 + $0x8] sm:$0xf]
      %v434 = vld [vmem:[#allocation2 + $0xc] sm:$0xf]
      %vm435 = vcmask 125952
      %436 = vst.msk [vmem:[#allocation3] sm:$0xf] %vm435, %v431
      %437 = vst.msk [vmem:[#allocation3 + $0x4] sm:$0xf] %vm435, %v432
      %438 = vst.msk [vmem:[#allocation3 + $0x8] sm:$0xf] %vm435, %v433
      %439 = vst.msk [vmem:[#allocation3 + $0xc] sm:$0xf] %vm435, %v434
      %v440 = vld [vmem:[#allocation2] sm:$0xf]
      %v441 = vld [vmem:[#allocation2 + $0x4] sm:$0xf]
      %v442 = vld [vmem:[#allocation2 + $0x8] sm:$0xf]
      %v443 = vld [vmem:[#allocation2 + $0xc] sm:$0xf]
      %448 = vrot.lane.b32.xlu0 %v440, 127
      %v449 = vpop.permute.xlu0 %448
      %450 = vrot.lane.b32.xlu0 %v441, 127
      %v451 = vpop.permute.xlu0 %450
      %452 = vrot.lane.b32.xlu0 %v442, 127
      %v453 = vpop.permute.xlu0 %452
      %454 = vrot.lane.b32.xlu0 %v443, 127
      %v455 = vpop.permute.xlu0 %454
      %460 = vst.msk [vmem:[#allocation3 + $0x10] sm:$0xf] %vm435, %v449
      %461 = vst.msk [vmem:[#allocation3 + $0x14] sm:$0xf] %vm435, %v451
      %462 = vst.msk [vmem:[#allocation3 + $0x18] sm:$0xf] %vm435, %v453
      %463 = vst.msk [vmem:[#allocation3 + $0x1c] sm:$0xf] %vm435, %v455
      %v464 = vld [vmem:[#allocation2] sm:$0xf]
      %v465 = vld [vmem:[#allocation2 + $0x4] sm:$0xf]
      %v466 = vld [vmem:[#allocation2 + $0x8] sm:$0xf]
      %v467 = vld [vmem:[#allocation2 + $0xc] sm:$0xf]
      %472 = vrot.lane.b32.xlu0 %v464, 126
      %v473 = vpop.permute.xlu0 %472
      %474 = vrot.lane.b32.xlu0 %v465, 126
      %v475 = vpop.permute.xlu0 %474
      %476 = vrot.lane.b32.xlu0 %v466, 126
      %v477 = vpop.permute.xlu0 %476
      %478 = vrot.lane.b32.xlu0 %v467, 126
      %v479 = vpop.permute.xlu0 %478
      %484 = vst.msk [vmem:[#allocation3 + $0x20] sm:$0xf] %vm435, %v473
      %485 = vst.msk [vmem:[#allocation3 + $0x24] sm:$0xf] %vm435, %v475
      %486 = vst.msk [vmem:[#allocation3 + $0x28] sm:$0xf] %vm435, %v477
      %487 = vst.msk [vmem:[#allocation3 + $0x2c] sm:$0xf] %vm435, %v479
      %v488 = vld [vmem:[#allocation2] sm:$0xf]
      %v489 = vld [vmem:[#allocation2 + $0x4] sm:$0xf]
      %v490 = vld [vmem:[#allocation2 + $0x8] sm:$0xf]
      %v491 = vld [vmem:[#allocation2 + $0xc] sm:$0xf]
      %496 = vrot.lane.b32.xlu0 %v488, 125
      %v497 = vpop.permute.xlu0 %496
      %498 = vrot.lane.b32.xlu0 %v489, 125
      %v499 = vpop.permute.xlu0 %498
      %500 = vrot.lane.b32.xlu0 %v490, 125
      %v501 = vpop.permute.xlu0 %500
      %502 = vrot.lane.b32.xlu0 %v491, 125
      %v503 = vpop.permute.xlu0 %502
      %508 = vst.msk [vmem:[#allocation3 + $0x30] sm:$0xf] %vm435, %v497
      %509 = vst.msk [vmem:[#allocation3 + $0x34] sm:$0xf] %vm435, %v499
      %510 = vst.msk [vmem:[#allocation3 + $0x38] sm:$0xf] %vm435, %v501
      %511 = vst.msk [vmem:[#allocation3 + $0x3c] sm:$0xf] %vm435, %v503
      %v512 = vld [vmem:[#allocation2] sm:$0xf]
      %v513 = vld [vmem:[#allocation2 + $0x4] sm:$0xf]
      %v514 = vld [vmem:[#allocation2 + $0x8] sm:$0xf]
      %v515 = vld [vmem:[#allocation2 + $0xc] sm:$0xf]
      %520 = vrot.lane.b32.xlu0 %v512, 124
      %v521 = vpop.permute.xlu0 %520
      %522 = vrot.lane.b32.xlu0 %v513, 124
      %v523 = vpop.permute.xlu0 %522
      %524 = vrot.lane.b32.xlu0 %v514, 124
      %v525 = vpop.permute.xlu0 %524
      %526 = vrot.lane.b32.xlu0 %v515, 124
      %v527 = vpop.permute.xlu0 %526
      %532 = vst.msk [vmem:[#allocation3 + $0x40] sm:$0xf] %vm435, %v521
      %533 = vst.msk [vmem:[#allocation3 + $0x44] sm:$0xf] %vm435, %v523
      %534 = vst.msk [vmem:[#allocation3 + $0x48] sm:$0xf] %vm435, %v525
      %535 = vst.msk [vmem:[#allocation3 + $0x4c] sm:$0xf] %vm435, %v527
      %v536 = vld [vmem:[#allocation2] sm:$0xf]
      %v537 = vld [vmem:[#allocation2 + $0x4] sm:$0xf]
      %v538 = vld [vmem:[#allocation2 + $0x8] sm:$0xf]
      %v539 = vld [vmem:[#allocation2 + $0xc] sm:$0xf]
      %544 = vrot.lane.b32.xlu0 %v536, 123
      %v545 = vpop.permute.xlu0 %544
      %546 = vrot.lane.b32.xlu0 %v537, 123
      %v547 = vpop.permute.xlu0 %546
      %548 = vrot.lane.b32.xlu0 %v538, 123
      %v549 = vpop.permute.xlu0 %548
      %550 = vrot.lane.b32.xlu0 %v539, 123
      %v551 = vpop.permute.xlu0 %550
      %556 = vst.msk [vmem:[#allocation3 + $0x50] sm:$0xf] %vm435, %v545
      %557 = vst.msk [vmem:[#allocation3 + $0x54] sm:$0xf] %vm435, %v547
      %558 = vst.msk [vmem:[#allocation3 + $0x58] sm:$0xf] %vm435, %v549
      %559 = vst.msk [vmem:[#allocation3 + $0x5c] sm:$0xf] %vm435, %v551
      %v560 = vld [vmem:[#allocation2] sm:$0xf]
      %v561 = vld [vmem:[#allocation2 + $0x4] sm:$0xf]
      %v562 = vld [vmem:[#allocation2 + $0x8] sm:$0xf]
      %v563 = vld [vmem:[#allocation2 + $0xc] sm:$0xf]
      %568 = vrot.lane.b32.xlu0 %v560, 122
      %v569 = vpop.permute.xlu0 %568
      %570 = vrot.lane.b32.xlu0 %v561, 122
      %v571 = vpop.permute.xlu0 %570
      %572 = vrot.lane.b32.xlu0 %v562, 122
      %v573 = vpop.permute.xlu0 %572
      %574 = vrot.lane.b32.xlu0 %v563, 122
      %v575 = vpop.permute.xlu0 %574
      %580 = vst.msk [vmem:[#allocation3 + $0x60] sm:$0xf] %vm435, %v569
      %581 = vst.msk [vmem:[#allocation3 + $0x64] sm:$0xf] %vm435, %v571
      %582 = vst.msk [vmem:[#allocation3 + $0x68] sm:$0xf] %vm435, %v573
      %583 = vst.msk [vmem:[#allocation3 + $0x6c] sm:$0xf] %vm435, %v575
      %v584 = vld [vmem:[#allocation2] sm:$0xf]
      %v585 = vld [vmem:[#allocation2 + $0x4] sm:$0xf]
      %v586 = vld [vmem:[#allocation2 + $0x8] sm:$0xf]
      %v587 = vld [vmem:[#allocation2 + $0xc] sm:$0xf]
      %592 = vrot.lane.b32.xlu0 %v584, 121
      %v593 = vpop.permute.xlu0 %592
      %594 = vrot.lane.b32.xlu0 %v585, 121
      %v595 = vpop.permute.xlu0 %594
      %596 = vrot.lane.b32.xlu0 %v586, 121
      %v597 = vpop.permute.xlu0 %596
      %598 = vrot.lane.b32.xlu0 %v587, 121
      %v599 = vpop.permute.xlu0 %598
      %604 = vst.msk [vmem:[#allocation3 + $0x70] sm:$0xf] %vm435, %v593
      %605 = vst.msk [vmem:[#allocation3 + $0x74] sm:$0xf] %vm435, %v595
      %606 = vst.msk [vmem:[#allocation3 + $0x78] sm:$0xf] %vm435, %v597
      %607 = vst.msk [vmem:[#allocation3 + $0x7c] sm:$0xf] %vm435, %v599
      %v608 = vld [vmem:[#allocation2] sm:$0xf]
      %v609 = vld [vmem:[#allocation2 + $0x4] sm:$0xf]
      %v610 = vld [vmem:[#allocation2 + $0x8] sm:$0xf]
      %v611 = vld [vmem:[#allocation2 + $0xc] sm:$0xf]
      %616 = vrot.lane.b32.xlu0 %v608, 120
      %v617 = vpop.permute.xlu0 %616
      %618 = vrot.lane.b32.xlu0 %v609, 120
      %v619 = vpop.permute.xlu0 %618
      %620 = vrot.lane.b32.xlu0 %v610, 120
      %v621 = vpop.permute.xlu0 %620
      %622 = vrot.lane.b32.xlu0 %v611, 120
      %v623 = vpop.permute.xlu0 %622
      %628 = vst.msk [vmem:[#allocation3 + $0x80] sm:$0xf] %vm435, %v617
      %629 = vst.msk [vmem:[#allocation3 + $0x84] sm:$0xf] %vm435, %v619
      %630 = vst.msk [vmem:[#allocation3 + $0x88] sm:$0xf] %vm435, %v621
      %631 = vst.msk [vmem:[#allocation3 + $0x8c] sm:$0xf] %vm435, %v623
      %v632 = vld [vmem:[%s2] sm:$0xff]
      %v633 = vld [vmem:[%s2 + $0x8] sm:$0xf]
      %v634 = vld [vmem:[%s2 + $0xc] sm:$0xff]
      %v635 = vld [vmem:[%s2 + $0x14] sm:$0xf]
      %v636 = vld [vmem:[%s2 + $0x18] sm:$0xff]
      %v637 = vld [vmem:[%s2 + $0x20] sm:$0xf]
      %v638 = vld [vmem:[%s2 + $0x24] sm:$0xff]
      %v639 = vld [vmem:[%s2 + $0x2c] sm:$0xf]
      %v640 = vld [vmem:[#allocation3] sm:$0xf]
      %v641 = vld [vmem:[#allocation3 + $0x4] sm:$0xf]
      %v642 = vld [vmem:[#allocation3 + $0x8] sm:$0xf]
      %v643 = vld [vmem:[#allocation3 + $0xc] sm:$0xf]
      %v644 = vld [vmem:[#allocation3 + $0x10] sm:$0xf]
      %v645 = vld [vmem:[#allocation3 + $0x14] sm:$0xf]
      %v646 = vld [vmem:[#allocation3 + $0x18] sm:$0xf]
      %v647 = vld [vmem:[#allocation3 + $0x1c] sm:$0xf]
      %v648 = vld [vmem:[#allocation3 + $0x20] sm:$0xf]
      %v649 = vld [vmem:[#allocation3 + $0x24] sm:$0xf]
      %v650 = vld [vmem:[#allocation3 + $0x28] sm:$0xf]
      %v651 = vld [vmem:[#allocation3 + $0x2c] sm:$0xf]
      %v652 = vld [vmem:[#allocation3 + $0x30] sm:$0xf]
      %v653 = vld [vmem:[#allocation3 + $0x34] sm:$0xf]
      %v654 = vld [vmem:[#allocation3 + $0x38] sm:$0xf]
      %v655 = vld [vmem:[#allocation3 + $0x3c] sm:$0xf]
      %v656 = vld [vmem:[#allocation3 + $0x40] sm:$0xf]
      %v657 = vld [vmem:[#allocation3 + $0x44] sm:$0xf]
      %v658 = vld [vmem:[#allocation3 + $0x48] sm:$0xf]
      %v659 = vld [vmem:[#allocation3 + $0x4c] sm:$0xf]
      %v660 = vld [vmem:[#allocation3 + $0x50] sm:$0xf]
      %v661 = vld [vmem:[#allocation3 + $0x54] sm:$0xf]
      %v662 = vld [vmem:[#allocation3 + $0x58] sm:$0xf]
      %v663 = vld [vmem:[#allocation3 + $0x5c] sm:$0xf]
      %v664 = vld [vmem:[#allocation3 + $0x60] sm:$0xf]
      %v665 = vld [vmem:[#allocation3 + $0x64] sm:$0xf]
      %v666 = vld [vmem:[#allocation3 + $0x68] sm:$0xf]
      %v667 = vld [vmem:[#allocation3 + $0x6c] sm:$0xf]
      %v668 = vld [vmem:[#allocation3 + $0x70] sm:$0xf]
      %v669 = vld [vmem:[#allocation3 + $0x74] sm:$0xf]
      %v670 = vld [vmem:[#allocation3 + $0x78] sm:$0xf]
      %v671 = vld [vmem:[#allocation3 + $0x7c] sm:$0xf]
      %v672 = vld [vmem:[#allocation3 + $0x80] sm:$0xf]
      %v673 = vld [vmem:[#allocation3 + $0x84] sm:$0xf]
      %v674 = vld [vmem:[#allocation3 + $0x88] sm:$0xf]
      %v675 = vld [vmem:[#allocation3 + $0x8c] sm:$0xf]
      %v684 = vunpack.c.l.b16 %v632
      %v685 = vunpack.c.h.b16 %v632
      %v686 = vunpack.c.l.b16 %v633
      %v687 = vunpack.c.l.b16 %v634
      %v688 = vunpack.c.h.b16 %v634
      %v689 = vunpack.c.l.b16 %v635
      %v690 = vunpack.c.l.b16 %v636
      %v691 = vunpack.c.h.b16 %v636
      %v692 = vunpack.c.l.b16 %v637
      %v693 = vunpack.c.l.b16 %v638
      %v694 = vunpack.c.h.b16 %v638
      %v695 = vunpack.c.l.b16 %v639
      %v696 = vpack.c.b16 %v687, %v684
      %v697 = vpack.c.b16 %v688, %v685
      %v698 = vpack.c.b16 %v689, %v686
      %v699 = vpack.c.b16 %v693, %v690
      %v700 = vpack.c.b16 %v694, %v691
      %v701 = vpack.c.b16 %v695, %v692
      %v742 = vunpack.c.l.b16 %v640
      %v743 = vunpack.c.l.b16 %v641
      %v744 = vunpack.c.l.b16 %v642
      %v745 = vunpack.c.l.b16 %v643
      %v746 = vunpack.c.l.b16 %v644
      %v747 = vunpack.c.l.b16 %v645
      %v748 = vunpack.c.l.b16 %v646
      %v749 = vunpack.c.l.b16 %v647
      %v750 = vunpack.c.l.b16 %v648
      %v751 = vunpack.c.l.b16 %v649
      %v752 = vunpack.c.l.b16 %v650
      %v753 = vunpack.c.l.b16 %v651
      %v754 = vunpack.c.l.b16 %v652
      %v755 = vunpack.c.l.b16 %v653
      %v756 = vunpack.c.l.b16 %v654
      %v757 = vunpack.c.l.b16 %v655
      %v758 = vunpack.c.l.b16 %v656
      %v759 = vunpack.c.l.b16 %v657
      %v760 = vunpack.c.l.b16 %v658
      %v761 = vunpack.c.l.b16 %v659
      %v762 = vunpack.c.l.b16 %v660
      %v763 = vunpack.c.l.b16 %v661
      %v764 = vunpack.c.l.b16 %v662
      %v765 = vunpack.c.l.b16 %v663
      %v766 = vunpack.c.l.b16 %v664
      %v767 = vunpack.c.l.b16 %v665
      %v768 = vunpack.c.l.b16 %v666
      %v769 = vunpack.c.l.b16 %v667
      %v770 = vunpack.c.l.b16 %v668
      %v771 = vunpack.c.l.b16 %v669
      %v772 = vunpack.c.l.b16 %v670
      %v773 = vunpack.c.l.b16 %v671
      %v774 = vunpack.c.l.b16 %v672
      %v775 = vunpack.c.l.b16 %v673
      %v776 = vunpack.c.l.b16 %v674
      %v777 = vunpack.c.l.b16 %v675
      %v778 = vpack.c.b16 %v743, %v742
      %v779 = vpack.c.b16 %v745, %v744
      %v780 = vpack.c.b16 %v747, %v746
      %v781 = vpack.c.b16 %v749, %v748
      %v782 = vpack.c.b16 %v751, %v750
      %v783 = vpack.c.b16 %v753, %v752
      %v784 = vpack.c.b16 %v755, %v754
      %v785 = vpack.c.b16 %v757, %v756
      %v786 = vpack.c.b16 %v759, %v758
      %v787 = vpack.c.b16 %v761, %v760
      %v788 = vpack.c.b16 %v763, %v762
      %v789 = vpack.c.b16 %v765, %v764
      %v790 = vpack.c.b16 %v767, %v766
      %v791 = vpack.c.b16 %v769, %v768
      %v792 = vpack.c.b16 %v771, %v770
      %v793 = vpack.c.b16 %v773, %v772
      %v794 = vpack.c.b16 %v775, %v774
      %v795 = vpack.c.b16 %v777, %v776
      %vm814 = vcmask 261120
      %v816 = vsel %vm814, %v698, 0
      %v819 = vsel %vm814, %v701, 0
      %821 = vmatprep.subr.bf16.mxu0 0
      %822 = vmatpush1.bf16.msra.mxu0 %v785
      %823 = vmatprep.subr.bf16.mxu0 0
      %824 = vmatpush1.bf16.msra.mxu0 %v784
      %825 = vmatprep.subr.bf16.mxu0 0
      %826 = vmatpush1.bf16.msra.mxu0 %v783
      %827 = vmatprep.subr.bf16.mxu0 0
      %828 = vmatpush1.bf16.msra.mxu0 %v782
      %829 = vmatprep.subr.bf16.mxu0 0
      %830 = vmatpush1.bf16.msra.mxu0 %v781
      %831 = vmatprep.subr.bf16.mxu0 0
      %832 = vmatpush1.bf16.msra.mxu0 %v780
      %833 = vmatprep.subr.bf16.mxu0 0
      %834 = vmatpush1.bf16.msra.mxu0 %v779
      %835 = vmatprep.subr.bf16.mxu0 0
      %836 = vmatpush1.bf16.msra.mxu0 %v778
      %837 = vmatprep.subr.bf16.mxu0 0
      %838 = vmatpush2.bf16.msra.mxu0 %v793
      %839 = vmatprep.subr.bf16.mxu0 0
      %840 = vmatpush2.bf16.msra.mxu0 %v792
      %841 = vmatprep.subr.bf16.mxu0 0
      %842 = vmatpush2.bf16.msra.mxu0 %v791
      %843 = vmatprep.subr.bf16.mxu0 0
      %844 = vmatpush2.bf16.msra.mxu0 %v790
      %845 = vmatprep.subr.bf16.mxu0 0
      %846 = vmatpush2.bf16.msra.mxu0 %v789
      %847 = vmatprep.subr.bf16.mxu0 0
      %848 = vmatpush2.bf16.msra.mxu0 %v788
      %849 = vmatprep.subr.bf16.mxu0 0
      %850 = vmatpush2.bf16.msra.mxu0 %v787
      %851 = vmatprep.subr.bf16.mxu0 0
      %852 = vmatpush2.bf16.msra.mxu0 %v786
      %853 = vmatprep.mubr.bf16.mxu0 %v697
      %854 = vmatmul.mubr.bf16.gmra.mxu0 %v696
      %v855 = vpop.f32.mrf.mxu0
      %v856 = vadd.f32 0.0, %v855
      %v857 = vpop.f32.mrf.mxu0
      %v858 = vpop.f32.mrf.mxu0
      %v859 = vadd.f32 0.0, %v858
      %v860 = vpop.f32.mrf.mxu0
      %861 = vmatprep.mubr.bf16.mxu0 %v700
      %862 = vmatmul.mubr.bf16.gmra.mxu0 %v699
      %v863 = vpop.f32.mrf.mxu0
      %v864 = vadd.f32 0.0, %v863
      %v865 = vpop.f32.mrf.mxu0
      %v866 = vpop.f32.mrf.mxu0
      %v867 = vadd.f32 0.0, %v866
      %v868 = vpop.f32.mrf.mxu0
      %869 = vdwg.mxu0
      %870 = vmatprep.subr.bf16.mxu0 0
      %871 = vmatpush1.bf16.msra.mxu0 0
      %872 = vmatprep.subr.bf16.mxu0 0
      %873 = vmatpush1.bf16.msra.mxu0 0
      %874 = vmatprep.subr.bf16.mxu0 0
      %875 = vmatpush1.bf16.msra.mxu0 0
      %876 = vmatprep.subr.bf16.mxu0 0
      %877 = vmatpush1.bf16.msra.mxu0 0
      %878 = vmatprep.subr.bf16.mxu0 0
      %879 = vmatpush1.bf16.msra.mxu0 0
      %880 = vmatprep.subr.bf16.mxu0 0
      %881 = vmatpush1.bf16.msra.mxu0 0
      %882 = vmatprep.subr.bf16.mxu0 0
      %883 = vmatpush1.bf16.msra.mxu0 %v795
      %884 = vmatprep.subr.bf16.mxu0 0
      %885 = vmatpush1.bf16.msra.mxu0 %v794
      %886 = vmatprep.subr.bf16.mxu0 0
      %887 = vmatpush2.bf16.msra.mxu0 0
      %888 = vmatprep.subr.bf16.mxu0 0
      %889 = vmatpush2.bf16.msra.mxu0 0
      %890 = vmatprep.subr.bf16.mxu0 0
      %891 = vmatpush2.bf16.msra.mxu0 0
      %892 = vmatprep.subr.bf16.mxu0 0
      %893 = vmatpush2.bf16.msra.mxu0 0
      %894 = vmatprep.subr.bf16.mxu0 0
      %895 = vmatpush2.bf16.msra.mxu0 0
      %896 = vmatprep.subr.bf16.mxu0 0
      %897 = vmatpush2.bf16.msra.mxu0 0
      %898 = vmatprep.subr.bf16.mxu0 0
      %899 = vmatpush2.bf16.msra.mxu0 0
      %900 = vmatprep.subr.bf16.mxu0 0
      %901 = vmatpush2.bf16.msra.mxu0 0
      %902 = vmatprep.mubr.bf16.mxu0 0
      %903 = vmatmul.mubr.bf16.gmra.mxu0 %v816
      %v904 = vpop.f32.mrf.mxu0
      %v905 = vadd.f32 %v856, %v904
      %v906 = vpop.f32.mrf.mxu0
      %v907 = vpop.f32.mrf.mxu0
      %v908 = vadd.f32 %v859, %v907
      %v909 = vpop.f32.mrf.mxu0
      %910 = vmatprep.mubr.bf16.mxu0 0
      %911 = vmatmul.mubr.bf16.gmra.mxu0 %v819
      %v912 = vpop.f32.mrf.mxu0
      %v913 = vadd.f32 %v864, %v912
      %v914 = vpop.f32.mrf.mxu0
      %v915 = vpop.f32.mrf.mxu0
      %v916 = vadd.f32 %v867, %v915
      %v917 = vpop.f32.mrf.mxu0
      %918 = vdwg.mxu0
      %v919 = vld [vmem:[%s3] sm:$0xff]
      %v920 = vld [vmem:[%s3 + $0x8] sm:$0xff]
      %v921 = vld [vmem:[%s3 + $0x10] sm:$0xff]
      %v922 = vld [vmem:[%s3 + $0x18] sm:$0xff]
      %924 = vset.pattern.permute.xlu0 0
      %925 = vperm.xlu0 %924, %v919
      %v926 = vpop.permute.xlu0 %925
      %929 = vset.pattern.permute.xlu0 0
      %930 = vperm.xlu0 %929, %v920
      %v931 = vpop.permute.xlu0 %930
      %934 = vset.pattern.permute.xlu0 0
      %935 = vperm.xlu0 %934, %v921
      %v936 = vpop.permute.xlu0 %935
      %939 = vset.pattern.permute.xlu0 0
      %940 = vperm.xlu0 %939, %v922
      %v941 = vpop.permute.xlu0 %940
      %v943 = vmul.f32 %v905, %v926
      %v944 = vmul.f32 %v908, %v931
      %v945 = vmul.f32 %v913, %v936
      %v946 = vmul.f32 %v916, %v941
      %v947 = vld [vmem:[%s4] sm:$0xff]
      %v948 = vld [vmem:[%s4 + $0x8] sm:$0xff]
      %v949 = vld [vmem:[%s4 + $0x10] sm:$0xff]
      %v950 = vld [vmem:[%s4 + $0x18] sm:$0xff]
      %952 = vset.pattern.permute.xlu0 0
      %953 = vperm.xlu0 %952, %v947
      %v954 = vpop.permute.xlu0 %953
      %957 = vset.pattern.permute.xlu0 0
      %958 = vperm.xlu0 %957, %v948
      %v959 = vpop.permute.xlu0 %958
      %962 = vset.pattern.permute.xlu0 0
      %963 = vperm.xlu0 %962, %v949
      %v964 = vpop.permute.xlu0 %963
      %967 = vset.pattern.permute.xlu0 0
      %968 = vperm.xlu0 %967, %v950
      %v969 = vpop.permute.xlu0 %968
      %v971 = vadd.f32 %v943, %v954
      %v972 = vadd.f32 %v944, %v959
      %v973 = vadd.f32 %v945, %v964
      %v974 = vadd.f32 %v946, %v969
      %v975 = vmax.f32 %v971, 0.0
      %v976 = vmax.f32 %v972, 0.0
      %v977 = vmax.f32 %v973, 0.0
      %v978 = vmax.f32 %v974, 0.0
      %979 = vst.msk [vmem:[#allocation2] sm:$0xf] %vm397, 0
      %980 = vst.msk [vmem:[#allocation2 + $0x4] sm:$0xf] %vm397, 0
      %981 = vst.msk [vmem:[#allocation2 + $0x8] sm:$0xf] %vm397, 0
      %982 = vst.msk [vmem:[#allocation2 + $0xc] sm:$0xf] %vm397, 0
      %v983 = vpack.c.bf16 %v976, %v975
      %v984 = vpack.c.bf16 %v978, %v977
      %v987 = vunpack.c.l.b16 %v983
      %v988 = vunpack.c.h.b16 %v983
      %v989 = vunpack.c.l.b16 %v984
      %v990 = vunpack.c.h.b16 %v984
      %v991 = vpack.c.b16 %v987, %v987
      %v992 = vpack.c.b16 %v988, %v988
      %v993 = vpack.c.b16 %v989, %v989
      %v994 = vpack.c.b16 %v990, %v990
      %995 = vrot.lane.b32.xlu0 %v991, 4
      %v996 = vpop.permute.xlu0 %995
      %997 = vrot.lane.b32.xlu0 %v992, 4
      %v998 = vpop.permute.xlu0 %997
      %999 = vrot.lane.b32.xlu0 %v993, 4
      %v1000 = vpop.permute.xlu0 %999
      %1001 = vrot.lane.b32.xlu0 %v994, 4
      %v1002 = vpop.permute.xlu0 %1001
      %1007 = vst.msk [vmem:[#allocation2] sm:$0xf] %vm426, %v996
      %1008 = vst.msk [vmem:[#allocation2 + $0x4] sm:$0xf] %vm426, %v998
      %1009 = vst.msk [vmem:[#allocation2 + $0x8] sm:$0xf] %vm426, %v1000
      %1010 = vst.msk [vmem:[#allocation2 + $0xc] sm:$0xf] %vm426, %v1002
      %v1011 = vld [vmem:[#allocation2] sm:$0xf]
      %v1012 = vld [vmem:[#allocation2 + $0x4] sm:$0xf]
      %v1013 = vld [vmem:[#allocation2 + $0x8] sm:$0xf]
      %v1014 = vld [vmem:[#allocation2 + $0xc] sm:$0xf]
      %1015 = vst.msk [vmem:[#allocation3] sm:$0xf] %vm435, %v1011
      %1016 = vst.msk [vmem:[#allocation3 + $0x4] sm:$0xf] %vm435, %v1012
      %1017 = vst.msk [vmem:[#allocation3 + $0x8] sm:$0xf] %vm435, %v1013
      %1018 = vst.msk [vmem:[#allocation3 + $0xc] sm:$0xf] %vm435, %v1014
      %v1019 = vld [vmem:[#allocation2] sm:$0xf]
      %v1020 = vld [vmem:[#allocation2 + $0x4] sm:$0xf]
      %v1021 = vld [vmem:[#allocation2 + $0x8] sm:$0xf]
      %v1022 = vld [vmem:[#allocation2 + $0xc] sm:$0xf]
      %1027 = vrot.lane.b32.xlu0 %v1019, 127
      %v1028 = vpop.permute.xlu0 %1027
      %1029 = vrot.lane.b32.xlu0 %v1020, 127
      %v1030 = vpop.permute.xlu0 %1029
      %1031 = vrot.lane.b32.xlu0 %v1021, 127
      %v1032 = vpop.permute.xlu0 %1031
      %1033 = vrot.lane.b32.xlu0 %v1022, 127
      %v1034 = vpop.permute.xlu0 %1033
      %1039 = vst.msk [vmem:[#allocation3 + $0x10] sm:$0xf] %vm435, %v1028
      %1040 = vst.msk [vmem:[#allocation3 + $0x14] sm:$0xf] %vm435, %v1030
      %1041 = vst.msk [vmem:[#allocation3 + $0x18] sm:$0xf] %vm435, %v1032
      %1042 = vst.msk [vmem:[#allocation3 + $0x1c] sm:$0xf] %vm435, %v1034
      %v1043 = vld [vmem:[#allocation2] sm:$0xf]
      %v1044 = vld [vmem:[#allocation2 + $0x4] sm:$0xf]
      %v1045 = vld [vmem:[#allocation2 + $0x8] sm:$0xf]
      %v1046 = vld [vmem:[#allocation2 + $0xc] sm:$0xf]
      %1051 = vrot.lane.b32.xlu0 %v1043, 126
      %v1052 = vpop.permute.xlu0 %1051
      %1053 = vrot.lane.b32.xlu0 %v1044, 126
      %v1054 = vpop.permute.xlu0 %1053
      %1055 = vrot.lane.b32.xlu0 %v1045, 126
      %v1056 = vpop.permute.xlu0 %1055
      %1057 = vrot.lane.b32.xlu0 %v1046, 126
      %v1058 = vpop.permute.xlu0 %1057
      %1063 = vst.msk [vmem:[#allocation3 + $0x20] sm:$0xf] %vm435, %v1052
      %1064 = vst.msk [vmem:[#allocation3 + $0x24] sm:$0xf] %vm435, %v1054
      %1065 = vst.msk [vmem:[#allocation3 + $0x28] sm:$0xf] %vm435, %v1056
      %1066 = vst.msk [vmem:[#allocation3 + $0x2c] sm:$0xf] %vm435, %v1058
      %v1067 = vld [vmem:[#allocation2] sm:$0xf]
      %v1068 = vld [vmem:[#allocation2 + $0x4] sm:$0xf]
      %v1069 = vld [vmem:[#allocation2 + $0x8] sm:$0xf]
      %v1070 = vld [vmem:[#allocation2 + $0xc] sm:$0xf]
      %1075 = vrot.lane.b32.xlu0 %v1067, 125
      %v1076 = vpop.permute.xlu0 %1075
      %1077 = vrot.lane.b32.xlu0 %v1068, 125
      %v1078 = vpop.permute.xlu0 %1077
      %1079 = vrot.lane.b32.xlu0 %v1069, 125
      %v1080 = vpop.permute.xlu0 %1079
      %1081 = vrot.lane.b32.xlu0 %v1070, 125
      %v1082 = vpop.permute.xlu0 %1081
      %1087 = vst.msk [vmem:[#allocation3 + $0x30] sm:$0xf] %vm435, %v1076
      %1088 = vst.msk [vmem:[#allocation3 + $0x34] sm:$0xf] %vm435, %v1078
      %1089 = vst.msk [vmem:[#allocation3 + $0x38] sm:$0xf] %vm435, %v1080
      %1090 = vst.msk [vmem:[#allocation3 + $0x3c] sm:$0xf] %vm435, %v1082
      %v1091 = vld [vmem:[#allocation2] sm:$0xf]
      %v1092 = vld [vmem:[#allocation2 + $0x4] sm:$0xf]
      %v1093 = vld [vmem:[#allocation2 + $0x8] sm:$0xf]
      %v1094 = vld [vmem:[#allocation2 + $0xc] sm:$0xf]
      %1099 = vrot.lane.b32.xlu0 %v1091, 124
      %v1100 = vpop.permute.xlu0 %1099
      %1101 = vrot.lane.b32.xlu0 %v1092, 124
      %v1102 = vpop.permute.xlu0 %1101
      %1103 = vrot.lane.b32.xlu0 %v1093, 124
      %v1104 = vpop.permute.xlu0 %1103
      %1105 = vrot.lane.b32.xlu0 %v1094, 124
      %v1106 = vpop.permute.xlu0 %1105
      %1111 = vst.msk [vmem:[#allocation3 + $0x40] sm:$0xf] %vm435, %v1100
      %1112 = vst.msk [vmem:[#allocation3 + $0x44] sm:$0xf] %vm435, %v1102
      %1113 = vst.msk [vmem:[#allocation3 + $0x48] sm:$0xf] %vm435, %v1104
      %1114 = vst.msk [vmem:[#allocation3 + $0x4c] sm:$0xf] %vm435, %v1106
      %v1115 = vld [vmem:[#allocation2] sm:$0xf]
      %v1116 = vld [vmem:[#allocation2 + $0x4] sm:$0xf]
      %v1117 = vld [vmem:[#allocation2 + $0x8] sm:$0xf]
      %v1118 = vld [vmem:[#allocation2 + $0xc] sm:$0xf]
      %1123 = vrot.lane.b32.xlu0 %v1115, 123
      %v1124 = vpop.permute.xlu0 %1123
      %1125 = vrot.lane.b32.xlu0 %v1116, 123
      %v1126 = vpop.permute.xlu0 %1125
      %1127 = vrot.lane.b32.xlu0 %v1117, 123
      %v1128 = vpop.permute.xlu0 %1127
      %1129 = vrot.lane.b32.xlu0 %v1118, 123
      %v1130 = vpop.permute.xlu0 %1129
      %1135 = vst.msk [vmem:[#allocation3 + $0x50] sm:$0xf] %vm435, %v1124
      %1136 = vst.msk [vmem:[#allocation3 + $0x54] sm:$0xf] %vm435, %v1126
      %1137 = vst.msk [vmem:[#allocation3 + $0x58] sm:$0xf] %vm435, %v1128
      %1138 = vst.msk [vmem:[#allocation3 + $0x5c] sm:$0xf] %vm435, %v1130
      %v1139 = vld [vmem:[#allocation2] sm:$0xf]
      %v1140 = vld [vmem:[#allocation2 + $0x4] sm:$0xf]
      %v1141 = vld [vmem:[#allocation2 + $0x8] sm:$0xf]
      %v1142 = vld [vmem:[#allocation2 + $0xc] sm:$0xf]
      %1147 = vrot.lane.b32.xlu0 %v1139, 122
      %v1148 = vpop.permute.xlu0 %1147
      %1149 = vrot.lane.b32.xlu0 %v1140, 122
      %v1150 = vpop.permute.xlu0 %1149
      %1151 = vrot.lane.b32.xlu0 %v1141, 122
      %v1152 = vpop.permute.xlu0 %1151
      %1153 = vrot.lane.b32.xlu0 %v1142, 122
      %v1154 = vpop.permute.xlu0 %1153
      %1159 = vst.msk [vmem:[#allocation3 + $0x60] sm:$0xf] %vm435, %v1148
      %1160 = vst.msk [vmem:[#allocation3 + $0x64] sm:$0xf] %vm435, %v1150
      %1161 = vst.msk [vmem:[#allocation3 + $0x68] sm:$0xf] %vm435, %v1152
      %1162 = vst.msk [vmem:[#allocation3 + $0x6c] sm:$0xf] %vm435, %v1154
      %v1163 = vld [vmem:[#allocation2] sm:$0xf]
      %v1164 = vld [vmem:[#allocation2 + $0x4] sm:$0xf]
      %v1165 = vld [vmem:[#allocation2 + $0x8] sm:$0xf]
      %v1166 = vld [vmem:[#allocation2 + $0xc] sm:$0xf]
      %1171 = vrot.lane.b32.xlu0 %v1163, 121
      %v1172 = vpop.permute.xlu0 %1171
      %1173 = vrot.lane.b32.xlu0 %v1164, 121
      %v1174 = vpop.permute.xlu0 %1173
      %1175 = vrot.lane.b32.xlu0 %v1165, 121
      %v1176 = vpop.permute.xlu0 %1175
      %1177 = vrot.lane.b32.xlu0 %v1166, 121
      %v1178 = vpop.permute.xlu0 %1177
      %1183 = vst.msk [vmem:[#allocation3 + $0x70] sm:$0xf] %vm435, %v1172
      %1184 = vst.msk [vmem:[#allocation3 + $0x74] sm:$0xf] %vm435, %v1174
      %1185 = vst.msk [vmem:[#allocation3 + $0x78] sm:$0xf] %vm435, %v1176
      %1186 = vst.msk [vmem:[#allocation3 + $0x7c] sm:$0xf] %vm435, %v1178
      %v1187 = vld [vmem:[#allocation2] sm:$0xf]
      %v1188 = vld [vmem:[#allocation2 + $0x4] sm:$0xf]
      %v1189 = vld [vmem:[#allocation2 + $0x8] sm:$0xf]
      %v1190 = vld [vmem:[#allocation2 + $0xc] sm:$0xf]
      %1195 = vrot.lane.b32.xlu0 %v1187, 120
      %v1196 = vpop.permute.xlu0 %1195
      %1197 = vrot.lane.b32.xlu0 %v1188, 120
      %v1198 = vpop.permute.xlu0 %1197
      %1199 = vrot.lane.b32.xlu0 %v1189, 120
      %v1200 = vpop.permute.xlu0 %1199
      %1201 = vrot.lane.b32.xlu0 %v1190, 120
      %v1202 = vpop.permute.xlu0 %1201
      %1207 = vst.msk [vmem:[#allocation3 + $0x80] sm:$0xf] %vm435, %v1196
      %1208 = vst.msk [vmem:[#allocation3 + $0x84] sm:$0xf] %vm435, %v1198
      %1209 = vst.msk [vmem:[#allocation3 + $0x88] sm:$0xf] %vm435, %v1200
      %1210 = vst.msk [vmem:[#allocation3 + $0x8c] sm:$0xf] %vm435, %v1202
      %v1211 = vld [vmem:[%s5] sm:$0xff]
      %v1212 = vld [vmem:[%s5 + $0x8] sm:$0xf]
      %v1213 = vld [vmem:[%s5 + $0xc] sm:$0xff]
      %v1214 = vld [vmem:[%s5 + $0x14] sm:$0xf]
      %v1215 = vld [vmem:[%s5 + $0x18] sm:$0xff]
      %v1216 = vld [vmem:[%s5 + $0x20] sm:$0xf]
      %v1217 = vld [vmem:[%s5 + $0x24] sm:$0xff]
      %v1218 = vld [vmem:[%s5 + $0x2c] sm:$0xf]
      %v1219 = vld [vmem:[#allocation3] sm:$0xf]
      %v1220 = vld [vmem:[#allocation3 + $0x4] sm:$0xf]
      %v1221 = vld [vmem:[#allocation3 + $0x8] sm:$0xf]
      %v1222 = vld [vmem:[#allocation3 + $0xc] sm:$0xf]
      %v1223 = vld [vmem:[#allocation3 + $0x10] sm:$0xf]
      %v1224 = vld [vmem:[#allocation3 + $0x14] sm:$0xf]
      %v1225 = vld [vmem:[#allocation3 + $0x18] sm:$0xf]
      %v1226 = vld [vmem:[#allocation3 + $0x1c] sm:$0xf]
      %v1227 = vld [vmem:[#allocation3 + $0x20] sm:$0xf]
      %v1228 = vld [vmem:[#allocation3 + $0x24] sm:$0xf]
      %v1229 = vld [vmem:[#allocation3 + $0x28] sm:$0xf]
      %v1230 = vld [vmem:[#allocation3 + $0x2c] sm:$0xf]
      %v1231 = vld [vmem:[#allocation3 + $0x30] sm:$0xf]
      %v1232 = vld [vmem:[#allocation3 + $0x34] sm:$0xf]
      %v1233 = vld [vmem:[#allocation3 + $0x38] sm:$0xf]
      %v1234 = vld [vmem:[#allocation3 + $0x3c] sm:$0xf]
      %v1235 = vld [vmem:[#allocation3 + $0x40] sm:$0xf]
      %v1236 = vld [vmem:[#allocation3 + $0x44] sm:$0xf]
      %v1237 = vld [vmem:[#allocation3 + $0x48] sm:$0xf]
      %v1238 = vld [vmem:[#allocation3 + $0x4c] sm:$0xf]
      %v1239 = vld [vmem:[#allocation3 + $0x50] sm:$0xf]
      %v1240 = vld [vmem:[#allocation3 + $0x54] sm:$0xf]
      %v1241 = vld [vmem:[#allocation3 + $0x58] sm:$0xf]
      %v1242 = vld [vmem:[#allocation3 + $0x5c] sm:$0xf]
      %v1243 = vld [vmem:[#allocation3 + $0x60] sm:$0xf]
      %v1244 = vld [vmem:[#allocation3 + $0x64] sm:$0xf]
      %v1245 = vld [vmem:[#allocation3 + $0x68] sm:$0xf]
      %v1246 = vld [vmem:[#allocation3 + $0x6c] sm:$0xf]
      %v1247 = vld [vmem:[#allocation3 + $0x70] sm:$0xf]
      %v1248 = vld [vmem:[#allocation3 + $0x74] sm:$0xf]
      %v1249 = vld [vmem:[#allocation3 + $0x78] sm:$0xf]
      %v1250 = vld [vmem:[#allocation3 + $0x7c] sm:$0xf]
      %v1251 = vld [vmem:[#allocation3 + $0x80] sm:$0xf]
      %v1252 = vld [vmem:[#allocation3 + $0x84] sm:$0xf]
      %v1253 = vld [vmem:[#allocation3 + $0x88] sm:$0xf]
      %v1254 = vld [vmem:[#allocation3 + $0x8c] sm:$0xf]
      %v1263 = vunpack.c.l.b16 %v1211
      %v1264 = vunpack.c.h.b16 %v1211
      %v1265 = vunpack.c.l.b16 %v1212
      %v1266 = vunpack.c.l.b16 %v1213
      %v1267 = vunpack.c.h.b16 %v1213
      %v1268 = vunpack.c.l.b16 %v1214
      %v1269 = vunpack.c.l.b16 %v1215
      %v1270 = vunpack.c.h.b16 %v1215
      %v1271 = vunpack.c.l.b16 %v1216
      %v1272 = vunpack.c.l.b16 %v1217
      %v1273 = vunpack.c.h.b16 %v1217
      %v1274 = vunpack.c.l.b16 %v1218
      %v1275 = vpack.c.b16 %v1266, %v1263
      %v1276 = vpack.c.b16 %v1267, %v1264
      %v1277 = vpack.c.b16 %v1268, %v1265
      %v1278 = vpack.c.b16 %v1272, %v1269
      %v1279 = vpack.c.b16 %v1273, %v1270
      %v1280 = vpack.c.b16 %v1274, %v1271
      %v1321 = vunpack.c.l.b16 %v1219
      %v1322 = vunpack.c.l.b16 %v1220
      %v1323 = vunpack.c.l.b16 %v1221
      %v1324 = vunpack.c.l.b16 %v1222
      %v1325 = vunpack.c.l.b16 %v1223
      %v1326 = vunpack.c.l.b16 %v1224
      %v1327 = vunpack.c.l.b16 %v1225
      %v1328 = vunpack.c.l.b16 %v1226
      %v1329 = vunpack.c.l.b16 %v1227
      %v1330 = vunpack.c.l.b16 %v1228
      %v1331 = vunpack.c.l.b16 %v1229
      %v1332 = vunpack.c.l.b16 %v1230
      %v1333 = vunpack.c.l.b16 %v1231
      %v1334 = vunpack.c.l.b16 %v1232
      %v1335 = vunpack.c.l.b16 %v1233
      %v1336 = vunpack.c.l.b16 %v1234
      %v1337 = vunpack.c.l.b16 %v1235
      %v1338 = vunpack.c.l.b16 %v1236
      %v1339 = vunpack.c.l.b16 %v1237
      %v1340 = vunpack.c.l.b16 %v1238
      %v1341 = vunpack.c.l.b16 %v1239
      %v1342 = vunpack.c.l.b16 %v1240
      %v1343 = vunpack.c.l.b16 %v1241
      %v1344 = vunpack.c.l.b16 %v1242
      %v1345 = vunpack.c.l.b16 %v1243
      %v1346 = vunpack.c.l.b16 %v1244
      %v1347 = vunpack.c.l.b16 %v1245
      %v1348 = vunpack.c.l.b16 %v1246
      %v1349 = vunpack.c.l.b16 %v1247
      %v1350 = vunpack.c.l.b16 %v1248
      %v1351 = vunpack.c.l.b16 %v1249
      %v1352 = vunpack.c.l.b16 %v1250
      %v1353 = vunpack.c.l.b16 %v1251
      %v1354 = vunpack.c.l.b16 %v1252
      %v1355 = vunpack.c.l.b16 %v1253
      %v1356 = vunpack.c.l.b16 %v1254
      %v1357 = vpack.c.b16 %v1322, %v1321
      %v1358 = vpack.c.b16 %v1324, %v1323
      %v1359 = vpack.c.b16 %v1326, %v1325
      %v1360 = vpack.c.b16 %v1328, %v1327
      %v1361 = vpack.c.b16 %v1330, %v1329
      %v1362 = vpack.c.b16 %v1332, %v1331
      %v1363 = vpack.c.b16 %v1334, %v1333
      %v1364 = vpack.c.b16 %v1336, %v1335
      %v1365 = vpack.c.b16 %v1338, %v1337
      %v1366 = vpack.c.b16 %v1340, %v1339
      %v1367 = vpack.c.b16 %v1342, %v1341
      %v1368 = vpack.c.b16 %v1344, %v1343
      %v1369 = vpack.c.b16 %v1346, %v1345
      %v1370 = vpack.c.b16 %v1348, %v1347
      %v1371 = vpack.c.b16 %v1350, %v1349
      %v1372 = vpack.c.b16 %v1352, %v1351
      %v1373 = vpack.c.b16 %v1354, %v1353
      %v1374 = vpack.c.b16 %v1356, %v1355
      %v1394 = vsel %vm814, %v1277, 0
      %v1397 = vsel %vm814, %v1280, 0
      %1399 = vmatprep.subr.bf16.mxu0 0
      %1400 = vmatpush1.bf16.msra.mxu0 %v1364
      %1401 = vmatprep.subr.bf16.mxu0 0
      %1402 = vmatpush1.bf16.msra.mxu0 %v1363
      %1403 = vmatprep.subr.bf16.mxu0 0
      %1404 = vmatpush1.bf16.msra.mxu0 %v1362
      %1405 = vmatprep.subr.bf16.mxu0 0
      %1406 = vmatpush1.bf16.msra.mxu0 %v1361
      %1407 = vmatprep.subr.bf16.mxu0 0
      %1408 = vmatpush1.bf16.msra.mxu0 %v1360
      %1409 = vmatprep.subr.bf16.mxu0 0
      %1410 = vmatpush1.bf16.msra.mxu0 %v1359
      %1411 = vmatprep.subr.bf16.mxu0 0
      %1412 = vmatpush1.bf16.msra.mxu0 %v1358
      %1413 = vmatprep.subr.bf16.mxu0 0
      %1414 = vmatpush1.bf16.msra.mxu0 %v1357
      %1415 = vmatprep.subr.bf16.mxu0 0
      %1416 = vmatpush2.bf16.msra.mxu0 %v1372
      %1417 = vmatprep.subr.bf16.mxu0 0
      %1418 = vmatpush2.bf16.msra.mxu0 %v1371
      %1419 = vmatprep.subr.bf16.mxu0 0
      %1420 = vmatpush2.bf16.msra.mxu0 %v1370
      %1421 = vmatprep.subr.bf16.mxu0 0
      %1422 = vmatpush2.bf16.msra.mxu0 %v1369
      %1423 = vmatprep.subr.bf16.mxu0 0
      %1424 = vmatpush2.bf16.msra.mxu0 %v1368
      %1425 = vmatprep.subr.bf16.mxu0 0
      %1426 = vmatpush2.bf16.msra.mxu0 %v1367
      %1427 = vmatprep.subr.bf16.mxu0 0
      %1428 = vmatpush2.bf16.msra.mxu0 %v1366
      %1429 = vmatprep.subr.bf16.mxu0 0
      %1430 = vmatpush2.bf16.msra.mxu0 %v1365
      %1431 = vmatprep.mubr.bf16.mxu0 %v1276
      %1432 = vmatmul.mubr.bf16.gmra.mxu0 %v1275
      %v1433 = vpop.f32.mrf.mxu0
      %v1434 = vadd.f32 0.0, %v1433
      %v1435 = vpop.f32.mrf.mxu0
      %v1436 = vpop.f32.mrf.mxu0
      %v1437 = vadd.f32 0.0, %v1436
      %v1438 = vpop.f32.mrf.mxu0
      %1439 = vmatprep.mubr.bf16.mxu0 %v1279
      %1440 = vmatmul.mubr.bf16.gmra.mxu0 %v1278
      %v1441 = vpop.f32.mrf.mxu0
      %v1442 = vadd.f32 0.0, %v1441
      %v1443 = vpop.f32.mrf.mxu0
      %v1444 = vpop.f32.mrf.mxu0
      %v1445 = vadd.f32 0.0, %v1444
      %v1446 = vpop.f32.mrf.mxu0
      %1447 = vdwg.mxu0
      %1448 = vmatprep.subr.bf16.mxu0 0
      %1449 = vmatpush1.bf16.msra.mxu0 0
      %1450 = vmatprep.subr.bf16.mxu0 0
      %1451 = vmatpush1.bf16.msra.mxu0 0
      %1452 = vmatprep.subr.bf16.mxu0 0
      %1453 = vmatpush1.bf16.msra.mxu0 0
      %1454 = vmatprep.subr.bf16.mxu0 0
      %1455 = vmatpush1.bf16.msra.mxu0 0
      %1456 = vmatprep.subr.bf16.mxu0 0
      %1457 = vmatpush1.bf16.msra.mxu0 0
      %1458 = vmatprep.subr.bf16.mxu0 0
      %1459 = vmatpush1.bf16.msra.mxu0 0
      %1460 = vmatprep.subr.bf16.mxu0 0
      %1461 = vmatpush1.bf16.msra.mxu0 %v1374
      %1462 = vmatprep.subr.bf16.mxu0 0
      %1463 = vmatpush1.bf16.msra.mxu0 %v1373
      %1464 = vmatprep.subr.bf16.mxu0 0
      %1465 = vmatpush2.bf16.msra.mxu0 0
      %1466 = vmatprep.subr.bf16.mxu0 0
      %1467 = vmatpush2.bf16.msra.mxu0 0
      %1468 = vmatprep.subr.bf16.mxu0 0
      %1469 = vmatpush2.bf16.msra.mxu0 0
      %1470 = vmatprep.subr.bf16.mxu0 0
      %1471 = vmatpush2.bf16.msra.mxu0 0
      %1472 = vmatprep.subr.bf16.mxu0 0
      %1473 = vmatpush2.bf16.msra.mxu0 0
      %1474 = vmatprep.subr.bf16.mxu0 0
      %1475 = vmatpush2.bf16.msra.mxu0 0
      %1476 = vmatprep.subr.bf16.mxu0 0
      %1477 = vmatpush2.bf16.msra.mxu0 0
      %1478 = vmatprep.subr.bf16.mxu0 0
      %1479 = vmatpush2.bf16.msra.mxu0 0
      %1480 = vmatprep.mubr.bf16.mxu0 0
      %1481 = vmatmul.mubr.bf16.gmra.mxu0 %v1394
      %v1482 = vpop.f32.mrf.mxu0
      %v1483 = vadd.f32 %v1434, %v1482
      %v1484 = vpop.f32.mrf.mxu0
      %v1485 = vpop.f32.mrf.mxu0
      %v1486 = vadd.f32 %v1437, %v1485
      %v1487 = vpop.f32.mrf.mxu0
      %1488 = vmatprep.mubr.bf16.mxu0 0
      %1489 = vmatmul.mubr.bf16.gmra.mxu0 %v1397
      %v1490 = vpop.f32.mrf.mxu0
      %v1491 = vadd.f32 %v1442, %v1490
      %v1492 = vpop.f32.mrf.mxu0
      %v1493 = vpop.f32.mrf.mxu0
      %v1494 = vadd.f32 %v1445, %v1493
      %v1495 = vpop.f32.mrf.mxu0
      %1496 = vdwg.mxu0
      %v1497 = vld [vmem:[%s6] sm:$0xff]
      %v1498 = vld [vmem:[%s6 + $0x8] sm:$0xff]
      %v1499 = vld [vmem:[%s6 + $0x10] sm:$0xff]
      %v1500 = vld [vmem:[%s6 + $0x18] sm:$0xff]
      %1502 = vset.pattern.permute.xlu0 0
      %1503 = vperm.xlu0 %1502, %v1497
      %v1504 = vpop.permute.xlu0 %1503
      %1507 = vset.pattern.permute.xlu0 0
      %1508 = vperm.xlu0 %1507, %v1498
      %v1509 = vpop.permute.xlu0 %1508
      %1512 = vset.pattern.permute.xlu0 0
      %1513 = vperm.xlu0 %1512, %v1499
      %v1514 = vpop.permute.xlu0 %1513
      %1517 = vset.pattern.permute.xlu0 0
      %1518 = vperm.xlu0 %1517, %v1500
      %v1519 = vpop.permute.xlu0 %1518
      %v1521 = vmul.f32 %v1483, %v1504
      %v1522 = vmul.f32 %v1486, %v1509
      %v1523 = vmul.f32 %v1491, %v1514
      %v1524 = vmul.f32 %v1494, %v1519
      %v1525 = vld [vmem:[%s7] sm:$0xff]
      %v1526 = vld [vmem:[%s7 + $0x8] sm:$0xff]
      %v1527 = vld [vmem:[%s7 + $0x10] sm:$0xff]
      %v1528 = vld [vmem:[%s7 + $0x18] sm:$0xff]
      %1530 = vset.pattern.permute.xlu0 0
      %1531 = vperm.xlu0 %1530, %v1525
      %v1532 = vpop.permute.xlu0 %1531
      %1535 = vset.pattern.permute.xlu0 0
      %1536 = vperm.xlu0 %1535, %v1526
      %v1537 = vpop.permute.xlu0 %1536
      %1540 = vset.pattern.permute.xlu0 0
      %1541 = vperm.xlu0 %1540, %v1527
      %v1542 = vpop.permute.xlu0 %1541
      %1545 = vset.pattern.permute.xlu0 0
      %1546 = vperm.xlu0 %1545, %v1528
      %v1547 = vpop.permute.xlu0 %1546
      %v1549 = vadd.f32 %v1521, %v1532
      %v1550 = vadd.f32 %v1522, %v1537
      %v1551 = vadd.f32 %v1523, %v1542
      %v1552 = vadd.f32 %v1524, %v1547
      %v1553 = vmax.f32 %v1549, 0.0
      %v1554 = vmax.f32 %v1550, 0.0
      %v1555 = vmax.f32 %v1551, 0.0
      %v1556 = vmax.f32 %v1552, 0.0
      %v1557 = vadd.f32 %v327, %v1553
      %v1558 = vadd.f32 %v328, %v1554
      %v1559 = vadd.f32 %v329, %v1555
      %v1560 = vadd.f32 %v330, %v1556
      %v1561 = vmax.f32 %v1557, 0.0
      %v1562 = vmax.f32 %v1558, 0.0
      %v1563 = vmax.f32 %v1559, 0.0
      %v1564 = vmax.f32 %v1560, 0.0
      %1565 = vst.msk [vmem:[%s325] sm:$0xff] %vm341, %v1561
      %1566 = vst.msk [vmem:[%s325 + $0x8] sm:$0xff] %vm341, %v1562
      %1567 = vst.msk [vmem:[%s325 + $0x10] sm:$0xff] %vm341, %v1563
      %1568 = vst.msk [vmem:[%s325 + $0x18] sm:$0xff] %vm341, %v1564
      %p1569 = scmp.lt.s32.totalorder %s19, 1
      %s1570 = scalar_select %p1569, %s19, 1
      %s1571 = smul.addr %s1570, 4
      %s1572 = smul.addr %s1571, 8
      %s1573 = scalar_lea.vmem %s8, %s1572
      // Predicated region
      $region53: #{ribonanza_forward.14} parent=51 // pred_check
        %p1574 = pneg %p215
      $region54: #{ribonanza_forward.14} parent=51 // pred_check_branch
        %1576 = sbr.rel (%p1574) target = $region56
      $region55: #{ribonanza_forward.14} parent=51 // pred_region
        _
      $region56: #{ribonanza_forward.14} parent=51 // pred_fallthru
        _
    $region52: #{ribonanza_forward.14} parent=5 // pred_fallthru
      _
    %p1577 = scmp.le.s32.totalorder 2, %s14
    // Predicated region
    $region57: #{ribonanza_forward.14} parent=5 // pred_check
      %p1578 = pneg %p1577
    $region58: #{ribonanza_forward.14} parent=5 // pred_check_branch
      %1580 = sbr.rel (%p1578) target = $region60
    $region59: #{ribonanza_forward.14} parent=5 // pred_region
      %s1581 = ssub.s32 %s14, 2
      // Predicated region
      $region61: #{ribonanza_forward.14} parent=59 // pred_check
        %p1582 = pneg %p221
      $region62: #{ribonanza_forward.14} parent=59 // pred_check_branch
        %1584 = sbr.rel (%p1582) target = $region64
      $region63: #{ribonanza_forward.14} parent=59 // pred_region
        %p1585 = scmp.lt.s32.totalorder %s20, 1
        %s1586 = scalar_select %p1585, %s20, 1
        %s1587 = smul.addr %s1586, 4
        %s1588 = smul.addr %s1587, 8
        %s1589 = scalar_lea.vmem %s8, %s1588
      $region64: #{ribonanza_forward.14} parent=59 // pred_fallthru
        _
    $region60: #{ribonanza_forward.14} parent=5 // pred_fallthru
      _
  $region6: #{ribonanza_forward.14} parent=0 // loop_footer
    %s18 = sadd.s32 1, %s14
  $region7: #{ribonanza_forward.14} parent=0 // loop_footer_branch
    %13 = sbr.rel target = $region3
  $region8: #{ribonanza_forward.14} parent=0 // loop_exit
    _

// kernel: ribonanza_forward.23
$region0: #{ribonanza_forward.23}
  #allocation0 [shape = 'u32[]', space=smem, size = 0x4, offset = 0x4, fixed_abs, tag = 'smem constant byte address 0x4 - core index']
  #allocation1 [shape = 'u32[144,128]{1,0:T(1,128)}', space=vmem, size = 0x12000, scoped, tag = 'internal scratch']
  %s0 = inlined_call_operand.vmem [shape: f32[32,16], index: 0, kind: input, shape index: {}]
  %s1 = inlined_call_operand.vmem [shape: f32[32,16], index: 1, kind: input, shape index: {}]
  %s2 = inlined_call_operand.vmem [shape: bf16[32,4], index: 2, kind: input, shape index: {}]
  %s3 = inlined_call_operand.vmem [shape: f32[1,4], index: 3, kind: input, shape index: {}]
  %s4 = inlined_call_operand.vmem [shape: f32[32,4], index: 4, kind: output, shape index: {}]
  %s5 = sld [smem:[#allocation0]]
  $region26: #{ribonanza_forward.23} parent=0
    _
  %s7 = ssub.s32 1, %s5
  %s8 = scalar_select 0, %s7, %s5
  // Predicated region
  $region2: #{ribonanza_forward.23} parent=0 // pred_check
    _
  $region3: #{ribonanza_forward.23} parent=0 // pred_check_branch
    %10 = sbr.rel (0) target = $region5
  $region4: #{ribonanza_forward.23} parent=0 // pred_region
    _
  $region5: #{ribonanza_forward.23} parent=0 // pred_fallthru
    _
  // Predicated region
  $region6: #{ribonanza_forward.23} parent=0 // pred_check
    _
  $region7: #{ribonanza_forward.23} parent=0 // pred_check_branch
    %12 = sbr.rel (0) target = $region9
  $region8: #{ribonanza_forward.23} parent=0 // pred_region
    _
  $region9: #{ribonanza_forward.23} parent=0 // pred_fallthru
    _
  // Predicated region
  $region10: #{ribonanza_forward.23} parent=0 // pred_check
    _
  $region11: #{ribonanza_forward.23} parent=0 // pred_check_branch
    %14 = sbr.rel (0) target = $region13
  $region12: #{ribonanza_forward.23} parent=0 // pred_region
    _
  $region13: #{ribonanza_forward.23} parent=0 // pred_fallthru
    _
  // Predicated region
  $region14: #{ribonanza_forward.23} parent=0 // pred_check
    _
  $region15: #{ribonanza_forward.23} parent=0 // pred_check_branch
    %16 = sbr.rel (0) target = $region17
  $region16: #{ribonanza_forward.23} parent=0 // pred_region
    _
  $region17: #{ribonanza_forward.23} parent=0 // pred_fallthru
    _
  %v18 = vld [vmem:[%s0] sm:$0xff]
  %v19 = vld [vmem:[%s0 + $0x8] sm:$0xff]
  %v20 = vld [vmem:[%s0 + $0x10] sm:$0xff]
  %v21 = vld [vmem:[%s0 + $0x18] sm:$0xff]
  %v22 = vld [vmem:[%s1] sm:$0xff]
  %v23 = vld [vmem:[%s1 + $0x8] sm:$0xff]
  %v24 = vld [vmem:[%s1 + $0x10] sm:$0xff]
  %v25 = vld [vmem:[%s1 + $0x18] sm:$0xff]
  %30 = vrot.lane.b32.xlu0 %v22, 16
  %v31 = vpop.permute.xlu0 %30
  %32 = vrot.lane.b32.xlu0 %v23, 16
  %v33 = vpop.permute.xlu0 %32
  %34 = vrot.lane.b32.xlu0 %v24, 16
  %v35 = vpop.permute.xlu0 %34
  %36 = vrot.lane.b32.xlu0 %v25, 16
  %v37 = vpop.permute.xlu0 %36
  %vm42 = vcmask 130048
  %v43 = vsel %vm42, %v18, %v31
  %v44 = vsel %vm42, %v19, %v33
  %v45 = vsel %vm42, %v20, %v35
  %v46 = vsel %vm42, %v21, %v37
  %v47 = vpack.c.bf16 %v44, %v43
  %v48 = vpack.c.bf16 %v46, %v45
  %v49 = vld [vmem:[%s2] sm:$0xf]
  %v50 = vld [vmem:[%s2 + $0x4] sm:$0xf]
  %v51 = vld [vmem:[%s2 + $0x8] sm:$0xf]
  %v52 = vld [vmem:[%s2 + $0xc] sm:$0xf]
  %v53 = vld [vmem:[%s3] sm:$0x1]
  %v55 = vlaneseq
  %v56 = vshrl.u32 %v55, 7
  %v57 = vsub.s32 0, %v56
  %v58 = vrot.slane %v53, %v57
  %v64 = vunpack.c.l.b16 %v49
  %v65 = vunpack.c.l.b16 %v50
  %v66 = vunpack.c.l.b16 %v51
  %v67 = vunpack.c.l.b16 %v52
  %v68 = vpack.c.b16 %v65, %v64
  %v69 = vpack.c.b16 %v67, %v66
  %vm72 = vcmask 261120
  %v74 = vsel %vm72, %v47, 0
  %v77 = vsel %vm72, %v48, 0
  %79 = vmatprep.subr.bf16.mxu0 0
  %80 = vmatpush1.bf16.msra.mxu0 0
  %81 = vmatprep.subr.bf16.mxu0 0
  %82 = vmatpush1.bf16.msra.mxu0 0
  %83 = vmatprep.subr.bf16.mxu0 0
  %84 = vmatpush1.bf16.msra.mxu0 0
  %85 = vmatprep.subr.bf16.mxu0 0
  %86 = vmatpush1.bf16.msra.mxu0 0
  %87 = vmatprep.subr.bf16.mxu0 0
  %88 = vmatpush1.bf16.msra.mxu0 0
  %89 = vmatprep.subr.bf16.mxu0 0
  %90 = vmatpush1.bf16.msra.mxu0 0
  %91 = vmatprep.subr.bf16.mxu0 0
  %92 = vmatpush1.bf16.msra.mxu0 %v69
  %93 = vmatprep.subr.bf16.mxu0 0
  %94 = vmatpush1.bf16.msra.mxu0 %v68
  %95 = vmatprep.subr.bf16.mxu0 0
  %96 = vmatpush2.bf16.msra.mxu0 0
  %97 = vmatprep.subr.bf16.mxu0 0
  %98 = vmatpush2.bf16.msra.mxu0 0
  %99 = vmatprep.subr.bf16.mxu0 0
  %100 = vmatpush2.bf16.msra.mxu0 0
  %101 = vmatprep.subr.bf16.mxu0 0
  %102 = vmatpush2.bf16.msra.mxu0 0
  %103 = vmatprep.subr.bf16.mxu0 0
  %104 = vmatpush2.bf16.msra.mxu0 0
  %105 = vmatprep.subr.bf16.mxu0 0
  %106 = vmatpush2.bf16.msra.mxu0 0
  %107 = vmatprep.subr.bf16.mxu0 0
  %108 = vmatpush2.bf16.msra.mxu0 0
  %109 = vmatprep.subr.bf16.mxu0 0
  %110 = vmatpush2.bf16.msra.mxu0 0
  %111 = vmatprep.mubr.bf16.mxu0 0
  %112 = vmatmul.mubr.bf16.gmra.mxu0 %v74
  %v113 = vpop.f32.mrf.mxu0
  %v114 = vadd.f32 %v58, %v113
  %v115 = vpop.f32.mrf.mxu0
  %v116 = vpop.f32.mrf.mxu0
  %v117 = vadd.f32 %v58, %v116
  %v118 = vpop.f32.mrf.mxu0
  %119 = vmatprep.mubr.bf16.mxu0 0
  %120 = vmatmul.mubr.bf16.gmra.mxu0 %v77
  %v121 = vpop.f32.mrf.mxu0
  %v122 = vadd.f32 %v58, %v121
  %v123 = vpop.f32.mrf.mxu0
  %v124 = vpop.f32.mrf.mxu0
  %v125 = vadd.f32 %v58, %v124
  %v126 = vpop.f32.mrf.mxu0
  %127 = vdwg.mxu0
  %vm128 = vcmask 31744
  %129 = vst.msk [vmem:[%s4] sm:$0xff] %vm128, %v114
  %130 = vst.msk [vmem:[%s4 + $0x8] sm:$0xff] %vm128, %v117
  %131 = vst.msk [vmem:[%s4 + $0x10] sm:$0xff] %vm128, %v122
  %132 = vst.msk [vmem:[%s4 + $0x18] sm:$0xff] %vm128, %v125
  // Predicated region
  $region18: #{ribonanza_forward.23} parent=0 // pred_check
    _
  $region19: #{ribonanza_forward.23} parent=0 // pred_check_branch
    %134 = sbr.rel (0) target = $region21
  $region20: #{ribonanza_forward.23} parent=0 // pred_region
    _
  $region21: #{ribonanza_forward.23} parent=0 // pred_fallthru
    _
  // Predicated region
  $region22: #{ribonanza_forward.23} parent=0 // pred_check
    _
  $region23: #{ribonanza_forward.23} parent=0 // pred_check_branch
    %136 = sbr.rel (0) target = $region25
  $region24: #{ribonanza_forward.23} parent=0 // pred_region
    _
  $region25: #{ribonanza_forward.23} parent=0 // pred_fallthru
    _

// kernel: ribonanza_forward.13
$region0: #{ribonanza_forward.13}
  #allocation0 [shape = 'u32[]', space=smem, size = 0x4, offset = 0x4, fixed_abs, tag = 'smem constant byte address 0x4 - core index']
  #allocation1 [shape = 'u32[144,128]{1,0:T(1,128)}', space=vmem, size = 0x12000, scoped, tag = 'internal scratch']
  #allocation2 [shape = 'bf16[32,24]{1,0:T(8,128)(2,1)}', space=vmem, size = 0x2000, scoped, tag = 'scratch operand']
  #allocation3 [shape = 'bf16[288,16]{1,0:T(8,128)(2,1)}', space=vmem, size = 0x12000, scoped, tag = 'scratch operand']
  %s0 = inlined_call_operand.vmem [shape: f32[2,32,16], index: 0, kind: input, shape index: {}]
  %s1 = inlined_call_operand.vmem [shape: bf16[32,288], index: 1, kind: input, shape index: {}]
  %s2 = inlined_call_operand.vmem [shape: f32[32,1], index: 2, kind: input, shape index: {}]
  %s3 = inlined_call_operand.vmem [shape: f32[32,1], index: 3, kind: input, shape index: {}]
  %s4 = inlined_call_operand.vmem [shape: bf16[32,288], index: 4, kind: input, shape index: {}]
  %s5 = inlined_call_operand.vmem [shape: f32[32,1], index: 5, kind: input, shape index: {}]
  %s6 = inlined_call_operand.vmem [shape: f32[32,1], index: 6, kind: input, shape index: {}]
  %s7 = inlined_call_operand.vmem [shape: f32[32,2], index: 7, kind: input, shape index: {}]
  %s8 = inlined_call_operand.vmem [shape: f32[32,2], index: 8, kind: input, shape index: {}]
  %s9 = inlined_call_operand.vmem [shape: f32[2,32,16], index: 9, kind: output, shape index: {}]
  %s10 = sld [smem:[#allocation0]]
  $region69: #{ribonanza_forward.13} parent=0
    _
  %s12 = ssub.s32 1, %s10
  %s13 = scalar_select 0, %s12, %s10
  loop: start=0, step=1, limit=4
  $region2: #{ribonanza_forward.13} parent=0 // loop_pre_header
    _
  $region3: #{ribonanza_forward.13} parent=0 // loop_header
    %s15 = sphi 0, %s19
    %p16 = scmp.ge.s32.totalorder %s15, 4
    %s25 = sphi 0, %s27
    %s28 = sphi 0, %s25
    %s29 = sphi 0, %s28
    %s45 = sphi 0, %s29
    %s49 = sphi 0, %s49
    %s51 = sphi 0, %s49
    %s52 = sphi 0, %s51
    %s66 = sphi 0, %s52
    %s70 = sphi 0, %s70
    %s72 = sphi 0, %s70
    %s73 = sphi 0, %s72
    %s87 = sphi 0, %s73
    %s91 = sphi 0, %s91
    %s93 = sphi 0, %s91
    %s94 = sphi 0, %s93
    %s108 = sphi 0, %s94
    %s112 = sphi 0, %s112
    %s114 = sphi 0, %s112
    %s115 = sphi 0, %s114
    %s129 = sphi 0, %s115
    %s133 = sphi 0, %s133
    %s135 = sphi 0, %s133
    %s136 = sphi 0, %s135
    %s150 = sphi 0, %s136
    %s154 = sphi 0, %s154
    %s156 = sphi 0, %s154
    %s157 = sphi 0, %s156
    %s171 = sphi 0, %s157
    %s175 = sphi 0, %s175
    %s177 = sphi 0, %s175
    %s178 = sphi 0, %s177
    %s192 = sphi 0, %s178
    %s196 = sphi 0, %s196
    %s198 = sphi 0, %s196
    %s199 = sphi 0, %s198
    %s213 = sphi 0, %s199
    %s219 = sphi 0, %s221
    %s222 = sphi 0, %s219
    %s223 = sphi 0, %s222
    %s239 = sphi 0, %s223
  $region4: #{ribonanza_forward.13} parent=0 // loop_header_branch
    %18 = sbr.rel (%p16) target = $region8
  $region5: #{ribonanza_forward.13} parent=0 // loop_body
    %s20 = ssub.s32 %s15, 1
    %s21 = ssub.s32 %s15, 2
    %s22 = sadd.s32 %s15, 1
    %s23 = ssub.s32 %s15, %s22
    %p24 = scmp.eq.s32.totalorder %s23, 0
    %s26 = sadd.s32 %s25, 1
    %s27 = scalar_select %p24, %s25, %s26
    %p30 = pneg %p24
    %p31 = scmp.eq.s32.totalorder %s15, 1
    %p32 = por %p30, %p31
    %p33 = scmp.ne.s32.totalorder %s25, %s28
    %p34 = scmp.eq.s32.totalorder %s15, 0
    %p35 = por %p33, %p34
    %p36 = scmp.ne.s32.totalorder %s25, %s28
    %p37 = scmp.eq.s32.totalorder %s20, 1
    %p38 = por %p36, %p37
    %p39 = scmp.ne.s32.totalorder %s28, %s29
    %p40 = scmp.eq.s32.totalorder %s20, 0
    %p41 = por %p39, %p40
    %p42 = scmp.ne.s32.totalorder %s28, %s29
    %p43 = scmp.eq.s32.totalorder %s21, 1
    %p44 = por %p42, %p43
    %p46 = scmp.ne.s32.totalorder %s29, %s45
    %p47 = scmp.eq.s32.totalorder %s21, 0
    %p48 = por %p46, %p47
    %s50 = sadd.s32 %s49, 1
    %p53 = scmp.eq.s32.totalorder %s15, 1
    %p54 = scmp.ne.s32.totalorder %s49, %s51
    %p55 = scmp.eq.s32.totalorder %s15, 0
    %p56 = por %p54, %p55
    %p57 = scmp.ne.s32.totalorder %s49, %s51
    %p58 = scmp.eq.s32.totalorder %s20, 1
    %p59 = por %p57, %p58
    %p60 = scmp.ne.s32.totalorder %s51, %s52
    %p61 = scmp.eq.s32.totalorder %s20, 0
    %p62 = por %p60, %p61
    %p63 = scmp.ne.s32.totalorder %s51, %s52
    %p64 = scmp.eq.s32.totalorder %s21, 1
    %p65 = por %p63, %p64
    %p67 = scmp.ne.s32.totalorder %s52, %s66
    %p68 = scmp.eq.s32.totalorder %s21, 0
    %p69 = por %p67, %p68
    %s71 = sadd.s32 %s70, 1
    %p74 = scmp.eq.s32.totalorder %s15, 1
    %p75 = scmp.ne.s32.totalorder %s70, %s72
    %p76 = scmp.eq.s32.totalorder %s15, 0
    %p77 = por %p75, %p76
    %p78 = scmp.ne.s32.totalorder %s70, %s72
    %p79 = scmp.eq.s32.totalorder %s20, 1
    %p80 = por %p78, %p79
    %p81 = scmp.ne.s32.totalorder %s72, %s73
    %p82 = scmp.eq.s32.totalorder %s20, 0
    %p83 = por %p81, %p82
    %p84 = scmp.ne.s32.totalorder %s72, %s73
    %p85 = scmp.eq.s32.totalorder %s21, 1
    %p86 = por %p84, %p85
    %p88 = scmp.ne.s32.totalorder %s73, %s87
    %p89 = scmp.eq.s32.totalorder %s21, 0
    %p90 = por %p88, %p89
    %s92 = sadd.s32 %s91, 1
    %p95 = scmp.eq.s32.totalorder %s15, 1
    %p96 = scmp.ne.s32.totalorder %s91, %s93
    %p97 = scmp.eq.s32.totalorder %s15, 0
    %p98 = por %p96, %p97
    %p99 = scmp.ne.s32.totalorder %s91, %s93
    %p100 = scmp.eq.s32.totalorder %s20, 1
    %p101 = por %p99, %p100
    %p102 = scmp.ne.s32.totalorder %s93, %s94
    %p103 = scmp.eq.s32.totalorder %s20, 0
    %p104 = por %p102, %p103
    %p105 = scmp.ne.s32.totalorder %s93, %s94
    %p106 = scmp.eq.s32.totalorder %s21, 1
    %p107 = por %p105, %p106
    %p109 = scmp.ne.s32.totalorder %s94, %s108
    %p110 = scmp.eq.s32.totalorder %s21, 0
    %p111 = por %p109, %p110
    %s113 = sadd.s32 %s112, 1
    %p116 = scmp.eq.s32.totalorder %s15, 1
    %p117 = scmp.ne.s32.totalorder %s112, %s114
    %p118 = scmp.eq.s32.totalorder %s15, 0
    %p119 = por %p117, %p118
    %p120 = scmp.ne.s32.totalorder %s112, %s114
    %p121 = scmp.eq.s32.totalorder %s20, 1
    %p122 = por %p120, %p121
    %p123 = scmp.ne.s32.totalorder %s114, %s115
    %p124 = scmp.eq.s32.totalorder %s20, 0
    %p125 = por %p123, %p124
    %p126 = scmp.ne.s32.totalorder %s114, %s115
    %p127 = scmp.eq.s32.totalorder %s21, 1
    %p128 = por %p126, %p127
    %p130 = scmp.ne.s32.totalorder %s115, %s129
    %p131 = scmp.eq.s32.totalorder %s21, 0
    %p132 = por %p130, %p131
    %s134 = sadd.s32 %s133, 1
    %p137 = scmp.eq.s32.totalorder %s15, 1
    %p138 = scmp.ne.s32.totalorder %s133, %s135
    %p139 = scmp.eq.s32.totalorder %s15, 0
    %p140 = por %p138, %p139
    %p141 = scmp.ne.s32.totalorder %s133, %s135
    %p142 = scmp.eq.s32.totalorder %s20, 1
    %p143 = por %p141, %p142
    %p144 = scmp.ne.s32.totalorder %s135, %s136
    %p145 = scmp.eq.s32.totalorder %s20, 0
    %p146 = por %p144, %p145
    %p147 = scmp.ne.s32.totalorder %s135, %s136
    %p148 = scmp.eq.s32.totalorder %s21, 1
    %p149 = por %p147, %p148
    %p151 = scmp.ne.s32.totalorder %s136, %s150
    %p152 = scmp.eq.s32.totalorder %s21, 0
    %p153 = por %p151, %p152
    %s155 = sadd.s32 %s154, 1
    %p158 = scmp.eq.s32.totalorder %s15, 1
    %p159 = scmp.ne.s32.totalorder %s154, %s156
    %p160 = scmp.eq.s32.totalorder %s15, 0
    %p161 = por %p159, %p160
    %p162 = scmp.ne.s32.totalorder %s154, %s156
    %p163 = scmp.eq.s32.totalorder %s20, 1
    %p164 = por %p162, %p163
    %p165 = scmp.ne.s32.totalorder %s156, %s157
    %p166 = scmp.eq.s32.totalorder %s20, 0
    %p167 = por %p165, %p166
    %p168 = scmp.ne.s32.totalorder %s156, %s157
    %p169 = scmp.eq.s32.totalorder %s21, 1
    %p170 = por %p168, %p169
    %p172 = scmp.ne.s32.totalorder %s157, %s171
    %p173 = scmp.eq.s32.totalorder %s21, 0
    %p174 = por %p172, %p173
    %s176 = sadd.s32 %s175, 1
    %p179 = scmp.eq.s32.totalorder %s15, 1
    %p180 = scmp.ne.s32.totalorder %s175, %s177
    %p181 = scmp.eq.s32.totalorder %s15, 0
    %p182 = por %p180, %p181
    %p183 = scmp.ne.s32.totalorder %s175, %s177
    %p184 = scmp.eq.s32.totalorder %s20, 1
    %p185 = por %p183, %p184
    %p186 = scmp.ne.s32.totalorder %s177, %s178
    %p187 = scmp.eq.s32.totalorder %s20, 0
    %p188 = por %p186, %p187
    %p189 = scmp.ne.s32.totalorder %s177, %s178
    %p190 = scmp.eq.s32.totalorder %s21, 1
    %p191 = por %p189, %p190
    %p193 = scmp.ne.s32.totalorder %s178, %s192
    %p194 = scmp.eq.s32.totalorder %s21, 0
    %p195 = por %p193, %p194
    %s197 = sadd.s32 %s196, 1
    %p200 = scmp.eq.s32.totalorder %s15, 1
    %p201 = scmp.ne.s32.totalorder %s196, %s198
    %p202 = scmp.eq.s32.totalorder %s15, 0
    %p203 = por %p201, %p202
    %p204 = scmp.ne.s32.totalorder %s196, %s198
    %p205 = scmp.eq.s32.totalorder %s20, 1
    %p206 = por %p204, %p205
    %p207 = scmp.ne.s32.totalorder %s198, %s199
    %p208 = scmp.eq.s32.totalorder %s20, 0
    %p209 = por %p207, %p208
    %p210 = scmp.ne.s32.totalorder %s198, %s199
    %p211 = scmp.eq.s32.totalorder %s21, 1
    %p212 = por %p210, %p211
    %p214 = scmp.ne.s32.totalorder %s199, %s213
    %p215 = scmp.eq.s32.totalorder %s21, 0
    %p216 = por %p214, %p215
    %s217 = ssub.s32 %s15, %s22
    %p218 = scmp.eq.s32.totalorder %s217, 0
    %s220 = sadd.s32 %s219, 1
    %s221 = scalar_select %p218, %s219, %s220
    %p224 = pneg %p218
    %p225 = scmp.eq.s32.totalorder %s15, 1
    %p226 = por %p224, %p225
    %p227 = scmp.ne.s32.totalorder %s219, %s222
    %p228 = scmp.eq.s32.totalorder %s15, 0
    %p229 = por %p227, %p228
    %p230 = scmp.ne.s32.totalorder %s219, %s222
    %p231 = scmp.eq.s32.totalorder %s20, 1
    %p232 = por %p230, %p231
    %p233 = scmp.ne.s32.totalorder %s222, %s223
    %p234 = scmp.eq.s32.totalorder %s20, 0
    %p235 = por %p233, %p234
    %p236 = scmp.ne.s32.totalorder %s222, %s223
    %p237 = scmp.eq.s32.totalorder %s21, 1
    %p238 = por %p236, %p237
    %p240 = scmp.ne.s32.totalorder %s223, %s239
    %p241 = scmp.eq.s32.totalorder %s21, 0
    %p242 = por %p240, %p241
    %p243 = scmp.le.s32.totalorder 1, %s15
    %p244 = scmp.lt.s32.totalorder %s15, 3
    %p245 = pnand %p243, %p244
    %p246 = pneg %p245
    // Predicated region
    $region9: #{ribonanza_forward.13} parent=5 // pred_check
      _
    $region10: #{ribonanza_forward.13} parent=5 // pred_check_branch
      %248 = sbr.rel (%p245) target = $region12
    $region11: #{ribonanza_forward.13} parent=5 // pred_region
      %s249 = ssub.s32 %s15, 1
      // Predicated region
      $region13: #{ribonanza_forward.13} parent=11 // pred_check
        %p250 = pneg %p62
      $region14: #{ribonanza_forward.13} parent=11 // pred_check_branch
        %252 = sbr.rel (%p250) target = $region16
      $region15: #{ribonanza_forward.13} parent=11 // pred_region
        _
      $region16: #{ribonanza_forward.13} parent=11 // pred_fallthru
        _
      // Predicated region
      $region17: #{ribonanza_forward.13} parent=11 // pred_check
        %p253 = pneg %p83
      $region18: #{ribonanza_forward.13} parent=11 // pred_check_branch
        %255 = sbr.rel (%p253) target = $region20
      $region19: #{ribonanza_forward.13} parent=11 // pred_region
        _
      $region20: #{ribonanza_forward.13} parent=11 // pred_fallthru
        _
      // Predicated region
      $region21: #{ribonanza_forward.13} parent=11 // pred_check
        %p256 = pneg %p104
      $region22: #{ribonanza_forward.13} parent=11 // pred_check_branch
        %258 = sbr.rel (%p256) target = $region24
      $region23: #{ribonanza_forward.13} parent=11 // pred_region
        _
      $region24: #{ribonanza_forward.13} parent=11 // pred_fallthru
        _
      // Predicated region
      $region25: #{ribonanza_forward.13} parent=11 // pred_check
        %p259 = pneg %p125
      $region26: #{ribonanza_forward.13} parent=11 // pred_check_branch
        %261 = sbr.rel (%p259) target = $region28
      $region27: #{ribonanza_forward.13} parent=11 // pred_region
        _
      $region28: #{ribonanza_forward.13} parent=11 // pred_fallthru
        _
      // Predicated region
      $region29: #{ribonanza_forward.13} parent=11 // pred_check
        %p262 = pneg %p146
      $region30: #{ribonanza_forward.13} parent=11 // pred_check_branch
        %264 = sbr.rel (%p262) target = $region32
      $region31: #{ribonanza_forward.13} parent=11 // pred_region
        _
      $region32: #{ribonanza_forward.13} parent=11 // pred_fallthru
        _
      // Predicated region
      $region33: #{ribonanza_forward.13} parent=11 // pred_check
        %p265 = pneg %p167
      $region34: #{ribonanza_forward.13} parent=11 // pred_check_branch
        %267 = sbr.rel (%p265) target = $region36
      $region35: #{ribonanza_forward.13} parent=11 // pred_region
        _
      $region36: #{ribonanza_forward.13} parent=11 // pred_fallthru
        _
      // Predicated region
      $region37: #{ribonanza_forward.13} parent=11 // pred_check
        %p268 = pneg %p188
      $region38: #{ribonanza_forward.13} parent=11 // pred_check_branch
        %270 = sbr.rel (%p268) target = $region40
      $region39: #{ribonanza_forward.13} parent=11 // pred_region
        _
      $region40: #{ribonanza_forward.13} parent=11 // pred_fallthru
        _
      // Predicated region
      $region41: #{ribonanza_forward.13} parent=11 // pred_check
        %p271 = pneg %p209
      $region42: #{ribonanza_forward.13} parent=11 // pred_check_branch
        %273 = sbr.rel (%p271) target = $region44
      $region43: #{ribonanza_forward.13} parent=11 // pred_region
        _
      $region44: #{ribonanza_forward.13} parent=11 // pred_fallthru
        _
    $region12: #{ribonanza_forward.13} parent=5 // pred_fallthru
      _
    %p274 = scmp.lt.s32.totalorder %s15, 2
    // Predicated region
    $region45: #{ribonanza_forward.13} parent=5 // pred_check
      %p275 = pneg %p274
    $region46: #{ribonanza_forward.13} parent=5 // pred_check_branch
      %277 = sbr.rel (%p275) target = $region48
    $region47: #{ribonanza_forward.13} parent=5 // pred_region
      // Predicated region
      $region49: #{ribonanza_forward.13} parent=47 // pred_check
        %p278 = pneg %p35
      $region50: #{ribonanza_forward.13} parent=47 // pred_check_branch
        %280 = sbr.rel (%p278) target = $region52
      $region51: #{ribonanza_forward.13} parent=47 // pred_region
        %p281 = scmp.lt.s32.totalorder %s15, 1
        %s282 = scalar_select %p281, %s15, 1
        %s283 = smul.addr %s282, 4
        %s284 = smul.addr %s283, 8
        %s285 = scalar_lea.vmem %s0, %s284
      $region52: #{ribonanza_forward.13} parent=47 // pred_fallthru
        _
    $region48: #{ribonanza_forward.13} parent=5 // pred_fallthru
      _
    %p286 = scmp.le.s32.totalorder 1, %s15
    %p287 = scmp.lt.s32.totalorder %s15, 3
    %p288 = pnand %p286, %p287
    %p289 = pneg %p288
    // Predicated region
    $region53: #{ribonanza_forward.13} parent=5 // pred_check
      _
    $region54: #{ribonanza_forward.13} parent=5 // pred_check_branch
      %291 = sbr.rel (%p288) target = $region56
    $region55: #{ribonanza_forward.13} parent=5 // pred_region
      %s292 = ssub.s32 %s15, 1
      %p293 = scmp.lt.s32.totalorder %s20, 1
      %s294 = scalar_select %p293, %s20, 1
      %s295 = smul.addr %s294, 4
      %s296 = smul.addr %s295, 8
      %s297 = scalar_lea.vmem %s0, %s296
      %p298 = pneg %p41
      %p299 = pneg %p38
      %p300 = pneg %p62
      %p301 = pneg %p59
      %p302 = pneg %p83
      %p303 = pneg %p80
      %p304 = pneg %p104
      %p305 = pneg %p101
      %p306 = pneg %p125
      %p307 = pneg %p122
      %p308 = pneg %p146
      %p309 = pneg %p143
      %p310 = pneg %p167
      %p311 = pneg %p164
      %p312 = pneg %p188
      %p313 = pneg %p185
      %p314 = pneg %p209
      %p315 = pneg %p206
      %p316 = pneg %p235
      %p317 = pneg %p232
      %p318 = scmp.lt.s32.totalorder %s20, 1
      %s319 = scalar_select %p318, %s20, 1
      %s320 = smul.addr %s319, 4
      %s321 = smul.addr %s320, 8
      %s322 = scalar_lea.vmem %s9, %s321
      %p323 = scmp.lt.s32.totalorder %s20, 1
      %s324 = scalar_select %p323, %s20, 1
      %s325 = smul.addr %s324, 4
      %s326 = smul.addr %s325, 8
      %s327 = scalar_lea.vmem %s0, %s326
      %p328 = scmp.lt.s32.totalorder %s20, 1
      %s329 = scalar_select %p328, %s20, 1
      %s330 = smul.addr %s329, 4
      %s331 = smul.addr %s330, 8
      %s332 = scalar_lea.vmem %s9, %s331
      %v334 = vld [vmem:[%s327] sm:$0xff]
      %v335 = vld [vmem:[%s327 + $0x8] sm:$0xff]
      %v336 = vld [vmem:[%s327 + $0x10] sm:$0xff]
      %v337 = vld [vmem:[%s327 + $0x18] sm:$0xff]
      %vm338 = vcmask 191488
      %339 = vst.msk [vmem:[#allocation2] sm:$0xf] %vm338, 0
      %340 = vst.msk [vmem:[#allocation2 + $0x4] sm:$0xf] %vm338, 0
      %341 = vst.msk [vmem:[#allocation2 + $0x8] sm:$0xf] %vm338, 0
      %342 = vst.msk [vmem:[#allocation2 + $0xc] sm:$0xf] %vm338, 0
      %v343 = vpack.c.bf16 %v335, %v334
      %v344 = vpack.c.bf16 %v337, %v336
      %v347 = vunpack.c.l.b16 %v343
      %v348 = vunpack.c.h.b16 %v343
      %v349 = vunpack.c.l.b16 %v344
      %v350 = vunpack.c.h.b16 %v344
      %v351 = vpack.c.b16 %v347, %v347
      %v352 = vpack.c.b16 %v348, %v348
      %v353 = vpack.c.b16 %v349, %v349
      %v354 = vpack.c.b16 %v350, %v350
      %355 = vrot.lane.b32.xlu0 %v351, 4
      %v356 = vpop.permute.xlu0 %355
      %357 = vrot.lane.b32.xlu0 %v352, 4
      %v358 = vpop.permute.xlu0 %357
      %359 = vrot.lane.b32.xlu0 %v353, 4
      %v360 = vpop.permute.xlu0 %359
      %361 = vrot.lane.b32.xlu0 %v354, 4
      %v362 = vpop.permute.xlu0 %361
      %vm367 = vcmask 158752
      %368 = vst.msk [vmem:[#allocation2] sm:$0xf] %vm367, %v356
      %369 = vst.msk [vmem:[#allocation2 + $0x4] sm:$0xf] %vm367, %v358
      %370 = vst.msk [vmem:[#allocation2 + $0x8] sm:$0xf] %vm367, %v360
      %371 = vst.msk [vmem:[#allocation2 + $0xc] sm:$0xf] %vm367, %v362
      %v372 = vld [vmem:[#allocation2] sm:$0xf]
      %v373 = vld [vmem:[#allocation2 + $0x4] sm:$0xf]
      %v374 = vld [vmem:[#allocation2 + $0x8] sm:$0xf]
      %v375 = vld [vmem:[#allocation2 + $0xc] sm:$0xf]
      %vm376 = vcmask 125952
      %377 = vst.msk [vmem:[#allocation3] sm:$0xf] %vm376, %v372
      %378 = vst.msk [vmem:[#allocation3 + $0x4] sm:$0xf] %vm376, %v373
      %379 = vst.msk [vmem:[#allocation3 + $0x8] sm:$0xf] %vm376, %v374
      %380 = vst.msk [vmem:[#allocation3 + $0xc] sm:$0xf] %vm376, %v375
      %v381 = vld [vmem:[#allocation2] sm:$0xf]
      %v382 = vld [vmem:[#allocation2 + $0x4] sm:$0xf]
      %v383 = vld [vmem:[#allocation2 + $0x8] sm:$0xf]
      %v384 = vld [vmem:[#allocation2 + $0xc] sm:$0xf]
      %389 = vrot.lane.b32.xlu0 %v381, 127
      %v390 = vpop.permute.xlu0 %389
      %391 = vrot.lane.b32.xlu0 %v382, 127
      %v392 = vpop.permute.xlu0 %391
      %393 = vrot.lane.b32.xlu0 %v383, 127
      %v394 = vpop.permute.xlu0 %393
      %395 = vrot.lane.b32.xlu0 %v384, 127
      %v396 = vpop.permute.xlu0 %395
      %401 = vst.msk [vmem:[#allocation3 + $0x10] sm:$0xf] %vm376, %v390
      %402 = vst.msk [vmem:[#allocation3 + $0x14] sm:$0xf] %vm376, %v392
      %403 = vst.msk [vmem:[#allocation3 + $0x18] sm:$0xf] %vm376, %v394
      %404 = vst.msk [vmem:[#allocation3 + $0x1c] sm:$0xf] %vm376, %v396
      %v405 = vld [vmem:[#allocation2] sm:$0xf]
      %v406 = vld [vmem:[#allocation2 + $0x4] sm:$0xf]
      %v407 = vld [vmem:[#allocation2 + $0x8] sm:$0xf]
      %v408 = vld [vmem:[#allocation2 + $0xc] sm:$0xf]
      %413 = vrot.lane.b32.xlu0 %v405, 126
      %v414 = vpop.permute.xlu0 %413
      %415 = vrot.lane.b32.xlu0 %v406, 126
      %v416 = vpop.permute.xlu0 %415
      %417 = vrot.lane.b32.xlu0 %v407, 126
      %v418 = vpop.permute.xlu0 %417
      %419 = vrot.lane.b32.xlu0 %v408, 126
      %v420 = vpop.permute.xlu0 %419
      %425 = vst.msk [vmem:[#allocation3 + $0x20] sm:$0xf] %vm376, %v414
      %426 = vst.msk [vmem:[#allocation3 + $0x24] sm:$0xf] %vm376, %v416
      %427 = vst.msk [vmem:[#allocation3 + $0x28] sm:$0xf] %vm376, %v418
      %428 = vst.msk [vmem:[#allocation3 + $0x2c] sm:$0xf] %vm376, %v420
      %v429 = vld [vmem:[#allocation2] sm:$0xf]
      %v430 = vld [vmem:[#allocation2 + $0x4] sm:$0xf]
      %v431 = vld [vmem:[#allocation2 + $0x8] sm:$0xf]
      %v432 = vld [vmem:[#allocation2 + $0xc] sm:$0xf]
      %437 = vrot.lane.b32.xlu0 %v429, 125
      %v438 = vpop.permute.xlu0 %437
      %439 = vrot.lane.b32.xlu0 %v430, 125
      %v440 = vpop.permute.xlu0 %439
      %441 = vrot.lane.b32.xlu0 %v431, 125
      %v442 = vpop.permute.xlu0 %441
      %443 = vrot.lane.b32.xlu0 %v432, 125
      %v444 = vpop.permute.xlu0 %443
      %449 = vst.msk [vmem:[#allocation3 + $0x30] sm:$0xf] %vm376, %v438
      %450 = vst.msk [vmem:[#allocation3 + $0x34] sm:$0xf] %vm376, %v440
      %451 = vst.msk [vmem:[#allocation3 + $0x38] sm:$0xf] %vm376, %v442
      %452 = vst.msk [vmem:[#allocation3 + $0x3c] sm:$0xf] %vm376, %v444
      %v453 = vld [vmem:[#allocation2] sm:$0xf]
      %v454 = vld [vmem:[#allocation2 + $0x4] sm:$0xf]
      %v455 = vld [vmem:[#allocation2 + $0x8] sm:$0xf]
      %v456 = vld [vmem:[#allocation2 + $0xc] sm:$0xf]
      %461 = vrot.lane.b32.xlu0 %v453, 124
      %v462 = vpop.permute.xlu0 %461
      %463 = vrot.lane.b32.xlu0 %v454, 124
      %v464 = vpop.permute.xlu0 %463
      %465 = vrot.lane.b32.xlu0 %v455, 124
      %v466 = vpop.permute.xlu0 %465
      %467 = vrot.lane.b32.xlu0 %v456, 124
      %v468 = vpop.permute.xlu0 %467
      %473 = vst.msk [vmem:[#allocation3 + $0x40] sm:$0xf] %vm376, %v462
      %474 = vst.msk [vmem:[#allocation3 + $0x44] sm:$0xf] %vm376, %v464
      %475 = vst.msk [vmem:[#allocation3 + $0x48] sm:$0xf] %vm376, %v466
      %476 = vst.msk [vmem:[#allocation3 + $0x4c] sm:$0xf] %vm376, %v468
      %v477 = vld [vmem:[#allocation2] sm:$0xf]
      %v478 = vld [vmem:[#allocation2 + $0x4] sm:$0xf]
      %v479 = vld [vmem:[#allocation2 + $0x8] sm:$0xf]
      %v480 = vld [vmem:[#allocation2 + $0xc] sm:$0xf]
      %485 = vrot.lane.b32.xlu0 %v477, 123
      %v486 = vpop.permute.xlu0 %485
      %487 = vrot.lane.b32.xlu0 %v478, 123
      %v488 = vpop.permute.xlu0 %487
      %489 = vrot.lane.b32.xlu0 %v479, 123
      %v490 = vpop.permute.xlu0 %489
      %491 = vrot.lane.b32.xlu0 %v480, 123
      %v492 = vpop.permute.xlu0 %491
      %497 = vst.msk [vmem:[#allocation3 + $0x50] sm:$0xf] %vm376, %v486
      %498 = vst.msk [vmem:[#allocation3 + $0x54] sm:$0xf] %vm376, %v488
      %499 = vst.msk [vmem:[#allocation3 + $0x58] sm:$0xf] %vm376, %v490
      %500 = vst.msk [vmem:[#allocation3 + $0x5c] sm:$0xf] %vm376, %v492
      %v501 = vld [vmem:[#allocation2] sm:$0xf]
      %v502 = vld [vmem:[#allocation2 + $0x4] sm:$0xf]
      %v503 = vld [vmem:[#allocation2 + $0x8] sm:$0xf]
      %v504 = vld [vmem:[#allocation2 + $0xc] sm:$0xf]
      %509 = vrot.lane.b32.xlu0 %v501, 122
      %v510 = vpop.permute.xlu0 %509
      %511 = vrot.lane.b32.xlu0 %v502, 122
      %v512 = vpop.permute.xlu0 %511
      %513 = vrot.lane.b32.xlu0 %v503, 122
      %v514 = vpop.permute.xlu0 %513
      %515 = vrot.lane.b32.xlu0 %v504, 122
      %v516 = vpop.permute.xlu0 %515
      %521 = vst.msk [vmem:[#allocation3 + $0x60] sm:$0xf] %vm376, %v510
      %522 = vst.msk [vmem:[#allocation3 + $0x64] sm:$0xf] %vm376, %v512
      %523 = vst.msk [vmem:[#allocation3 + $0x68] sm:$0xf] %vm376, %v514
      %524 = vst.msk [vmem:[#allocation3 + $0x6c] sm:$0xf] %vm376, %v516
      %v525 = vld [vmem:[#allocation2] sm:$0xf]
      %v526 = vld [vmem:[#allocation2 + $0x4] sm:$0xf]
      %v527 = vld [vmem:[#allocation2 + $0x8] sm:$0xf]
      %v528 = vld [vmem:[#allocation2 + $0xc] sm:$0xf]
      %533 = vrot.lane.b32.xlu0 %v525, 121
      %v534 = vpop.permute.xlu0 %533
      %535 = vrot.lane.b32.xlu0 %v526, 121
      %v536 = vpop.permute.xlu0 %535
      %537 = vrot.lane.b32.xlu0 %v527, 121
      %v538 = vpop.permute.xlu0 %537
      %539 = vrot.lane.b32.xlu0 %v528, 121
      %v540 = vpop.permute.xlu0 %539
      %545 = vst.msk [vmem:[#allocation3 + $0x70] sm:$0xf] %vm376, %v534
      %546 = vst.msk [vmem:[#allocation3 + $0x74] sm:$0xf] %vm376, %v536
      %547 = vst.msk [vmem:[#allocation3 + $0x78] sm:$0xf] %vm376, %v538
      %548 = vst.msk [vmem:[#allocation3 + $0x7c] sm:$0xf] %vm376, %v540
      %v549 = vld [vmem:[#allocation2] sm:$0xf]
      %v550 = vld [vmem:[#allocation2 + $0x4] sm:$0xf]
      %v551 = vld [vmem:[#allocation2 + $0x8] sm:$0xf]
      %v552 = vld [vmem:[#allocation2 + $0xc] sm:$0xf]
      %557 = vrot.lane.b32.xlu0 %v549, 120
      %v558 = vpop.permute.xlu0 %557
      %559 = vrot.lane.b32.xlu0 %v550, 120
      %v560 = vpop.permute.xlu0 %559
      %561 = vrot.lane.b32.xlu0 %v551, 120
      %v562 = vpop.permute.xlu0 %561
      %563 = vrot.lane.b32.xlu0 %v552, 120
      %v564 = vpop.permute.xlu0 %563
      %569 = vst.msk [vmem:[#allocation3 + $0x80] sm:$0xf] %vm376, %v558
      %570 = vst.msk [vmem:[#allocation3 + $0x84] sm:$0xf] %vm376, %v560
      %571 = vst.msk [vmem:[#allocation3 + $0x88] sm:$0xf] %vm376, %v562
      %572 = vst.msk [vmem:[#allocation3 + $0x8c] sm:$0xf] %vm376, %v564
      %v573 = vld [vmem:[%s1] sm:$0xff]
      %v574 = vld [vmem:[%s1 + $0x8] sm:$0xf]
      %v575 = vld [vmem:[%s1 + $0xc] sm:$0xff]
      %v576 = vld [vmem:[%s1 + $0x14] sm:$0xf]
      %v577 = vld [vmem:[%s1 + $0x18] sm:$0xff]
      %v578 = vld [vmem:[%s1 + $0x20] sm:$0xf]
      %v579 = vld [vmem:[%s1 + $0x24] sm:$0xff]
      %v580 = vld [vmem:[%s1 + $0x2c] sm:$0xf]
      %v581 = vld [vmem:[#allocation3] sm:$0xf]
      %v582 = vld [vmem:[#allocation3 + $0x4] sm:$0xf]
      %v583 = vld [vmem:[#allocation3 + $0x8] sm:$0xf]
      %v584 = vld [vmem:[#allocation3 + $0xc] sm:$0xf]
      %v585 = vld [vmem:[#allocation3 + $0x10] sm:$0xf]
      %v586 = vld [vmem:[#allocation3 + $0x14] sm:$0xf]
      %v587 = vld [vmem:[#allocation3 + $0x18] sm:$0xf]
      %v588 = vld [vmem:[#allocation3 + $0x1c] sm:$0xf]
      %v589 = vld [vmem:[#allocation3 + $0x20] sm:$0xf]
      %v590 = vld [vmem:[#allocation3 + $0x24] sm:$0xf]
      %v591 = vld [vmem:[#allocation3 + $0x28] sm:$0xf]
      %v592 = vld [vmem:[#allocation3 + $0x2c] sm:$0xf]
      %v593 = vld [vmem:[#allocation3 + $0x30] sm:$0xf]
      %v594 = vld [vmem:[#allocation3 + $0x34] sm:$0xf]
      %v595 = vld [vmem:[#allocation3 + $0x38] sm:$0xf]
      %v596 = vld [vmem:[#allocation3 + $0x3c] sm:$0xf]
      %v597 = vld [vmem:[#allocation3 + $0x40] sm:$0xf]
      %v598 = vld [vmem:[#allocation3 + $0x44] sm:$0xf]
      %v599 = vld [vmem:[#allocation3 + $0x48] sm:$0xf]
      %v600 = vld [vmem:[#allocation3 + $0x4c] sm:$0xf]
      %v601 = vld [vmem:[#allocation3 + $0x50] sm:$0xf]
      %v602 = vld [vmem:[#allocation3 + $0x54] sm:$0xf]
      %v603 = vld [vmem:[#allocation3 + $0x58] sm:$0xf]
      %v604 = vld [vmem:[#allocation3 + $0x5c] sm:$0xf]
      %v605 = vld [vmem:[#allocation3 + $0x60] sm:$0xf]
      %v606 = vld [vmem:[#allocation3 + $0x64] sm:$0xf]
      %v607 = vld [vmem:[#allocation3 + $0x68] sm:$0xf]
      %v608 = vld [vmem:[#allocation3 + $0x6c] sm:$0xf]
      %v609 = vld [vmem:[#allocation3 + $0x70] sm:$0xf]
      %v610 = vld [vmem:[#allocation3 + $0x74] sm:$0xf]
      %v611 = vld [vmem:[#allocation3 + $0x78] sm:$0xf]
      %v612 = vld [vmem:[#allocation3 + $0x7c] sm:$0xf]
      %v613 = vld [vmem:[#allocation3 + $0x80] sm:$0xf]
      %v614 = vld [vmem:[#allocation3 + $0x84] sm:$0xf]
      %v615 = vld [vmem:[#allocation3 + $0x88] sm:$0xf]
      %v616 = vld [vmem:[#allocation3 + $0x8c] sm:$0xf]
      %v625 = vunpack.c.l.b16 %v573
      %v626 = vunpack.c.h.b16 %v573
      %v627 = vunpack.c.l.b16 %v574
      %v628 = vunpack.c.l.b16 %v575
      %v629 = vunpack.c.h.b16 %v575
      %v630 = vunpack.c.l.b16 %v576
      %v631 = vunpack.c.l.b16 %v577
      %v632 = vunpack.c.h.b16 %v577
      %v633 = vunpack.c.l.b16 %v578
      %v634 = vunpack.c.l.b16 %v579
      %v635 = vunpack.c.h.b16 %v579
      %v636 = vunpack.c.l.b16 %v580
      %v637 = vpack.c.b16 %v628, %v625
      %v638 = vpack.c.b16 %v629, %v626
      %v639 = vpack.c.b16 %v630, %v627
      %v640 = vpack.c.b16 %v634, %v631
      %v641 = vpack.c.b16 %v635, %v632
      %v642 = vpack.c.b16 %v636, %v633
      %v683 = vunpack.c.l.b16 %v581
      %v684 = vunpack.c.l.b16 %v582
      %v685 = vunpack.c.l.b16 %v583
      %v686 = vunpack.c.l.b16 %v584
      %v687 = vunpack.c.l.b16 %v585
      %v688 = vunpack.c.l.b16 %v586
      %v689 = vunpack.c.l.b16 %v587
      %v690 = vunpack.c.l.b16 %v588
      %v691 = vunpack.c.l.b16 %v589
      %v692 = vunpack.c.l.b16 %v590
      %v693 = vunpack.c.l.b16 %v591
      %v694 = vunpack.c.l.b16 %v592
      %v695 = vunpack.c.l.b16 %v593
      %v696 = vunpack.c.l.b16 %v594
      %v697 = vunpack.c.l.b16 %v595
      %v698 = vunpack.c.l.b16 %v596
      %v699 = vunpack.c.l.b16 %v597
      %v700 = vunpack.c.l.b16 %v598
      %v701 = vunpack.c.l.b16 %v599
      %v702 = vunpack.c.l.b16 %v600
      %v703 = vunpack.c.l.b16 %v601
      %v704 = vunpack.c.l.b16 %v602
      %v705 = vunpack.c.l.b16 %v603
      %v706 = vunpack.c.l.b16 %v604
      %v707 = vunpack.c.l.b16 %v605
      %v708 = vunpack.c.l.b16 %v606
      %v709 = vunpack.c.l.b16 %v607
      %v710 = vunpack.c.l.b16 %v608
      %v711 = vunpack.c.l.b16 %v609
      %v712 = vunpack.c.l.b16 %v610
      %v713 = vunpack.c.l.b16 %v611
      %v714 = vunpack.c.l.b16 %v612
      %v715 = vunpack.c.l.b16 %v613
      %v716 = vunpack.c.l.b16 %v614
      %v717 = vunpack.c.l.b16 %v615
      %v718 = vunpack.c.l.b16 %v616
      %v719 = vpack.c.b16 %v684, %v683
      %v720 = vpack.c.b16 %v686, %v685
      %v721 = vpack.c.b16 %v688, %v687
      %v722 = vpack.c.b16 %v690, %v689
      %v723 = vpack.c.b16 %v692, %v691
      %v724 = vpack.c.b16 %v694, %v693
      %v725 = vpack.c.b16 %v696, %v695
      %v726 = vpack.c.b16 %v698, %v697
      %v727 = vpack.c.b16 %v700, %v699
      %v728 = vpack.c.b16 %v702, %v701
      %v729 = vpack.c.b16 %v704, %v703
      %v730 = vpack.c.b16 %v706, %v705
      %v731 = vpack.c.b16 %v708, %v707
      %v732 = vpack.c.b16 %v710, %v709
      %v733 = vpack.c.b16 %v712, %v711
      %v734 = vpack.c.b16 %v714, %v713
      %v735 = vpack.c.b16 %v716, %v715
      %v736 = vpack.c.b16 %v718, %v717
      %vm755 = vcmask 261120
      %v757 = vsel %vm755, %v639, 0
      %v760 = vsel %vm755, %v642, 0
      %762 = vmatprep.subr.bf16.mxu0 0
      %763 = vmatpush1.bf16.msra.mxu0 %v726
      %764 = vmatprep.subr.bf16.mxu0 0
      %765 = vmatpush1.bf16.msra.mxu0 %v725
      %766 = vmatprep.subr.bf16.mxu0 0
      %767 = vmatpush1.bf16.msra.mxu0 %v724
      %768 = vmatprep.subr.bf16.mxu0 0
      %769 = vmatpush1.bf16.msra.mxu0 %v723
      %770 = vmatprep.subr.bf16.mxu0 0
      %771 = vmatpush1.bf16.msra.mxu0 %v722
      %772 = vmatprep.subr.bf16.mxu0 0
      %773 = vmatpush1.bf16.msra.mxu0 %v721
      %774 = vmatprep.subr.bf16.mxu0 0
      %775 = vmatpush1.bf16.msra.mxu0 %v720
      %776 = vmatprep.subr.bf16.mxu0 0
      %777 = vmatpush1.bf16.msra.mxu0 %v719
      %778 = vmatprep.subr.bf16.mxu0 0
      %779 = vmatpush2.bf16.msra.mxu0 %v734
      %780 = vmatprep.subr.bf16.mxu0 0
      %781 = vmatpush2.bf16.msra.mxu0 %v733
      %782 = vmatprep.subr.bf16.mxu0 0
      %783 = vmatpush2.bf16.msra.mxu0 %v732
      %784 = vmatprep.subr.bf16.mxu0 0
      %785 = vmatpush2.bf16.msra.mxu0 %v731
      %786 = vmatprep.subr.bf16.mxu0 0
      %787 = vmatpush2.bf16.msra.mxu0 %v730
      %788 = vmatprep.subr.bf16.mxu0 0
      %789 = vmatpush2.bf16.msra.mxu0 %v729
      %790 = vmatprep.subr.bf16.mxu0 0
      %791 = vmatpush2.bf16.msra.mxu0 %v728
      %792 = vmatprep.subr.bf16.mxu0 0
      %793 = vmatpush2.bf16.msra.mxu0 %v727
      %794 = vmatprep.mubr.bf16.mxu0 %v638
      %795 = vmatmul.mubr.bf16.gmra.mxu0 %v637
      %v796 = vpop.f32.mrf.mxu0
      %v797 = vadd.f32 0.0, %v796
      %v798 = vpop.f32.mrf.mxu0
      %v799 = vpop.f32.mrf.mxu0
      %v800 = vadd.f32 0.0, %v799
      %v801 = vpop.f32.mrf.mxu0
      %802 = vmatprep.mubr.bf16.mxu0 %v641
      %803 = vmatmul.mubr.bf16.gmra.mxu0 %v640
      %v804 = vpop.f32.mrf.mxu0
      %v805 = vadd.f32 0.0, %v804
      %v806 = vpop.f32.mrf.mxu0
      %v807 = vpop.f32.mrf.mxu0
      %v808 = vadd.f32 0.0, %v807
      %v809 = vpop.f32.mrf.mxu0
      %810 = vdwg.mxu0
      %811 = vmatprep.subr.bf16.mxu0 0
      %812 = vmatpush1.bf16.msra.mxu0 0
      %813 = vmatprep.subr.bf16.mxu0 0
      %814 = vmatpush1.bf16.msra.mxu0 0
      %815 = vmatprep.subr.bf16.mxu0 0
      %816 = vmatpush1.bf16.msra.mxu0 0
      %817 = vmatprep.subr.bf16.mxu0 0
      %818 = vmatpush1.bf16.msra.mxu0 0
      %819 = vmatprep.subr.bf16.mxu0 0
      %820 = vmatpush1.bf16.msra.mxu0 0
      %821 = vmatprep.subr.bf16.mxu0 0
      %822 = vmatpush1.bf16.msra.mxu0 0
      %823 = vmatprep.subr.bf16.mxu0 0
      %824 = vmatpush1.bf16.msra.mxu0 %v736
      %825 = vmatprep.subr.bf16.mxu0 0
      %826 = vmatpush1.bf16.msra.mxu0 %v735
      %827 = vmatprep.subr.bf16.mxu0 0
      %828 = vmatpush2.bf16.msra.mxu0 0
      %829 = vmatprep.subr.bf16.mxu0 0
      %830 = vmatpush2.bf16.msra.mxu0 0
      %831 = vmatprep.subr.bf16.mxu0 0
      %832 = vmatpush2.bf16.msra.mxu0 0
      %833 = vmatprep.subr.bf16.mxu0 0
      %834 = vmatpush2.bf16.msra.mxu0 0
      %835 = vmatprep.subr.bf16.mxu0 0
      %836 = vmatpush2.bf16.msra.mxu0 0
      %837 = vmatprep.subr.bf16.mxu0 0
      %838 = vmatpush2.bf16.msra.mxu0 0
      %839 = vmatprep.subr.bf16.mxu0 0
      %840 = vmatpush2.bf16.msra.mxu0 0
      %841 = vmatprep.subr.bf16.mxu0 0
      %842 = vmatpush2.bf16.msra.mxu0 0
      %843 = vmatprep.mubr.bf16.mxu0 0
      %844 = vmatmul.mubr.bf16.gmra.mxu0 %v757
      %v845 = vpop.f32.mrf.mxu0
      %v846 = vadd.f32 %v797, %v845
      %v847 = vpop.f32.mrf.mxu0
      %v848 = vpop.f32.mrf.mxu0
      %v849 = vadd.f32 %v800, %v848
      %v850 = vpop.f32.mrf.mxu0
      %851 = vmatprep.mubr.bf16.mxu0 0
      %852 = vmatmul.mubr.bf16.gmra.mxu0 %v760
      %v853 = vpop.f32.mrf.mxu0
      %v854 = vadd.f32 %v805, %v853
      %v855 = vpop.f32.mrf.mxu0
      %v856 = vpop.f32.mrf.mxu0
      %v857 = vadd.f32 %v808, %v856
      %v858 = vpop.f32.mrf.mxu0
      %859 = vdwg.mxu0
      %v860 = vld [vmem:[%s2] sm:$0xff]
      %v861 = vld [vmem:[%s2 + $0x8] sm:$0xff]
      %v862 = vld [vmem:[%s2 + $0x10] sm:$0xff]
      %v863 = vld [vmem:[%s2 + $0x18] sm:$0xff]
      %865 = vset.pattern.permute.xlu0 0
      %866 = vperm.xlu0 %865, %v860
      %v867 = vpop.permute.xlu0 %866
      %870 = vset.pattern.permute.xlu0 0
      %871 = vperm.xlu0 %870, %v861
      %v872 = vpop.permute.xlu0 %871
      %875 = vset.pattern.permute.xlu0 0
      %876 = vperm.xlu0 %875, %v862
      %v877 = vpop.permute.xlu0 %876
      %880 = vset.pattern.permute.xlu0 0
      %881 = vperm.xlu0 %880, %v863
      %v882 = vpop.permute.xlu0 %881
      %v884 = vmul.f32 %v846, %v867
      %v885 = vmul.f32 %v849, %v872
      %v886 = vmul.f32 %v854, %v877
      %v887 = vmul.f32 %v857, %v882
      %v888 = vld [vmem:[%s3] sm:$0xff]
      %v889 = vld [vmem:[%s3 + $0x8] sm:$0xff]
      %v890 = vld [vmem:[%s3 + $0x10] sm:$0xff]
      %v891 = vld [vmem:[%s3 + $0x18] sm:$0xff]
      %893 = vset.pattern.permute.xlu0 0
      %894 = vperm.xlu0 %893, %v888
      %v895 = vpop.permute.xlu0 %894
      %898 = vset.pattern.permute.xlu0 0
      %899 = vperm.xlu0 %898, %v889
      %v900 = vpop.permute.xlu0 %899
      %903 = vset.pattern.permute.xlu0 0
      %904 = vperm.xlu0 %903, %v890
      %v905 = vpop.permute.xlu0 %904
      %908 = vset.pattern.permute.xlu0 0
      %909 = vperm.xlu0 %908, %v891
      %v910 = vpop.permute.xlu0 %909
      %v912 = vadd.f32 %v884, %v895
      %v913 = vadd.f32 %v885, %v900
      %v914 = vadd.f32 %v886, %v905
      %v915 = vadd.f32 %v887, %v910
      %v916 = vmax.f32 %v912, 0.0
      %v917 = vmax.f32 %v913, 0.0
      %v918 = vmax.f32 %v914, 0.0
      %v919 = vmax.f32 %v915, 0.0
      %920 = vst.msk [vmem:[#allocation2] sm:$0xf] %vm338, 0
      %921 = vst.msk [vmem:[#allocation2 + $0x4] sm:$0xf] %vm338, 0
      %922 = vst.msk [vmem:[#allocation2 + $0x8] sm:$0xf] %vm338, 0
      %923 = vst.msk [vmem:[#allocation2 + $0xc] sm:$0xf] %vm338, 0
      %v924 = vpack.c.bf16 %v917, %v916
      %v925 = vpack.c.bf16 %v919, %v918
      %v928 = vunpack.c.l.b16 %v924
      %v929 = vunpack.c.h.b16 %v924
      %v930 = vunpack.c.l.b16 %v925
      %v931 = vunpack.c.h.b16 %v925
      %v932 = vpack.c.b16 %v928, %v928
      %v933 = vpack.c.b16 %v929, %v929
      %v934 = vpack.c.b16 %v930, %v930
      %v935 = vpack.c.b16 %v931, %v931
      %936 = vrot.lane.b32.xlu0 %v932, 4
      %v937 = vpop.permute.xlu0 %936
      %938 = vrot.lane.b32.xlu0 %v933, 4
      %v939 = vpop.permute.xlu0 %938
      %940 = vrot.lane.b32.xlu0 %v934, 4
      %v941 = vpop.permute.xlu0 %940
      %942 = vrot.lane.b32.xlu0 %v935, 4
      %v943 = vpop.permute.xlu0 %942
      %948 = vst.msk [vmem:[#allocation2] sm:$0xf] %vm367, %v937
      %949 = vst.msk [vmem:[#allocation2 + $0x4] sm:$0xf] %vm367, %v939
      %950 = vst.msk [vmem:[#allocation2 + $0x8] sm:$0xf] %vm367, %v941
      %951 = vst.msk [vmem:[#allocation2 + $0xc] sm:$0xf] %vm367, %v943
      %v952 = vld [vmem:[#allocation2] sm:$0xf]
      %v953 = vld [vmem:[#allocation2 + $0x4] sm:$0xf]
      %v954 = vld [vmem:[#allocation2 + $0x8] sm:$0xf]
      %v955 = vld [vmem:[#allocation2 + $0xc] sm:$0xf]
      %956 = vst.msk [vmem:[#allocation3] sm:$0xf] %vm376, %v952
      %957 = vst.msk [vmem:[#allocation3 + $0x4] sm:$0xf] %vm376, %v953
      %958 = vst.msk [vmem:[#allocation3 + $0x8] sm:$0xf] %vm376, %v954
      %959 = vst.msk [vmem:[#allocation3 + $0xc] sm:$0xf] %vm376, %v955
      %v960 = vld [vmem:[#allocation2] sm:$0xf]
      %v961 = vld [vmem:[#allocation2 + $0x4] sm:$0xf]
      %v962 = vld [vmem:[#allocation2 + $0x8] sm:$0xf]
      %v963 = vld [vmem:[#allocation2 + $0xc] sm:$0xf]
      %968 = vrot.lane.b32.xlu0 %v960, 127
      %v969 = vpop.permute.xlu0 %968
      %970 = vrot.lane.b32.xlu0 %v961, 127
      %v971 = vpop.permute.xlu0 %970
      %972 = vrot.lane.b32.xlu0 %v962, 127
      %v973 = vpop.permute.xlu0 %972
      %974 = vrot.lane.b32.xlu0 %v963, 127
      %v975 = vpop.permute.xlu0 %974
      %980 = vst.msk [vmem:[#allocation3 + $0x10] sm:$0xf] %vm376, %v969
      %981 = vst.msk [vmem:[#allocation3 + $0x14] sm:$0xf] %vm376, %v971
      %982 = vst.msk [vmem:[#allocation3 + $0x18] sm:$0xf] %vm376, %v973
      %983 = vst.msk [vmem:[#allocation3 + $0x1c] sm:$0xf] %vm376, %v975
      %v984 = vld [vmem:[#allocation2] sm:$0xf]
      %v985 = vld [vmem:[#allocation2 + $0x4] sm:$0xf]
      %v986 = vld [vmem:[#allocation2 + $0x8] sm:$0xf]
      %v987 = vld [vmem:[#allocation2 + $0xc] sm:$0xf]
      %992 = vrot.lane.b32.xlu0 %v984, 126
      %v993 = vpop.permute.xlu0 %992
      %994 = vrot.lane.b32.xlu0 %v985, 126
      %v995 = vpop.permute.xlu0 %994
      %996 = vrot.lane.b32.xlu0 %v986, 126
      %v997 = vpop.permute.xlu0 %996
      %998 = vrot.lane.b32.xlu0 %v987, 126
      %v999 = vpop.permute.xlu0 %998
      %1004 = vst.msk [vmem:[#allocation3 + $0x20] sm:$0xf] %vm376, %v993
      %1005 = vst.msk [vmem:[#allocation3 + $0x24] sm:$0xf] %vm376, %v995
      %1006 = vst.msk [vmem:[#allocation3 + $0x28] sm:$0xf] %vm376, %v997
      %1007 = vst.msk [vmem:[#allocation3 + $0x2c] sm:$0xf] %vm376, %v999
      %v1008 = vld [vmem:[#allocation2] sm:$0xf]
      %v1009 = vld [vmem:[#allocation2 + $0x4] sm:$0xf]
      %v1010 = vld [vmem:[#allocation2 + $0x8] sm:$0xf]
      %v1011 = vld [vmem:[#allocation2 + $0xc] sm:$0xf]
      %1016 = vrot.lane.b32.xlu0 %v1008, 125
      %v1017 = vpop.permute.xlu0 %1016
      %1018 = vrot.lane.b32.xlu0 %v1009, 125
      %v1019 = vpop.permute.xlu0 %1018
      %1020 = vrot.lane.b32.xlu0 %v1010, 125
      %v1021 = vpop.permute.xlu0 %1020
      %1022 = vrot.lane.b32.xlu0 %v1011, 125
      %v1023 = vpop.permute.xlu0 %1022
      %1028 = vst.msk [vmem:[#allocation3 + $0x30] sm:$0xf] %vm376, %v1017
      %1029 = vst.msk [vmem:[#allocation3 + $0x34] sm:$0xf] %vm376, %v1019
      %1030 = vst.msk [vmem:[#allocation3 + $0x38] sm:$0xf] %vm376, %v1021
      %1031 = vst.msk [vmem:[#allocation3 + $0x3c] sm:$0xf] %vm376, %v1023
      %v1032 = vld [vmem:[#allocation2] sm:$0xf]
      %v1033 = vld [vmem:[#allocation2 + $0x4] sm:$0xf]
      %v1034 = vld [vmem:[#allocation2 + $0x8] sm:$0xf]
      %v1035 = vld [vmem:[#allocation2 + $0xc] sm:$0xf]
      %1040 = vrot.lane.b32.xlu0 %v1032, 124
      %v1041 = vpop.permute.xlu0 %1040
      %1042 = vrot.lane.b32.xlu0 %v1033, 124
      %v1043 = vpop.permute.xlu0 %1042
      %1044 = vrot.lane.b32.xlu0 %v1034, 124
      %v1045 = vpop.permute.xlu0 %1044
      %1046 = vrot.lane.b32.xlu0 %v1035, 124
      %v1047 = vpop.permute.xlu0 %1046
      %1052 = vst.msk [vmem:[#allocation3 + $0x40] sm:$0xf] %vm376, %v1041
      %1053 = vst.msk [vmem:[#allocation3 + $0x44] sm:$0xf] %vm376, %v1043
      %1054 = vst.msk [vmem:[#allocation3 + $0x48] sm:$0xf] %vm376, %v1045
      %1055 = vst.msk [vmem:[#allocation3 + $0x4c] sm:$0xf] %vm376, %v1047
      %v1056 = vld [vmem:[#allocation2] sm:$0xf]
      %v1057 = vld [vmem:[#allocation2 + $0x4] sm:$0xf]
      %v1058 = vld [vmem:[#allocation2 + $0x8] sm:$0xf]
      %v1059 = vld [vmem:[#allocation2 + $0xc] sm:$0xf]
      %1064 = vrot.lane.b32.xlu0 %v1056, 123
      %v1065 = vpop.permute.xlu0 %1064
      %1066 = vrot.lane.b32.xlu0 %v1057, 123
      %v1067 = vpop.permute.xlu0 %1066
      %1068 = vrot.lane.b32.xlu0 %v1058, 123
      %v1069 = vpop.permute.xlu0 %1068
      %1070 = vrot.lane.b32.xlu0 %v1059, 123
      %v1071 = vpop.permute.xlu0 %1070
      %1076 = vst.msk [vmem:[#allocation3 + $0x50] sm:$0xf] %vm376, %v1065
      %1077 = vst.msk [vmem:[#allocation3 + $0x54] sm:$0xf] %vm376, %v1067
      %1078 = vst.msk [vmem:[#allocation3 + $0x58] sm:$0xf] %vm376, %v1069
      %1079 = vst.msk [vmem:[#allocation3 + $0x5c] sm:$0xf] %vm376, %v1071
      %v1080 = vld [vmem:[#allocation2] sm:$0xf]
      %v1081 = vld [vmem:[#allocation2 + $0x4] sm:$0xf]
      %v1082 = vld [vmem:[#allocation2 + $0x8] sm:$0xf]
      %v1083 = vld [vmem:[#allocation2 + $0xc] sm:$0xf]
      %1088 = vrot.lane.b32.xlu0 %v1080, 122
      %v1089 = vpop.permute.xlu0 %1088
      %1090 = vrot.lane.b32.xlu0 %v1081, 122
      %v1091 = vpop.permute.xlu0 %1090
      %1092 = vrot.lane.b32.xlu0 %v1082, 122
      %v1093 = vpop.permute.xlu0 %1092
      %1094 = vrot.lane.b32.xlu0 %v1083, 122
      %v1095 = vpop.permute.xlu0 %1094
      %1100 = vst.msk [vmem:[#allocation3 + $0x60] sm:$0xf] %vm376, %v1089
      %1101 = vst.msk [vmem:[#allocation3 + $0x64] sm:$0xf] %vm376, %v1091
      %1102 = vst.msk [vmem:[#allocation3 + $0x68] sm:$0xf] %vm376, %v1093
      %1103 = vst.msk [vmem:[#allocation3 + $0x6c] sm:$0xf] %vm376, %v1095
      %v1104 = vld [vmem:[#allocation2] sm:$0xf]
      %v1105 = vld [vmem:[#allocation2 + $0x4] sm:$0xf]
      %v1106 = vld [vmem:[#allocation2 + $0x8] sm:$0xf]
      %v1107 = vld [vmem:[#allocation2 + $0xc] sm:$0xf]
      %1112 = vrot.lane.b32.xlu0 %v1104, 121
      %v1113 = vpop.permute.xlu0 %1112
      %1114 = vrot.lane.b32.xlu0 %v1105, 121
      %v1115 = vpop.permute.xlu0 %1114
      %1116 = vrot.lane.b32.xlu0 %v1106, 121
      %v1117 = vpop.permute.xlu0 %1116
      %1118 = vrot.lane.b32.xlu0 %v1107, 121
      %v1119 = vpop.permute.xlu0 %1118
      %1124 = vst.msk [vmem:[#allocation3 + $0x70] sm:$0xf] %vm376, %v1113
      %1125 = vst.msk [vmem:[#allocation3 + $0x74] sm:$0xf] %vm376, %v1115
      %1126 = vst.msk [vmem:[#allocation3 + $0x78] sm:$0xf] %vm376, %v1117
      %1127 = vst.msk [vmem:[#allocation3 + $0x7c] sm:$0xf] %vm376, %v1119
      %v1128 = vld [vmem:[#allocation2] sm:$0xf]
      %v1129 = vld [vmem:[#allocation2 + $0x4] sm:$0xf]
      %v1130 = vld [vmem:[#allocation2 + $0x8] sm:$0xf]
      %v1131 = vld [vmem:[#allocation2 + $0xc] sm:$0xf]
      %1136 = vrot.lane.b32.xlu0 %v1128, 120
      %v1137 = vpop.permute.xlu0 %1136
      %1138 = vrot.lane.b32.xlu0 %v1129, 120
      %v1139 = vpop.permute.xlu0 %1138
      %1140 = vrot.lane.b32.xlu0 %v1130, 120
      %v1141 = vpop.permute.xlu0 %1140
      %1142 = vrot.lane.b32.xlu0 %v1131, 120
      %v1143 = vpop.permute.xlu0 %1142
      %1148 = vst.msk [vmem:[#allocation3 + $0x80] sm:$0xf] %vm376, %v1137
      %1149 = vst.msk [vmem:[#allocation3 + $0x84] sm:$0xf] %vm376, %v1139
      %1150 = vst.msk [vmem:[#allocation3 + $0x88] sm:$0xf] %vm376, %v1141
      %1151 = vst.msk [vmem:[#allocation3 + $0x8c] sm:$0xf] %vm376, %v1143
      %v1152 = vld [vmem:[%s4] sm:$0xff]
      %v1153 = vld [vmem:[%s4 + $0x8] sm:$0xf]
      %v1154 = vld [vmem:[%s4 + $0xc] sm:$0xff]
      %v1155 = vld [vmem:[%s4 + $0x14] sm:$0xf]
      %v1156 = vld [vmem:[%s4 + $0x18] sm:$0xff]
      %v1157 = vld [vmem:[%s4 + $0x20] sm:$0xf]
      %v1158 = vld [vmem:[%s4 + $0x24] sm:$0xff]
      %v1159 = vld [vmem:[%s4 + $0x2c] sm:$0xf]
      %v1160 = vld [vmem:[#allocation3] sm:$0xf]
      %v1161 = vld [vmem:[#allocation3 + $0x4] sm:$0xf]
      %v1162 = vld [vmem:[#allocation3 + $0x8] sm:$0xf]
      %v1163 = vld [vmem:[#allocation3 + $0xc] sm:$0xf]
      %v1164 = vld [vmem:[#allocation3 + $0x10] sm:$0xf]
      %v1165 = vld [vmem:[#allocation3 + $0x14] sm:$0xf]
      %v1166 = vld [vmem:[#allocation3 + $0x18] sm:$0xf]
      %v1167 = vld [vmem:[#allocation3 + $0x1c] sm:$0xf]
      %v1168 = vld [vmem:[#allocation3 + $0x20] sm:$0xf]
      %v1169 = vld [vmem:[#allocation3 + $0x24] sm:$0xf]
      %v1170 = vld [vmem:[#allocation3 + $0x28] sm:$0xf]
      %v1171 = vld [vmem:[#allocation3 + $0x2c] sm:$0xf]
      %v1172 = vld [vmem:[#allocation3 + $0x30] sm:$0xf]
      %v1173 = vld [vmem:[#allocation3 + $0x34] sm:$0xf]
      %v1174 = vld [vmem:[#allocation3 + $0x38] sm:$0xf]
      %v1175 = vld [vmem:[#allocation3 + $0x3c] sm:$0xf]
      %v1176 = vld [vmem:[#allocation3 + $0x40] sm:$0xf]
      %v1177 = vld [vmem:[#allocation3 + $0x44] sm:$0xf]
      %v1178 = vld [vmem:[#allocation3 + $0x48] sm:$0xf]
      %v1179 = vld [vmem:[#allocation3 + $0x4c] sm:$0xf]
      %v1180 = vld [vmem:[#allocation3 + $0x50] sm:$0xf]
      %v1181 = vld [vmem:[#allocation3 + $0x54] sm:$0xf]
      %v1182 = vld [vmem:[#allocation3 + $0x58] sm:$0xf]
      %v1183 = vld [vmem:[#allocation3 + $0x5c] sm:$0xf]
      %v1184 = vld [vmem:[#allocation3 + $0x60] sm:$0xf]
      %v1185 = vld [vmem:[#allocation3 + $0x64] sm:$0xf]
      %v1186 = vld [vmem:[#allocation3 + $0x68] sm:$0xf]
      %v1187 = vld [vmem:[#allocation3 + $0x6c] sm:$0xf]
      %v1188 = vld [vmem:[#allocation3 + $0x70] sm:$0xf]
      %v1189 = vld [vmem:[#allocation3 + $0x74] sm:$0xf]
      %v1190 = vld [vmem:[#allocation3 + $0x78] sm:$0xf]
      %v1191 = vld [vmem:[#allocation3 + $0x7c] sm:$0xf]
      %v1192 = vld [vmem:[#allocation3 + $0x80] sm:$0xf]
      %v1193 = vld [vmem:[#allocation3 + $0x84] sm:$0xf]
      %v1194 = vld [vmem:[#allocation3 + $0x88] sm:$0xf]
      %v1195 = vld [vmem:[#allocation3 + $0x8c] sm:$0xf]
      %v1204 = vunpack.c.l.b16 %v1152
      %v1205 = vunpack.c.h.b16 %v1152
      %v1206 = vunpack.c.l.b16 %v1153
      %v1207 = vunpack.c.l.b16 %v1154
      %v1208 = vunpack.c.h.b16 %v1154
      %v1209 = vunpack.c.l.b16 %v1155
      %v1210 = vunpack.c.l.b16 %v1156
      %v1211 = vunpack.c.h.b16 %v1156
      %v1212 = vunpack.c.l.b16 %v1157
      %v1213 = vunpack.c.l.b16 %v1158
      %v1214 = vunpack.c.h.b16 %v1158
      %v1215 = vunpack.c.l.b16 %v1159
      %v1216 = vpack.c.b16 %v1207, %v1204
      %v1217 = vpack.c.b16 %v1208, %v1205
      %v1218 = vpack.c.b16 %v1209, %v1206
      %v1219 = vpack.c.b16 %v1213, %v1210
      %v1220 = vpack.c.b16 %v1214, %v1211
      %v1221 = vpack.c.b16 %v1215, %v1212
      %v1262 = vunpack.c.l.b16 %v1160
      %v1263 = vunpack.c.l.b16 %v1161
      %v1264 = vunpack.c.l.b16 %v1162
      %v1265 = vunpack.c.l.b16 %v1163
      %v1266 = vunpack.c.l.b16 %v1164
      %v1267 = vunpack.c.l.b16 %v1165
      %v1268 = vunpack.c.l.b16 %v1166
      %v1269 = vunpack.c.l.b16 %v1167
      %v1270 = vunpack.c.l.b16 %v1168
      %v1271 = vunpack.c.l.b16 %v1169
      %v1272 = vunpack.c.l.b16 %v1170
      %v1273 = vunpack.c.l.b16 %v1171
      %v1274 = vunpack.c.l.b16 %v1172
      %v1275 = vunpack.c.l.b16 %v1173
      %v1276 = vunpack.c.l.b16 %v1174
      %v1277 = vunpack.c.l.b16 %v1175
      %v1278 = vunpack.c.l.b16 %v1176
      %v1279 = vunpack.c.l.b16 %v1177
      %v1280 = vunpack.c.l.b16 %v1178
      %v1281 = vunpack.c.l.b16 %v1179
      %v1282 = vunpack.c.l.b16 %v1180
      %v1283 = vunpack.c.l.b16 %v1181
      %v1284 = vunpack.c.l.b16 %v1182
      %v1285 = vunpack.c.l.b16 %v1183
      %v1286 = vunpack.c.l.b16 %v1184
      %v1287 = vunpack.c.l.b16 %v1185
      %v1288 = vunpack.c.l.b16 %v1186
      %v1289 = vunpack.c.l.b16 %v1187
      %v1290 = vunpack.c.l.b16 %v1188
      %v1291 = vunpack.c.l.b16 %v1189
      %v1292 = vunpack.c.l.b16 %v1190
      %v1293 = vunpack.c.l.b16 %v1191
      %v1294 = vunpack.c.l.b16 %v1192
      %v1295 = vunpack.c.l.b16 %v1193
      %v1296 = vunpack.c.l.b16 %v1194
      %v1297 = vunpack.c.l.b16 %v1195
      %v1298 = vpack.c.b16 %v1263, %v1262
      %v1299 = vpack.c.b16 %v1265, %v1264
      %v1300 = vpack.c.b16 %v1267, %v1266
      %v1301 = vpack.c.b16 %v1269, %v1268
      %v1302 = vpack.c.b16 %v1271, %v1270
      %v1303 = vpack.c.b16 %v1273, %v1272
      %v1304 = vpack.c.b16 %v1275, %v1274
      %v1305 = vpack.c.b16 %v1277, %v1276
      %v1306 = vpack.c.b16 %v1279, %v1278
      %v1307 = vpack.c.b16 %v1281, %v1280
      %v1308 = vpack.c.b16 %v1283, %v1282
      %v1309 = vpack.c.b16 %v1285, %v1284
      %v1310 = vpack.c.b16 %v1287, %v1286
      %v1311 = vpack.c.b16 %v1289, %v1288
      %v1312 = vpack.c.b16 %v1291, %v1290
      %v1313 = vpack.c.b16 %v1293, %v1292
      %v1314 = vpack.c.b16 %v1295, %v1294
      %v1315 = vpack.c.b16 %v1297, %v1296
      %v1335 = vsel %vm755, %v1218, 0
      %v1338 = vsel %vm755, %v1221, 0
      %1340 = vmatprep.subr.bf16.mxu0 0
      %1341 = vmatpush1.bf16.msra.mxu0 %v1305
      %1342 = vmatprep.subr.bf16.mxu0 0
      %1343 = vmatpush1.bf16.msra.mxu0 %v1304
      %1344 = vmatprep.subr.bf16.mxu0 0
      %1345 = vmatpush1.bf16.msra.mxu0 %v1303
      %1346 = vmatprep.subr.bf16.mxu0 0
      %1347 = vmatpush1.bf16.msra.mxu0 %v1302
      %1348 = vmatprep.subr.bf16.mxu0 0
      %1349 = vmatpush1.bf16.msra.mxu0 %v1301
      %1350 = vmatprep.subr.bf16.mxu0 0
      %1351 = vmatpush1.bf16.msra.mxu0 %v1300
      %1352 = vmatprep.subr.bf16.mxu0 0
      %1353 = vmatpush1.bf16.msra.mxu0 %v1299
      %1354 = vmatprep.subr.bf16.mxu0 0
      %1355 = vmatpush1.bf16.msra.mxu0 %v1298
      %1356 = vmatprep.subr.bf16.mxu0 0
      %1357 = vmatpush2.bf16.msra.mxu0 %v1313
      %1358 = vmatprep.subr.bf16.mxu0 0
      %1359 = vmatpush2.bf16.msra.mxu0 %v1312
      %1360 = vmatprep.subr.bf16.mxu0 0
      %1361 = vmatpush2.bf16.msra.mxu0 %v1311
      %1362 = vmatprep.subr.bf16.mxu0 0
      %1363 = vmatpush2.bf16.msra.mxu0 %v1310
      %1364 = vmatprep.subr.bf16.mxu0 0
      %1365 = vmatpush2.bf16.msra.mxu0 %v1309
      %1366 = vmatprep.subr.bf16.mxu0 0
      %1367 = vmatpush2.bf16.msra.mxu0 %v1308
      %1368 = vmatprep.subr.bf16.mxu0 0
      %1369 = vmatpush2.bf16.msra.mxu0 %v1307
      %1370 = vmatprep.subr.bf16.mxu0 0
      %1371 = vmatpush2.bf16.msra.mxu0 %v1306
      %1372 = vmatprep.mubr.bf16.mxu0 %v1217
      %1373 = vmatmul.mubr.bf16.gmra.mxu0 %v1216
      %v1374 = vpop.f32.mrf.mxu0
      %v1375 = vadd.f32 0.0, %v1374
      %v1376 = vpop.f32.mrf.mxu0
      %v1377 = vpop.f32.mrf.mxu0
      %v1378 = vadd.f32 0.0, %v1377
      %v1379 = vpop.f32.mrf.mxu0
      %1380 = vmatprep.mubr.bf16.mxu0 %v1220
      %1381 = vmatmul.mubr.bf16.gmra.mxu0 %v1219
      %v1382 = vpop.f32.mrf.mxu0
      %v1383 = vadd.f32 0.0, %v1382
      %v1384 = vpop.f32.mrf.mxu0
      %v1385 = vpop.f32.mrf.mxu0
      %v1386 = vadd.f32 0.0, %v1385
      %v1387 = vpop.f32.mrf.mxu0
      %1388 = vdwg.mxu0
      %1389 = vmatprep.subr.bf16.mxu0 0
      %1390 = vmatpush1.bf16.msra.mxu0 0
      %1391 = vmatprep.subr.bf16.mxu0 0
      %1392 = vmatpush1.bf16.msra.mxu0 0
      %1393 = vmatprep.subr.bf16.mxu0 0
      %1394 = vmatpush1.bf16.msra.mxu0 0
      %1395 = vmatprep.subr.bf16.mxu0 0
      %1396 = vmatpush1.bf16.msra.mxu0 0
      %1397 = vmatprep.subr.bf16.mxu0 0
      %1398 = vmatpush1.bf16.msra.mxu0 0
      %1399 = vmatprep.subr.bf16.mxu0 0
      %1400 = vmatpush1.bf16.msra.mxu0 0
      %1401 = vmatprep.subr.bf16.mxu0 0
      %1402 = vmatpush1.bf16.msra.mxu0 %v1315
      %1403 = vmatprep.subr.bf16.mxu0 0
      %1404 = vmatpush1.bf16.msra.mxu0 %v1314
      %1405 = vmatprep.subr.bf16.mxu0 0
      %1406 = vmatpush2.bf16.msra.mxu0 0
      %1407 = vmatprep.subr.bf16.mxu0 0
      %1408 = vmatpush2.bf16.msra.mxu0 0
      %1409 = vmatprep.subr.bf16.mxu0 0
      %1410 = vmatpush2.bf16.msra.mxu0 0
      %1411 = vmatprep.subr.bf16.mxu0 0
      %1412 = vmatpush2.bf16.msra.mxu0 0
      %1413 = vmatprep.subr.bf16.mxu0 0
      %1414 = vmatpush2.bf16.msra.mxu0 0
      %1415 = vmatprep.subr.bf16.mxu0 0
      %1416 = vmatpush2.bf16.msra.mxu0 0
      %1417 = vmatprep.subr.bf16.mxu0 0
      %1418 = vmatpush2.bf16.msra.mxu0 0
      %1419 = vmatprep.subr.bf16.mxu0 0
      %1420 = vmatpush2.bf16.msra.mxu0 0
      %1421 = vmatprep.mubr.bf16.mxu0 0
      %1422 = vmatmul.mubr.bf16.gmra.mxu0 %v1335
      %v1423 = vpop.f32.mrf.mxu0
      %v1424 = vadd.f32 %v1375, %v1423
      %v1425 = vpop.f32.mrf.mxu0
      %v1426 = vpop.f32.mrf.mxu0
      %v1427 = vadd.f32 %v1378, %v1426
      %v1428 = vpop.f32.mrf.mxu0
      %1429 = vmatprep.mubr.bf16.mxu0 0
      %1430 = vmatmul.mubr.bf16.gmra.mxu0 %v1338
      %v1431 = vpop.f32.mrf.mxu0
      %v1432 = vadd.f32 %v1383, %v1431
      %v1433 = vpop.f32.mrf.mxu0
      %v1434 = vpop.f32.mrf.mxu0
      %v1435 = vadd.f32 %v1386, %v1434
      %v1436 = vpop.f32.mrf.mxu0
      %1437 = vdwg.mxu0
      %v1438 = vld [vmem:[%s5] sm:$0xff]
      %v1439 = vld [vmem:[%s5 + $0x8] sm:$0xff]
      %v1440 = vld [vmem:[%s5 + $0x10] sm:$0xff]
      %v1441 = vld [vmem:[%s5 + $0x18] sm:$0xff]
      %1443 = vset.pattern.permute.xlu0 0
      %1444 = vperm.xlu0 %1443, %v1438
      %v1445 = vpop.permute.xlu0 %1444
      %1448 = vset.pattern.permute.xlu0 0
      %1449 = vperm.xlu0 %1448, %v1439
      %v1450 = vpop.permute.xlu0 %1449
      %1453 = vset.pattern.permute.xlu0 0
      %1454 = vperm.xlu0 %1453, %v1440
      %v1455 = vpop.permute.xlu0 %1454
      %1458 = vset.pattern.permute.xlu0 0
      %1459 = vperm.xlu0 %1458, %v1441
      %v1460 = vpop.permute.xlu0 %1459
      %v1462 = vmul.f32 %v1424, %v1445
      %v1463 = vmul.f32 %v1427, %v1450
      %v1464 = vmul.f32 %v1432, %v1455
      %v1465 = vmul.f32 %v1435, %v1460
      %v1466 = vld [vmem:[%s6] sm:$0xff]
      %v1467 = vld [vmem:[%s6 + $0x8] sm:$0xff]
      %v1468 = vld [vmem:[%s6 + $0x10] sm:$0xff]
      %v1469 = vld [vmem:[%s6 + $0x18] sm:$0xff]
      %1471 = vset.pattern.permute.xlu0 0
      %1472 = vperm.xlu0 %1471, %v1466
      %v1473 = vpop.permute.xlu0 %1472
      %1476 = vset.pattern.permute.xlu0 0
      %1477 = vperm.xlu0 %1476, %v1467
      %v1478 = vpop.permute.xlu0 %1477
      %1481 = vset.pattern.permute.xlu0 0
      %1482 = vperm.xlu0 %1481, %v1468
      %v1483 = vpop.permute.xlu0 %1482
      %1486 = vset.pattern.permute.xlu0 0
      %1487 = vperm.xlu0 %1486, %v1469
      %v1488 = vpop.permute.xlu0 %1487
      %v1490 = vadd.f32 %v1462, %v1473
      %v1491 = vadd.f32 %v1463, %v1478
      %v1492 = vadd.f32 %v1464, %v1483
      %v1493 = vadd.f32 %v1465, %v1488
      %v1494 = vmax.f32 %v1490, 0.0
      %v1495 = vmax.f32 %v1491, 0.0
      %v1496 = vmax.f32 %v1492, 0.0
      %v1497 = vmax.f32 %v1493, 0.0
      %v1498 = vadd.f32 %v334, %v1494
      %v1499 = vadd.f32 %v335, %v1495
      %v1500 = vadd.f32 %v336, %v1496
      %v1501 = vadd.f32 %v337, %v1497
      %v1502 = vmax.f32 %v1498, 0.0
      %v1503 = vmax.f32 %v1499, 0.0
      %v1504 = vmax.f32 %v1500, 0.0
      %v1505 = vmax.f32 %v1501, 0.0
      %vm1506 = vcmask 130048
      %v1507 = vsel %vm1506, %v1502, 0.0
      %1508 = vadd.xlane.f32.xlu0 %v1507
      %v1509 = vpop.xlane.xlu0 %1508
      %v1510 = vsel %vm1506, %v1503, 0.0
      %1511 = vadd.xlane.f32.xlu0 %v1510
      %v1512 = vpop.xlane.xlu0 %1511
      %v1513 = vsel %vm1506, %v1504, 0.0
      %1514 = vadd.xlane.f32.xlu0 %v1513
      %v1515 = vpop.xlane.xlu0 %1514
      %v1516 = vsel %vm1506, %v1505, 0.0
      %1517 = vadd.xlane.f32.xlu0 %v1516
      %v1518 = vpop.xlane.xlu0 %1517
      %v1519 = vrcp.pop 16.0
      %v1520 = vmul.f32 %v1509, %v1519
      %v1521 = vmul.f32 %v1512, %v1519
      %v1522 = vmul.f32 %v1515, %v1519
      %v1523 = vmul.f32 %v1518, %v1519
      %v1524 = vld [vmem:[%s7] sm:$0xff]
      %v1525 = vld [vmem:[%s7 + $0x8] sm:$0xff]
      %v1526 = vld [vmem:[%s7 + $0x10] sm:$0xff]
      %v1527 = vld [vmem:[%s7 + $0x18] sm:$0xff]
      %v1528 = vmul.f32 %v1524, %v1520
      %v1529 = vmul.f32 %v1525, %v1521
      %v1530 = vmul.f32 %v1526, %v1522
      %v1531 = vmul.f32 %v1527, %v1523
      %vm1532 = vcmask 15360
      %v1533 = vsel %vm1532, %v1528, 0.0
      %v1534 = vsel %vm1532, %v1529, 0.0
      %v1535 = vadd.f32 %v1533, %v1534
      %v1536 = vsel %vm1532, %v1530, 0.0
      %v1537 = vadd.f32 %v1535, %v1536
      %v1538 = vsel %vm1532, %v1531, 0.0
      %v1539 = vadd.f32 %v1537, %v1538
      %v1540 = vrot.slane %v1539, 4
      %v1541 = vadd.f32 %v1539, %v1540
      %v1542 = vrot.slane %v1541, 2
      %v1543 = vadd.f32 %v1541, %v1542
      %v1544 = vrot.slane %v1543, 1
      %v1545 = vadd.f32 %v1543, %v1544
      %v1546 = vmax.f32 %v1545, 0.0
      %v1547 = vld [vmem:[%s8] sm:$0xff]
      %v1548 = vld [vmem:[%s8 + $0x8] sm:$0xff]
      %v1549 = vld [vmem:[%s8 + $0x10] sm:$0xff]
      %v1550 = vld [vmem:[%s8 + $0x18] sm:$0xff]
      %v1551 = vmul.f32 %v1547, %v1546
      %v1552 = vmul.f32 %v1548, %v1546
      %v1553 = vmul.f32 %v1549, %v1546
      %v1554 = vmul.f32 %v1550, %v1546
      %v1555 = vsel %vm1532, %v1551, 0.0
      %1556 = vadd.xlane.f32.xlu0 %v1555
      %v1557 = vpop.xlane.xlu0 %1556
      %v1558 = vsel %vm1532, %v1552, 0.0
      %1559 = vadd.xlane.f32.xlu0 %v1558
      %v1560 = vpop.xlane.xlu0 %1559
      %v1561 = vsel %vm1532, %v1553, 0.0
      %1562 = vadd.xlane.f32.xlu0 %v1561
      %v1563 = vpop.xlane.xlu0 %1562
      %v1564 = vsel %vm1532, %v1554, 0.0
      %1565 = vadd.xlane.f32.xlu0 %v1564
      %v1566 = vpop.xlane.xlu0 %1565
      %v1567 = vxor.u32 %v1557, 2147483648
      %v1568 = vxor.u32 %v1560, 2147483648
      %v1569 = vxor.u32 %v1563, 2147483648
      %v1570 = vxor.u32 %v1566, 2147483648
      %v1571 = vmul.f32 %v1567, 1.442695
      %v1572 = vpow.pop %v1571
      %v1573 = vmul.f32 %v1568, 1.442695
      %v1574 = vpow.pop %v1573
      %v1575 = vmul.f32 %v1569, 1.442695
      %v1576 = vpow.pop %v1575
      %v1577 = vmul.f32 %v1570, 1.442695
      %v1578 = vpow.pop %v1577
      %v1579 = vadd.f32 %v1572, 1.0
      %v1580 = vadd.f32 %v1574, 1.0
      %v1581 = vadd.f32 %v1576, 1.0
      %v1582 = vadd.f32 %v1578, 1.0
      %v1583 = vrcp.pop %v1579
      %v1584 = vmul.f32 1.0, %v1583
      %v1585 = vrcp.pop %v1580
      %v1586 = vmul.f32 1.0, %v1585
      %v1587 = vrcp.pop %v1581
      %v1588 = vmul.f32 1.0, %v1587
      %v1589 = vrcp.pop %v1582
      %v1590 = vmul.f32 1.0, %v1589
      %v1591 = vmul.f32 %v1502, %v1584
      %v1592 = vmul.f32 %v1503, %v1586
      %v1593 = vmul.f32 %v1504, %v1588
      %v1594 = vmul.f32 %v1505, %v1590
      %1595 = vst.msk [vmem:[%s332] sm:$0xff] %vm1506, %v1591
      %1596 = vst.msk [vmem:[%s332 + $0x8] sm:$0xff] %vm1506, %v1592
      %1597 = vst.msk [vmem:[%s332 + $0x10] sm:$0xff] %vm1506, %v1593
      %1598 = vst.msk [vmem:[%s332 + $0x18] sm:$0xff] %vm1506, %v1594
      %p1599 = scmp.lt.s32.totalorder %s20, 1
      %s1600 = scalar_select %p1599, %s20, 1
      %s1601 = smul.addr %s1600, 4
      %s1602 = smul.addr %s1601, 8
      %s1603 = scalar_lea.vmem %s9, %s1602
      // Predicated region
      $region57: #{ribonanza_forward.13} parent=55 // pred_check
        %p1604 = pneg %p232
      $region58: #{ribonanza_forward.13} parent=55 // pred_check_branch
        %1606 = sbr.rel (%p1604) target = $region60
      $region59: #{ribonanza_forward.13} parent=55 // pred_region
        _
      $region60: #{ribonanza_forward.13} parent=55 // pred_fallthru
        _
    $region56: #{ribonanza_forward.13} parent=5 // pred_fallthru
      _
    %p1607 = scmp.le.s32.totalorder 2, %s15
    // Predicated region
    $region61: #{ribonanza_forward.13} parent=5 // pred_check
      %p1608 = pneg %p1607
    $region62: #{ribonanza_forward.13} parent=5 // pred_check_branch
      %1610 = sbr.rel (%p1608) target = $region64
    $region63: #{ribonanza_forward.13} parent=5 // pred_region
      %s1611 = ssub.s32 %s15, 2
      // Predicated region
      $region65: #{ribonanza_forward.13} parent=63 // pred_check
        %p1612 = pneg %p238
      $region66: #{ribonanza_forward.13} parent=63 // pred_check_branch
        %1614 = sbr.rel (%p1612) target = $region68
      $region67: #{ribonanza_forward.13} parent=63 // pred_region
        %p1615 = scmp.lt.s32.totalorder %s21, 1
        %s1616 = scalar_select %p1615, %s21, 1
        %s1617 = smul.addr %s1616, 4
        %s1618 = smul.addr %s1617, 8
        %s1619 = scalar_lea.vmem %s9, %s1618
      $region68: #{ribonanza_forward.13} parent=63 // pred_fallthru
        _
    $region64: #{ribonanza_forward.13} parent=5 // pred_fallthru
      _
  $region6: #{ribonanza_forward.13} parent=0 // loop_footer
    %s19 = sadd.s32 1, %s15
  $region7: #{ribonanza_forward.13} parent=0 // loop_footer_branch
    %14 = sbr.rel target = $region3
  $region8: #{ribonanza_forward.13} parent=0 // loop_exit
    _

</llo_original>
